<compile_context>
chip_gen: v7x
topology: tpu7x:2x2x1
jax: 0.10.0
libtpu: 0.0.40
codegen_flags: <defaults>
</compile_context>

<pallas_src>
import numpy as np

import jax
import jax.numpy as jnp
from jax import lax
from jax.experimental import pallas as pl
from jax.experimental.pallas import tpu as pltpu


# -----------------------------------------------------------------------------
# Static geometry (fc1 = Linear(288, 256) pins the conv stack to 40x40 inputs).
# -----------------------------------------------------------------------------
_H = _W = 40
_KH1, _STR1 = 8, 4          # conv1 kernel / stride
_ROWS_PER_BAND = 3          # conv1 output rows per band (9 rows -> 3 bands)


def _round_up(x, m):
    return (x + m - 1) // m * m


def _conv1_band_windows(h=_H, w=_W, kh=_KH1, stride=_STR1, rpb=_ROWS_PER_BAND):
    """128-lane-aligned flat-input windows, one per conv1 output-row band."""
    oh = (h - kh) // stride + 1
    assert oh % rpb == 0
    wins = []
    for b in range(oh // rpb):
        lo = (b * rpb * stride) * w
        hi = (((b + 1) * rpb - 1) * stride + kh) * w
        wins.append((lo // 128 * 128, min(_round_up(hi, 128), h * w)))
    return tuple(wins)


_X_WINDOWS = _conv1_band_windows()        # ((0, 640), (384, 1152), (896, 1600))
assert len(_X_WINDOWS) == 3


# -----------------------------------------------------------------------------
# Fused whole-network kernel: banded conv1/conv2 + fc1 + head, all in VMEM.
# -----------------------------------------------------------------------------
def _dqn_kernel(x_ref, w1a_ref, w1b_ref, w1c_ref, t1_ref,
                w2a_ref, w2b_ref, w2c_ref, t2_ref,
                w3_ref, b3_ref, w4_ref, b4_ref, o_ref):
    f32, bf16 = jnp.float32, jnp.bfloat16

    # conv1 bands (BN1 scale folded into columns) + shift + ReLU, each band
    # immediately contracted with its conv2 row-band and accumulated.
    h2 = None
    for (lo, hi), w1_ref, w2_ref in zip(
            _X_WINDOWS,
            (w1a_ref, w1b_ref, w1c_ref),
            (w2a_ref, w2b_ref, w2c_ref)):
        xb = x_ref[:, lo:hi].astype(bf16)                 # in-kernel f32->bf16
        y = jnp.dot(xb, w1_ref[...], preferred_element_type=f32)
        y = jnp.maximum(y + t1_ref[...], 0.0)
        p = jnp.dot(y.astype(bf16), w2_ref[...], preferred_element_type=f32)
        h2 = p if h2 is None else h2 + p

    # conv2 epilogue (BN2 scale folded into columns) + ReLU
    h2 = jnp.maximum(h2 + t2_ref[...], 0.0)

    # fc1 + bias + ReLU
    h3 = jnp.dot(h2.astype(bf16), w3_ref[...], preferred_element_type=f32)
    h3 = jnp.maximum(h3 + b3_ref[...], 0.0)

    # head (f32 weights, lane-dense 128-wide padded output) + bias
    q = jnp.dot(h3, w4_ref[...], preferred_element_type=f32)
    o_ref[...] = (q + b4_ref[...]).astype(o_ref.dtype)


def dqn_forward(prep, x, outputs):
    """x: (B, 1, H, W) f32 NCHW -> (B, outputs) f32."""
    B = x.shape[0]
    x_flat = x.reshape(B, -1)                 # free bitcast; stays f32
    K1 = x_flat.shape[1]

    # Batch padding / tiling: multiple of 16 rows; >= 2 grid steps for medium
    # batches (both v7x TCs), 512-row tiles for large replay batches (v6e).
    b_pad = _round_up(B, 16)
    if b_pad >= 1024:
        bm = 512
    elif b_pad >= 32:
        bm = _round_up(b_pad // 2, 16)
    else:
        bm = b_pad
    b_pad = _round_up(b_pad, bm)
    if b_pad != B:
        x_flat = jnp.pad(x_flat, ((0, b_pad - B), (0, 0)))

    n_head = prep["w4"].shape[1]              # 128 (lane-dense padded head)
    whole = lambda i: (0, 0)                  # params: DMA'd once, resident
    row_blk = lambda i: (i, 0)                # activations: tiled over batch

    out = pl.pallas_call(
        _dqn_kernel,
        out_shape=jax.ShapeDtypeStruct((b_pad, n_head), jnp.float32),
        grid=(b_pad // bm,),
        in_specs=[
            pl.BlockSpec((bm, K1), row_blk),              # x (f32)
            pl.BlockSpec(prep["w1_0"].shape, whole),      # conv1 band 0 (bf16)
            pl.BlockSpec(prep["w1_1"].shape, whole),      # conv1 band 1
            pl.BlockSpec(prep["w1_2"].shape, whole),      # conv1 band 2
            pl.BlockSpec(prep["t1"].shape, whole),        # BN1 shift (f32)
            pl.BlockSpec(prep["w2_0"].shape, whole),      # conv2 row-band 0
            pl.BlockSpec(prep["w2_1"].shape, whole),
            pl.BlockSpec(prep["w2_2"].shape, whole),
            pl.BlockSpec(prep["t2"].shape, whole),        # BN2 shift (f32)
            pl.BlockSpec(prep["w3"].shape, whole),        # fc1 (bf16, pre-T)
            pl.BlockSpec(prep["b3"].shape, whole),
            pl.BlockSpec(prep["w4"].shape, whole),        # head (f32, padded)
            pl.BlockSpec(prep["b4"].shape, whole),
        ],
        out_specs=pl.BlockSpec((bm, n_head), row_blk),
        compiler_params=pltpu.CompilerParams(
            dimension_semantics=("parallel",),
            vmem_limit_bytes=48 * 1024 * 1024,    # under v7x 64 MiB physical
        ),
    )(x_flat, prep["w1_0"], prep["w1_1"], prep["w1_2"], prep["t1"],
      prep["w2_0"], prep["w2_1"], prep["w2_2"], prep["t2"],
      prep["w3"], prep["b3"], prep["w4"], prep["b4"])
    return out[:B, :outputs]


# -----------------------------------------------------------------------------
# One-time (host-side) parameter lowering: banded dense conv matrices with BN
# scales folded into columns, additive BN/bias shifts, FC permutation/transpose,
# padded lane-dense head.  Nothing here runs per forward pass.
# -----------------------------------------------------------------------------
def _conv_as_dense_matrix(w_oihw, in_h, in_w, stride):
    """Dense M s.t. nhwc_flat(conv_valid(x)) == nhwc_flat(x) @ M."""
    oc_n, c_n, kh, kw = w_oihw.shape
    oh_n = (in_h - kh) // stride + 1
    ow_n = (in_w - kw) // stride + 1
    w_np = np.asarray(w_oihw, np.float32)
    m = np.zeros((in_h * in_w * c_n, oh_n * ow_n * oc_n), np.float32)
    for oh in range(oh_n):
        for ow in range(ow_n):
            c0 = (oh * ow_n + ow) * oc_n
            for i in range(kh):
                for j in range(kw):
                    r0 = ((oh * stride + i) * in_w + (ow * stride + j)) * c_n
                    m[r0:r0 + c_n, c0:c0 + oc_n] = w_np[:, :, i, j].T
    return m, oh_n, ow_n


def prepare_params(raw, h=_H, w=_W, eps=1e-5):
    assert (h, w) == (_H, _W), "band windows are precomputed for 40x40 inputs"

    # conv1 -> dense matmul; fold BN1 scale into columns, shift into epilogue.
    m1, oh1, ow1 = _conv_as_dense_matrix(raw["conv1_w"], h, w, _STR1)
    oc1 = raw["conv1_w"].shape[0]
    s1c = np.asarray(raw["bn1_gamma"]) / np.sqrt(np.asarray(raw["bn1_var"]) + eps)
    t1c = (np.asarray(raw["bn1_beta"])
           + (np.asarray(raw["conv1_b"]) - np.asarray(raw["bn1_mean"])) * s1c)
    m1 = m1 * np.tile(s1c, oh1 * ow1)[None, :]
    t1 = np.tile(t1c, _ROWS_PER_BAND * ow1)          # identical for every band

    # conv2 (input is NHWC-flat conv1 output) -> dense matmul; fold BN2 scale.
    m2, oh2, ow2 = _conv_as_dense_matrix(raw["conv2_w"], oh1, ow1, 2)
    oc2 = raw["conv2_w"].shape[0]
    s2c = np.asarray(raw["bn2_gamma"]) / np.sqrt(np.asarray(raw["bn2_var"]) + eps)
    t2c = (np.asarray(raw["bn2_beta"])
           + (np.asarray(raw["conv2_b"]) - np.asarray(raw["bn2_mean"])) * s2c)
    m2 = m2 * np.tile(s2c, oh2 * ow2)[None, :]
    t2 = np.tile(t2c, oh2 * ow2)

    # Band decomposition: band b covers conv1 output rows [3b, 3b+3); its
    # input window is lane-aligned (structural zeros outside the receptive
    # field), and its conv2 contribution is the matching row-band of m2.
    band_cols = _ROWS_PER_BAND * ow1 * oc1           # 432
    w1_bands, w2_bands = [], []
    for b, (lo, hi) in enumerate(_X_WINDOWS):
        c_lo, c_hi = b * band_cols, (b + 1) * band_cols
        w1_bands.append(m1[lo:hi, c_lo:c_hi])
        w2_bands.append(m2[c_lo:c_hi, :])

    # fc1: permute input dim from torch NCHW-flatten order to NHWC-flat order,
    # pre-transpose to (in, out).
    perm = np.zeros(oh2 * ow2 * oc2, np.int64)
    for hh in range(oh2):
        for ww in range(ow2):
            for cc in range(oc2):
                perm[(hh * ow2 + ww) * oc2 + cc] = cc * (oh2 * ow2) + hh * ow2 + ww
    w3 = np.asarray(raw["fc1_w"], np.float32)[:, perm].T         # (288, 256)

    # head: pre-transpose and pad to a lane-dense 128-wide output (f32).
    w4 = np.asarray(raw["head_w"], np.float32).T                 # (256, outs)
    outs = w4.shape[1]
    n_head = _round_up(max(outs, 128), 128)
    w4p = np.zeros((w4.shape[0], n_head), np.float32)
    w4p[:, :outs] = w4
    b4p = np.zeros((n_head,), np.float32)
    b4p[:outs] = np.asarray(raw["head_b"], np.float32)

    as_bf16 = lambda a: jnp.asarray(a, jnp.bfloat16)
    as_row = lambda a: jnp.asarray(a, jnp.float32).reshape(1, -1)
    prep = {
        "t1": as_row(t1), "t2": as_row(t2),
        "w3": as_bf16(w3), "b3": as_row(raw["fc1_b"]),
        "w4": jnp.asarray(w4p, jnp.float32), "b4": as_row(b4p),
    }
    for i in range(3):
        prep[f"w1_{i}"] = as_bf16(w1_bands[i])
        prep[f"w2_{i}"] = as_bf16(w2_bands[i])
    return prep


# -----------------------------------------------------------------------------
# Raw parameters (shapes from DQN.__init__ with h = w = 40)
# -----------------------------------------------------------------------------
def init_params(key, outputs):
    ks = jax.random.split(key, 4)
    p = {}
    p["conv1_w"] = 0.1 * jax.random.normal(ks[0], (16, 1, 8, 8), jnp.float32)
    p["conv1_b"] = jnp.zeros((16,), jnp.float32)
    p["bn1_gamma"] = jnp.ones((16,), jnp.float32)
    p["bn1_beta"] = jnp.zeros((16,), jnp.float32)
    p["bn1_mean"] = jnp.zeros((16,), jnp.float32)
    p["bn1_var"] = jnp.ones((16,), jnp.float32)

    p["conv2_w"] = 0.1 * jax.random.normal(ks[1], (32, 16, 4, 4), jnp.float32)
    p["conv2_b"] = jnp.zeros((32,), jnp.float32)
    p["bn2_gamma"] = jnp.ones((32,), jnp.float32)
    p["bn2_beta"] = jnp.zeros((32,), jnp.float32)
    p["bn2_mean"] = jnp.zeros((32,), jnp.float32)
    p["bn2_var"] = jnp.ones((32,), jnp.float32)

    p["fc1_w"] = 0.05 * jax.random.normal(ks[2], (256, 288), jnp.float32)
    p["fc1_b"] = jnp.zeros((256,), jnp.float32)
    p["head_w"] = 0.05 * jax.random.normal(ks[3], (outputs, 256), jnp.float32)
    p["head_b"] = jnp.zeros((outputs,), jnp.float32)
    return p


# Plain-XLA reference (f32) used only for a loose correctness check.
def dqn_reference(raw, x, eps=1e-5):
    dn = ("NCHW", "OIHW", "NCHW")

    def bn(y, g, b, m, v):
        scale = (g / jnp.sqrt(v + eps)).reshape(1, -1, 1, 1)
        return (y - m.reshape(1, -1, 1, 1)) * scale + b.reshape(1, -1, 1, 1)

    y = lax.conv_general_dilated(x, raw["conv1_w"], (4, 4), "VALID",
                                 dimension_numbers=dn)
    y = y + raw["conv1_b"].reshape(1, -1, 1, 1)
    y = jnp.maximum(bn(y, raw["bn1_gamma"], raw["bn1_beta"],
                       raw["bn1_mean"], raw["bn1_var"]), 0.0)
    y = lax.conv_general_dilated(y, raw["conv2_w"], (2, 2), "VALID",
                                 dimension_numbers=dn)
    y = y + raw["conv2_b"].reshape(1, -1, 1, 1)
    y = jnp.maximum(bn(y, raw["bn2_gamma"], raw["bn2_beta"],
                       raw["bn2_mean"], raw["bn2_var"]), 0.0)
    y = y.reshape(y.shape[0], -1)                   # NCHW flatten (torch order)
    y = jnp.maximum(y @ raw["fc1_w"].T + raw["fc1_b"], 0.0)
    return y @ raw["head_w"].T + raw["head_b"]


if __name__ == "__main__":
    key = jax.random.PRNGKey(0)
    k_param, k_x = jax.random.split(key)
    outputs = 4

    raw = init_params(k_param, outputs)
    prep = prepare_params(raw)                   # one-time parameter lowering
    x = jax.random.normal(k_x, (2, 1, _H, _W), jnp.float32)

    fwd = jax.jit(dqn_forward, static_argnums=2)
    q = jax.block_until_ready(fwd(prep, x, outputs))
    assert q.shape == (2, outputs), q.shape

    # Loose check vs the plain-XLA f32 reference (kernel uses bf16 MXU inputs).
    q_ref = jax.block_until_ready(dqn_reference(raw, x))
    np.testing.assert_allclose(np.asarray(q), np.asarray(q_ref),
                               rtol=1e-1, atol=1e-1)

    print("KERNEL_OK")
</pallas_src>

<mosaic_0001>
module attributes {stable_mosaic.version = 11 : i64} {
  func.func @_dqn_kernel(%arg0: i32, %arg1: memref<16x1600xf32, #tpu.memory_space<vmem>>, %arg2: memref<640x432xbf16, #tpu.memory_space<vmem>>, %arg3: memref<768x432xbf16, #tpu.memory_space<vmem>>, %arg4: memref<704x432xbf16, #tpu.memory_space<vmem>>, %arg5: memref<1x432xf32, #tpu.memory_space<vmem>>, %arg6: memref<432x288xbf16, #tpu.memory_space<vmem>>, %arg7: memref<432x288xbf16, #tpu.memory_space<vmem>>, %arg8: memref<432x288xbf16, #tpu.memory_space<vmem>>, %arg9: memref<1x288xf32, #tpu.memory_space<vmem>>, %arg10: memref<288x256xbf16, #tpu.memory_space<vmem>>, %arg11: memref<1x256xf32, #tpu.memory_space<vmem>>, %arg12: memref<256x128xf32, #tpu.memory_space<vmem>>, %arg13: memref<1x128xf32, #tpu.memory_space<vmem>>, %arg14: memref<16x128xf32, #tpu.memory_space<vmem>>) attributes {dimension_semantics = [#tpu.dimension_semantics<parallel>], iteration_bounds = array<i64: 1>, scalar_prefetch = 0 : i64, scratch_operands = 0 : i64, tpu.core_type = #tpu.core_type<tc>, window_params = [{transform_indices = @transform_0, window_bounds = array<i64: 16, 1600>}, {pipeline_mode = #tpu.pipeline_mode<synchronous>, transform_indices = @transform_1, window_bounds = array<i64: 640, 432>}, {pipeline_mode = #tpu.pipeline_mode<synchronous>, transform_indices = @transform_2, window_bounds = array<i64: 768, 432>}, {pipeline_mode = #tpu.pipeline_mode<synchronous>, transform_indices = @transform_3, window_bounds = array<i64: 704, 432>}, {pipeline_mode = #tpu.pipeline_mode<synchronous>, transform_indices = @transform_4, window_bounds = array<i64: 1, 432>}, {pipeline_mode = #tpu.pipeline_mode<synchronous>, transform_indices = @transform_5, window_bounds = array<i64: 432, 288>}, {pipeline_mode = #tpu.pipeline_mode<synchronous>, transform_indices = @transform_6, window_bounds = array<i64: 432, 288>}, {pipeline_mode = #tpu.pipeline_mode<synchronous>, transform_indices = @transform_7, window_bounds = array<i64: 432, 288>}, {pipeline_mode = #tpu.pipeline_mode<synchronous>, transform_indices = @transform_8, window_bounds = array<i64: 1, 288>}, {pipeline_mode = #tpu.pipeline_mode<synchronous>, transform_indices = @transform_9, window_bounds = array<i64: 288, 256>}, {pipeline_mode = #tpu.pipeline_mode<synchronous>, transform_indices = @transform_10, window_bounds = array<i64: 1, 256>}, {pipeline_mode = #tpu.pipeline_mode<synchronous>, transform_indices = @transform_11, window_bounds = array<i64: 256, 128>}, {pipeline_mode = #tpu.pipeline_mode<synchronous>, transform_indices = @transform_12, window_bounds = array<i64: 1, 128>}, {transform_indices = @transform_13, window_bounds = array<i64: 16, 128>}]} {
    %c0 = arith.constant 0 : index
    %c0_0 = arith.constant 0 : index
    %0 = vector.load %arg1[%c0, %c0_0] : memref<16x1600xf32, #tpu.memory_space<vmem>>, vector<16x640xf32>
    %1 = arith.truncf %0 : vector<16x640xf32> to vector<16x640xbf16>
    %c0_1 = arith.constant 0 : index
    %c0_2 = arith.constant 0 : index
    %2 = vector.load %arg2[%c0_1, %c0_2] : memref<640x432xbf16, #tpu.memory_space<vmem>>, vector<640x432xbf16>
    %cst = arith.constant dense<0.000000e+00> : vector<16x432xf32>
    %3 = tpu.matmul %1, %2, %cst {dimension_numbers = #tpu.dot_dimension_numbers<[1], [0], [0], [1], [0, 0, 1, 1], [], []>} : vector<16x640xbf16>, vector<640x432xbf16>, vector<16x432xf32> -> vector<16x432xf32>
    %c0_3 = arith.constant 0 : index
    %c0_4 = arith.constant 0 : index
    %4 = vector.load %arg5[%c0_3, %c0_4] : memref<1x432xf32, #tpu.memory_space<vmem>>, vector<1x432xf32>
    %5 = vector.broadcast %4 : vector<1x432xf32> to vector<16x432xf32>
    %6 = arith.addf %3, %5 : vector<16x432xf32>
    %cst_5 = arith.constant 0.000000e+00 : f32
    %7 = vector.broadcast %cst_5 : f32 to vector<16x432xf32>
    %8 = arith.maximumf %6, %7 : vector<16x432xf32>
    %9 = arith.truncf %8 : vector<16x432xf32> to vector<16x432xbf16>
    %c0_6 = arith.constant 0 : index
    %c0_7 = arith.constant 0 : index
    %10 = vector.load %arg6[%c0_6, %c0_7] : memref<432x288xbf16, #tpu.memory_space<vmem>>, vector<432x288xbf16>
    %cst_8 = arith.constant dense<0.000000e+00> : vector<16x288xf32>
    %11 = tpu.matmul %9, %10, %cst_8 {dimension_numbers = #tpu.dot_dimension_numbers<[1], [0], [0], [1], [0, 0, 1, 1], [], []>} : vector<16x432xbf16>, vector<432x288xbf16>, vector<16x288xf32> -> vector<16x288xf32>
    %c0_9 = arith.constant 0 : index
    %c384 = arith.constant 384 : index
    %12 = vector.load %arg1[%c0_9, %c384] : memref<16x1600xf32, #tpu.memory_space<vmem>>, vector<16x768xf32>
    %13 = arith.truncf %12 : vector<16x768xf32> to vector<16x768xbf16>
    %c0_10 = arith.constant 0 : index
    %c0_11 = arith.constant 0 : index
    %14 = vector.load %arg3[%c0_10, %c0_11] : memref<768x432xbf16, #tpu.memory_space<vmem>>, vector<768x432xbf16>
    %cst_12 = arith.constant dense<0.000000e+00> : vector<16x432xf32>
    %15 = tpu.matmul %13, %14, %cst_12 {dimension_numbers = #tpu.dot_dimension_numbers<[1], [0], [0], [1], [0, 0, 1, 1], [], []>} : vector<16x768xbf16>, vector<768x432xbf16>, vector<16x432xf32> -> vector<16x432xf32>
    %c0_13 = arith.constant 0 : index
    %c0_14 = arith.constant 0 : index
    %16 = vector.load %arg5[%c0_13, %c0_14] : memref<1x432xf32, #tpu.memory_space<vmem>>, vector<1x432xf32>
    %17 = vector.broadcast %16 : vector<1x432xf32> to vector<16x432xf32>
    %18 = arith.addf %15, %17 : vector<16x432xf32>
    %cst_15 = arith.constant 0.000000e+00 : f32
    %19 = vector.broadcast %cst_15 : f32 to vector<16x432xf32>
    %20 = arith.maximumf %18, %19 : vector<16x432xf32>
    %21 = arith.truncf %20 : vector<16x432xf32> to vector<16x432xbf16>
    %c0_16 = arith.constant 0 : index
    %c0_17 = arith.constant 0 : index
    %22 = vector.load %arg7[%c0_16, %c0_17] : memref<432x288xbf16, #tpu.memory_space<vmem>>, vector<432x288xbf16>
    %cst_18 = arith.constant dense<0.000000e+00> : vector<16x288xf32>
    %23 = tpu.matmul %21, %22, %cst_18 {dimension_numbers = #tpu.dot_dimension_numbers<[1], [0], [0], [1], [0, 0, 1, 1], [], []>} : vector<16x432xbf16>, vector<432x288xbf16>, vector<16x288xf32> -> vector<16x288xf32>
    %24 = arith.addf %11, %23 : vector<16x288xf32>
    %c0_19 = arith.constant 0 : index
    %c896 = arith.constant 896 : index
    %25 = vector.load %arg1[%c0_19, %c896] : memref<16x1600xf32, #tpu.memory_space<vmem>>, vector<16x704xf32>
    %26 = arith.truncf %25 : vector<16x704xf32> to vector<16x704xbf16>
    %c0_20 = arith.constant 0 : index
    %c0_21 = arith.constant 0 : index
    %27 = vector.load %arg4[%c0_20, %c0_21] : memref<704x432xbf16, #tpu.memory_space<vmem>>, vector<704x432xbf16>
    %cst_22 = arith.constant dense<0.000000e+00> : vector<16x432xf32>
    %28 = tpu.matmul %26, %27, %cst_22 {dimension_numbers = #tpu.dot_dimension_numbers<[1], [0], [0], [1], [0, 0, 1, 1], [], []>} : vector<16x704xbf16>, vector<704x432xbf16>, vector<16x432xf32> -> vector<16x432xf32>
    %c0_23 = arith.constant 0 : index
    %c0_24 = arith.constant 0 : index
    %29 = vector.load %arg5[%c0_23, %c0_24] : memref<1x432xf32, #tpu.memory_space<vmem>>, vector<1x432xf32>
    %30 = vector.broadcast %29 : vector<1x432xf32> to vector<16x432xf32>
    %31 = arith.addf %28, %30 : vector<16x432xf32>
    %cst_25 = arith.constant 0.000000e+00 : f32
    %32 = vector.broadcast %cst_25 : f32 to vector<16x432xf32>
    %33 = arith.maximumf %31, %32 : vector<16x432xf32>
    %34 = arith.truncf %33 : vector<16x432xf32> to vector<16x432xbf16>
    %c0_26 = arith.constant 0 : index
    %c0_27 = arith.constant 0 : index
    %35 = vector.load %arg8[%c0_26, %c0_27] : memref<432x288xbf16, #tpu.memory_space<vmem>>, vector<432x288xbf16>
    %cst_28 = arith.constant dense<0.000000e+00> : vector<16x288xf32>
    %36 = tpu.matmul %34, %35, %cst_28 {dimension_numbers = #tpu.dot_dimension_numbers<[1], [0], [0], [1], [0, 0, 1, 1], [], []>} : vector<16x432xbf16>, vector<432x288xbf16>, vector<16x288xf32> -> vector<16x288xf32>
    %37 = arith.addf %24, %36 : vector<16x288xf32>
    %c0_29 = arith.constant 0 : index
    %c0_30 = arith.constant 0 : index
    %38 = vector.load %arg9[%c0_29, %c0_30] : memref<1x288xf32, #tpu.memory_space<vmem>>, vector<1x288xf32>
    %39 = vector.broadcast %38 : vector<1x288xf32> to vector<16x288xf32>
    %40 = arith.addf %37, %39 : vector<16x288xf32>
    %cst_31 = arith.constant 0.000000e+00 : f32
    %41 = vector.broadcast %cst_31 : f32 to vector<16x288xf32>
    %42 = arith.maximumf %40, %41 : vector<16x288xf32>
    %43 = arith.truncf %42 : vector<16x288xf32> to vector<16x288xbf16>
    %c0_32 = arith.constant 0 : index
    %c0_33 = arith.constant 0 : index
    %44 = vector.load %arg10[%c0_32, %c0_33] : memref<288x256xbf16, #tpu.memory_space<vmem>>, vector<288x256xbf16>
    %cst_34 = arith.constant dense<0.000000e+00> : vector<16x256xf32>
    %45 = tpu.matmul %43, %44, %cst_34 {dimension_numbers = #tpu.dot_dimension_numbers<[1], [0], [0], [1], [0, 0, 1, 1], [], []>} : vector<16x288xbf16>, vector<288x256xbf16>, vector<16x256xf32> -> vector<16x256xf32>
    %c0_35 = arith.constant 0 : index
    %c0_36 = arith.constant 0 : index
    %46 = vector.load %arg11[%c0_35, %c0_36] : memref<1x256xf32, #tpu.memory_space<vmem>>, vector<1x256xf32>
    %47 = vector.broadcast %46 : vector<1x256xf32> to vector<16x256xf32>
    %48 = arith.addf %45, %47 : vector<16x256xf32>
    %cst_37 = arith.constant 0.000000e+00 : f32
    %49 = vector.broadcast %cst_37 : f32 to vector<16x256xf32>
    %50 = arith.maximumf %48, %49 : vector<16x256xf32>
    %c0_38 = arith.constant 0 : index
    %c0_39 = arith.constant 0 : index
    %51 = vector.load %arg12[%c0_38, %c0_39] : memref<256x128xf32, #tpu.memory_space<vmem>>, vector<256x128xf32>
    %cst_40 = arith.constant dense<0.000000e+00> : vector<16x128xf32>
    %52 = tpu.matmul %50, %51, %cst_40 {dimension_numbers = #tpu.dot_dimension_numbers<[1], [0], [0], [1], [0, 0, 1, 1], [], []>} : vector<16x256xf32>, vector<256x128xf32>, vector<16x128xf32> -> vector<16x128xf32>
    %c0_41 = arith.constant 0 : index
    %c0_42 = arith.constant 0 : index
    %53 = vector.load %arg13[%c0_41, %c0_42] : memref<1x128xf32, #tpu.memory_space<vmem>>, vector<1x128xf32>
    %54 = vector.broadcast %53 : vector<1x128xf32> to vector<16x128xf32>
    %55 = arith.addf %52, %54 : vector<16x128xf32>
    %c0_43 = arith.constant 0 : index
    %c0_44 = arith.constant 0 : index
    %56 = vector.load %arg14[%c0_43, %c0_44] : memref<16x128xf32, #tpu.memory_space<vmem>>, vector<16x128xf32>
    tpu.vector_store %arg14[%c0_43, %c0_44], %55 {strides = array<i32>} : memref<16x128xf32, #tpu.memory_space<vmem>>, vector<16x128xf32>,
    return
  }
  func.func @transform_0(%arg0: i32) -> (i32, i32) {
    %c0_i32 = arith.constant 0 : i32
    %c0_i32_0 = arith.constant 0 : i32
    return %arg0, %c0_i32 : i32, i32
  }
  func.func @transform_1(%arg0: i32) -> (i32, i32) {
    %c0_i32 = arith.constant 0 : i32
    %c0_i32_0 = arith.constant 0 : i32
    %c0_i32_1 = arith.constant 0 : i32
    return %c0_i32, %c0_i32_0 : i32, i32
  }
  func.func @transform_2(%arg0: i32) -> (i32, i32) {
    %c0_i32 = arith.constant 0 : i32
    %c0_i32_0 = arith.constant 0 : i32
    %c0_i32_1 = arith.constant 0 : i32
    return %c0_i32, %c0_i32_0 : i32, i32
  }
  func.func @transform_3(%arg0: i32) -> (i32, i32) {
    %c0_i32 = arith.constant 0 : i32
    %c0_i32_0 = arith.constant 0 : i32
    %c0_i32_1 = arith.constant 0 : i32
    return %c0_i32, %c0_i32_0 : i32, i32
  }
  func.func @transform_4(%arg0: i32) -> (i32, i32) {
    %c0_i32 = arith.constant 0 : i32
    %c0_i32_0 = arith.constant 0 : i32
    %c0_i32_1 = arith.constant 0 : i32
    return %c0_i32, %c0_i32_0 : i32, i32
  }
  func.func @transform_5(%arg0: i32) -> (i32, i32) {
    %c0_i32 = arith.constant 0 : i32
    %c0_i32_0 = arith.constant 0 : i32
    %c0_i32_1 = arith.constant 0 : i32
    return %c0_i32, %c0_i32_0 : i32, i32
  }
  func.func @transform_6(%arg0: i32) -> (i32, i32) {
    %c0_i32 = arith.constant 0 : i32
    %c0_i32_0 = arith.constant 0 : i32
    %c0_i32_1 = arith.constant 0 : i32
    return %c0_i32, %c0_i32_0 : i32, i32
  }
  func.func @transform_7(%arg0: i32) -> (i32, i32) {
    %c0_i32 = arith.constant 0 : i32
    %c0_i32_0 = arith.constant 0 : i32
    %c0_i32_1 = arith.constant 0 : i32
    return %c0_i32, %c0_i32_0 : i32, i32
  }
  func.func @transform_8(%arg0: i32) -> (i32, i32) {
    %c0_i32 = arith.constant 0 : i32
    %c0_i32_0 = arith.constant 0 : i32
    %c0_i32_1 = arith.constant 0 : i32
    return %c0_i32, %c0_i32_0 : i32, i32
  }
  func.func @transform_9(%arg0: i32) -> (i32, i32) {
    %c0_i32 = arith.constant 0 : i32
    %c0_i32_0 = arith.constant 0 : i32
    %c0_i32_1 = arith.constant 0 : i32
    return %c0_i32, %c0_i32_0 : i32, i32
  }
  func.func @transform_10(%arg0: i32) -> (i32, i32) {
    %c0_i32 = arith.constant 0 : i32
    %c0_i32_0 = arith.constant 0 : i32
    %c0_i32_1 = arith.constant 0 : i32
    return %c0_i32, %c0_i32_0 : i32, i32
  }
  func.func @transform_11(%arg0: i32) -> (i32, i32) {
    %c0_i32 = arith.constant 0 : i32
    %c0_i32_0 = arith.constant 0 : i32
    %c0_i32_1 = arith.constant 0 : i32
    return %c0_i32, %c0_i32_0 : i32, i32
  }
  func.func @transform_12(%arg0: i32) -> (i32, i32) {
    %c0_i32 = arith.constant 0 : i32
    %c0_i32_0 = arith.constant 0 : i32
    %c0_i32_1 = arith.constant 0 : i32
    return %c0_i32, %c0_i32_0 : i32, i32
  }
  func.func @transform_13(%arg0: i32) -> (i32, i32) {
    %c0_i32 = arith.constant 0 : i32
    %c0_i32_0 = arith.constant 0 : i32
    return %arg0, %c0_i32 : i32, i32
  }
}

</mosaic_0001>

<llo_original>
// kernel: dqn_forward.1
$region0: #{dqn_forward.1}
  #allocation0 [shape = 'u32[]', space=smem, size = 0x4, offset = 0x4, fixed_abs, tag = 'smem constant byte address 0x4 - core index']
  #allocation1 [shape = 'u32[144,128]{1,0:T(1,128)}', space=vmem, size = 0x12000, scoped, tag = 'internal scratch']
  %s0 = inlined_call_operand.vmem [shape: f32[16,1600], index: 0, kind: input, shape index: {}]
  %s1 = inlined_call_operand.vmem [shape: bf16[640,432], index: 1, kind: input, shape index: {}]
  %s2 = inlined_call_operand.vmem [shape: bf16[768,432], index: 2, kind: input, shape index: {}]
  %s3 = inlined_call_operand.vmem [shape: bf16[704,432], index: 3, kind: input, shape index: {}]
  %s4 = inlined_call_operand.vmem [shape: f32[1,432], index: 4, kind: input, shape index: {}]
  %s5 = inlined_call_operand.vmem [shape: bf16[432,288], index: 5, kind: input, shape index: {}]
  %s6 = inlined_call_operand.vmem [shape: bf16[432,288], index: 6, kind: input, shape index: {}]
  %s7 = inlined_call_operand.vmem [shape: bf16[432,288], index: 7, kind: input, shape index: {}]
  %s8 = inlined_call_operand.vmem [shape: f32[1,288], index: 8, kind: input, shape index: {}]
  %s9 = inlined_call_operand.vmem [shape: bf16[288,256], index: 9, kind: input, shape index: {}]
  %s10 = inlined_call_operand.vmem [shape: f32[1,256], index: 10, kind: input, shape index: {}]
  %s11 = inlined_call_operand.vmem [shape: f32[256,128], index: 11, kind: input, shape index: {}]
  %s12 = inlined_call_operand.vmem [shape: f32[1,128], index: 12, kind: input, shape index: {}]
  %s13 = inlined_call_operand.vmem [shape: f32[16,128], index: 13, kind: output, shape index: {}]
  %s14 = sld [smem:[#allocation0]]
  $region62: #{dqn_forward.1} parent=0
    _
  %s16 = ssub.s32 1, %s14
  %s17 = scalar_select 0, %s16, %s14
  // Predicated region
  $region2: #{dqn_forward.1} parent=0 // pred_check
    _
  $region3: #{dqn_forward.1} parent=0 // pred_check_branch
    %19 = sbr.rel (0) target = $region5
  $region4: #{dqn_forward.1} parent=0 // pred_region
    _
  $region5: #{dqn_forward.1} parent=0 // pred_fallthru
    _
  // Predicated region
  $region6: #{dqn_forward.1} parent=0 // pred_check
    _
  $region7: #{dqn_forward.1} parent=0 // pred_check_branch
    %21 = sbr.rel (0) target = $region9
  $region8: #{dqn_forward.1} parent=0 // pred_region
    _
  $region9: #{dqn_forward.1} parent=0 // pred_fallthru
    _
  // Predicated region
  $region10: #{dqn_forward.1} parent=0 // pred_check
    _
  $region11: #{dqn_forward.1} parent=0 // pred_check_branch
    %23 = sbr.rel (0) target = $region13
  $region12: #{dqn_forward.1} parent=0 // pred_region
    _
  $region13: #{dqn_forward.1} parent=0 // pred_fallthru
    _
  // Predicated region
  $region14: #{dqn_forward.1} parent=0 // pred_check
    _
  $region15: #{dqn_forward.1} parent=0 // pred_check_branch
    %25 = sbr.rel (0) target = $region17
  $region16: #{dqn_forward.1} parent=0 // pred_region
    _
  $region17: #{dqn_forward.1} parent=0 // pred_fallthru
    _
  // Predicated region
  $region18: #{dqn_forward.1} parent=0 // pred_check
    _
  $region19: #{dqn_forward.1} parent=0 // pred_check_branch
    %27 = sbr.rel (0) target = $region21
  $region20: #{dqn_forward.1} parent=0 // pred_region
    _
  $region21: #{dqn_forward.1} parent=0 // pred_fallthru
    _
  // Predicated region
  $region22: #{dqn_forward.1} parent=0 // pred_check
    _
  $region23: #{dqn_forward.1} parent=0 // pred_check_branch
    %29 = sbr.rel (0) target = $region25
  $region24: #{dqn_forward.1} parent=0 // pred_region
    _
  $region25: #{dqn_forward.1} parent=0 // pred_fallthru
    _
  // Predicated region
  $region26: #{dqn_forward.1} parent=0 // pred_check
    _
  $region27: #{dqn_forward.1} parent=0 // pred_check_branch
    %31 = sbr.rel (0) target = $region29
  $region28: #{dqn_forward.1} parent=0 // pred_region
    _
  $region29: #{dqn_forward.1} parent=0 // pred_fallthru
    _
  // Predicated region
  $region30: #{dqn_forward.1} parent=0 // pred_check
    _
  $region31: #{dqn_forward.1} parent=0 // pred_check_branch
    %33 = sbr.rel (0) target = $region33
  $region32: #{dqn_forward.1} parent=0 // pred_region
    _
  $region33: #{dqn_forward.1} parent=0 // pred_fallthru
    _
  // Predicated region
  $region34: #{dqn_forward.1} parent=0 // pred_check
    _
  $region35: #{dqn_forward.1} parent=0 // pred_check_branch
    %35 = sbr.rel (0) target = $region37
  $region36: #{dqn_forward.1} parent=0 // pred_region
    _
  $region37: #{dqn_forward.1} parent=0 // pred_fallthru
    _
  // Predicated region
  $region38: #{dqn_forward.1} parent=0 // pred_check
    _
  $region39: #{dqn_forward.1} parent=0 // pred_check_branch
    %37 = sbr.rel (0) target = $region41
  $region40: #{dqn_forward.1} parent=0 // pred_region
    _
  $region41: #{dqn_forward.1} parent=0 // pred_fallthru
    _
  // Predicated region
  $region42: #{dqn_forward.1} parent=0 // pred_check
    _
  $region43: #{dqn_forward.1} parent=0 // pred_check_branch
    %39 = sbr.rel (0) target = $region45
  $region44: #{dqn_forward.1} parent=0 // pred_region
    _
  $region45: #{dqn_forward.1} parent=0 // pred_fallthru
    _
  // Predicated region
  $region46: #{dqn_forward.1} parent=0 // pred_check
    _
  $region47: #{dqn_forward.1} parent=0 // pred_check_branch
    %41 = sbr.rel (0) target = $region49
  $region48: #{dqn_forward.1} parent=0 // pred_region
    _
  $region49: #{dqn_forward.1} parent=0 // pred_fallthru
    _
  // Predicated region
  $region50: #{dqn_forward.1} parent=0 // pred_check
    _
  $region51: #{dqn_forward.1} parent=0 // pred_check_branch
    %43 = sbr.rel (0) target = $region53
  $region52: #{dqn_forward.1} parent=0 // pred_region
    _
  $region53: #{dqn_forward.1} parent=0 // pred_fallthru
    _
  %v45 = vld [vmem:[%s0] sm:$0xff]
  %v46 = vld [vmem:[%s0 + $0x8] sm:$0xff]
  %v47 = vld [vmem:[%s0 + $0x10] sm:$0xff]
  %v48 = vld [vmem:[%s0 + $0x18] sm:$0xff]
  %v49 = vld [vmem:[%s0 + $0x20] sm:$0xff]
  %v50 = vld [vmem:[%s0 + $0x68] sm:$0xff]
  %v51 = vld [vmem:[%s0 + $0x70] sm:$0xff]
  %v52 = vld [vmem:[%s0 + $0x78] sm:$0xff]
  %v53 = vld [vmem:[%s0 + $0x80] sm:$0xff]
  %v54 = vld [vmem:[%s0 + $0x88] sm:$0xff]
  %v55 = vpack.c.bf16 %v50, %v45
  %v56 = vpack.c.bf16 %v51, %v46
  %v57 = vpack.c.bf16 %v52, %v47
  %v58 = vpack.c.bf16 %v53, %v48
  %v59 = vpack.c.bf16 %v54, %v49
  %v60 = vld [vmem:[%s1] sm:$0xff]
  %v61 = vld [vmem:[%s1 + $0x8] sm:$0xff]
  %v62 = vld [vmem:[%s1 + $0x10] sm:$0xff]
  %v63 = vld [vmem:[%s1 + $0x18] sm:$0xff]
  %v64 = vld [vmem:[%s1 + $0x20] sm:$0xff]
  %v65 = vld [vmem:[%s1 + $0x28] sm:$0xff]
  %v66 = vld [vmem:[%s1 + $0x30] sm:$0xff]
  %v67 = vld [vmem:[%s1 + $0x38] sm:$0xff]
  %v68 = vld [vmem:[%s1 + $0x40] sm:$0xff]
  %v69 = vld [vmem:[%s1 + $0x48] sm:$0xff]
  %v70 = vld [vmem:[%s1 + $0x50] sm:$0xff]
  %v71 = vld [vmem:[%s1 + $0x58] sm:$0xff]
  %v72 = vld [vmem:[%s1 + $0x60] sm:$0xff]
  %v73 = vld [vmem:[%s1 + $0x68] sm:$0xff]
  %v74 = vld [vmem:[%s1 + $0x70] sm:$0xff]
  %v75 = vld [vmem:[%s1 + $0x78] sm:$0xff]
  %v76 = vld [vmem:[%s1 + $0x80] sm:$0xff]
  %v77 = vld [vmem:[%s1 + $0x88] sm:$0xff]
  %v78 = vld [vmem:[%s1 + $0x90] sm:$0xff]
  %v79 = vld [vmem:[%s1 + $0x98] sm:$0xff]
  %v80 = vld [vmem:[%s1 + $0xa0] sm:$0xff]
  %v81 = vld [vmem:[%s1 + $0xa8] sm:$0xff]
  %v82 = vld [vmem:[%s1 + $0xb0] sm:$0xff]
  %v83 = vld [vmem:[%s1 + $0xb8] sm:$0xff]
  %v84 = vld [vmem:[%s1 + $0xc0] sm:$0xff]
  %v85 = vld [vmem:[%s1 + $0xc8] sm:$0xff]
  %v86 = vld [vmem:[%s1 + $0xd0] sm:$0xff]
  %v87 = vld [vmem:[%s1 + $0xd8] sm:$0xff]
  %v88 = vld [vmem:[%s1 + $0xe0] sm:$0xff]
  %v89 = vld [vmem:[%s1 + $0xe8] sm:$0xff]
  %v90 = vld [vmem:[%s1 + $0xf0] sm:$0xff]
  %v91 = vld [vmem:[%s1 + $0xf8] sm:$0xff]
  %v92 = vld [vmem:[%s1 + $0x100] sm:$0xff]
  %v93 = vld [vmem:[%s1 + $0x108] sm:$0xff]
  %v94 = vld [vmem:[%s1 + $0x110] sm:$0xff]
  %v95 = vld [vmem:[%s1 + $0x118] sm:$0xff]
  %v96 = vld [vmem:[%s1 + $0x120] sm:$0xff]
  %v97 = vld [vmem:[%s1 + $0x128] sm:$0xff]
  %v98 = vld [vmem:[%s1 + $0x130] sm:$0xff]
  %v99 = vld [vmem:[%s1 + $0x138] sm:$0xff]
  %v100 = vld [vmem:[%s1 + $0x140] sm:$0xff]
  %v101 = vld [vmem:[%s1 + $0x148] sm:$0xff]
  %v102 = vld [vmem:[%s1 + $0x150] sm:$0xff]
  %v103 = vld [vmem:[%s1 + $0x158] sm:$0xff]
  %v104 = vld [vmem:[%s1 + $0x160] sm:$0xff]
  %v105 = vld [vmem:[%s1 + $0x168] sm:$0xff]
  %v106 = vld [vmem:[%s1 + $0x170] sm:$0xff]
  %v107 = vld [vmem:[%s1 + $0x178] sm:$0xff]
  %v108 = vld [vmem:[%s1 + $0x180] sm:$0xff]
  %v109 = vld [vmem:[%s1 + $0x188] sm:$0xff]
  %v110 = vld [vmem:[%s1 + $0x190] sm:$0xff]
  %v111 = vld [vmem:[%s1 + $0x198] sm:$0xff]
  %v112 = vld [vmem:[%s1 + $0x1a0] sm:$0xff]
  %v113 = vld [vmem:[%s1 + $0x1a8] sm:$0xff]
  %v114 = vld [vmem:[%s1 + $0x1b0] sm:$0xff]
  %v115 = vld [vmem:[%s1 + $0x1b8] sm:$0xff]
  %v116 = vld [vmem:[%s1 + $0x1c0] sm:$0xff]
  %v117 = vld [vmem:[%s1 + $0x1c8] sm:$0xff]
  %v118 = vld [vmem:[%s1 + $0x1d0] sm:$0xff]
  %v119 = vld [vmem:[%s1 + $0x1d8] sm:$0xff]
  %v120 = vld [vmem:[%s1 + $0x1e0] sm:$0xff]
  %v121 = vld [vmem:[%s1 + $0x1e8] sm:$0xff]
  %v122 = vld [vmem:[%s1 + $0x1f0] sm:$0xff]
  %v123 = vld [vmem:[%s1 + $0x1f8] sm:$0xff]
  %v124 = vld [vmem:[%s1 + $0x200] sm:$0xff]
  %v125 = vld [vmem:[%s1 + $0x208] sm:$0xff]
  %v126 = vld [vmem:[%s1 + $0x210] sm:$0xff]
  %v127 = vld [vmem:[%s1 + $0x218] sm:$0xff]
  %v128 = vld [vmem:[%s1 + $0x220] sm:$0xff]
  %v129 = vld [vmem:[%s1 + $0x228] sm:$0xff]
  %v130 = vld [vmem:[%s1 + $0x230] sm:$0xff]
  %v131 = vld [vmem:[%s1 + $0x238] sm:$0xff]
  %v132 = vld [vmem:[%s1 + $0x240] sm:$0xff]
  %v133 = vld [vmem:[%s1 + $0x248] sm:$0xff]
  %v134 = vld [vmem:[%s1 + $0x250] sm:$0xff]
  %v135 = vld [vmem:[%s1 + $0x258] sm:$0xff]
  %v136 = vld [vmem:[%s1 + $0x260] sm:$0xff]
  %v137 = vld [vmem:[%s1 + $0x268] sm:$0xff]
  %v138 = vld [vmem:[%s1 + $0x270] sm:$0xff]
  %v139 = vld [vmem:[%s1 + $0x278] sm:$0xff]
  %v140 = vld [vmem:[%s1 + $0x280] sm:$0xff]
  %v141 = vld [vmem:[%s1 + $0x288] sm:$0xff]
  %v142 = vld [vmem:[%s1 + $0x290] sm:$0xff]
  %v143 = vld [vmem:[%s1 + $0x298] sm:$0xff]
  %v144 = vld [vmem:[%s1 + $0x2a0] sm:$0xff]
  %v145 = vld [vmem:[%s1 + $0x2a8] sm:$0xff]
  %v146 = vld [vmem:[%s1 + $0x2b0] sm:$0xff]
  %v147 = vld [vmem:[%s1 + $0x2b8] sm:$0xff]
  %v148 = vld [vmem:[%s1 + $0x2c0] sm:$0xff]
  %v149 = vld [vmem:[%s1 + $0x2c8] sm:$0xff]
  %v150 = vld [vmem:[%s1 + $0x2d0] sm:$0xff]
  %v151 = vld [vmem:[%s1 + $0x2d8] sm:$0xff]
  %v152 = vld [vmem:[%s1 + $0x2e0] sm:$0xff]
  %v153 = vld [vmem:[%s1 + $0x2e8] sm:$0xff]
  %v154 = vld [vmem:[%s1 + $0x2f0] sm:$0xff]
  %v155 = vld [vmem:[%s1 + $0x2f8] sm:$0xff]
  %v156 = vld [vmem:[%s1 + $0x300] sm:$0xff]
  %v157 = vld [vmem:[%s1 + $0x308] sm:$0xff]
  %v158 = vld [vmem:[%s1 + $0x310] sm:$0xff]
  %v159 = vld [vmem:[%s1 + $0x318] sm:$0xff]
  %v160 = vld [vmem:[%s1 + $0x320] sm:$0xff]
  %v161 = vld [vmem:[%s1 + $0x328] sm:$0xff]
  %v162 = vld [vmem:[%s1 + $0x330] sm:$0xff]
  %v163 = vld [vmem:[%s1 + $0x338] sm:$0xff]
  %v164 = vld [vmem:[%s1 + $0x340] sm:$0xff]
  %v165 = vld [vmem:[%s1 + $0x348] sm:$0xff]
  %v166 = vld [vmem:[%s1 + $0x350] sm:$0xff]
  %v167 = vld [vmem:[%s1 + $0x358] sm:$0xff]
  %v168 = vld [vmem:[%s1 + $0x360] sm:$0xff]
  %v169 = vld [vmem:[%s1 + $0x368] sm:$0xff]
  %v170 = vld [vmem:[%s1 + $0x370] sm:$0xff]
  %v171 = vld [vmem:[%s1 + $0x378] sm:$0xff]
  %v172 = vld [vmem:[%s1 + $0x380] sm:$0xff]
  %v173 = vld [vmem:[%s1 + $0x388] sm:$0xff]
  %v174 = vld [vmem:[%s1 + $0x390] sm:$0xff]
  %v175 = vld [vmem:[%s1 + $0x398] sm:$0xff]
  %v176 = vld [vmem:[%s1 + $0x3a0] sm:$0xff]
  %v177 = vld [vmem:[%s1 + $0x3a8] sm:$0xff]
  %v178 = vld [vmem:[%s1 + $0x3b0] sm:$0xff]
  %v179 = vld [vmem:[%s1 + $0x3b8] sm:$0xff]
  %v180 = vld [vmem:[%s1 + $0x3c0] sm:$0xff]
  %v181 = vld [vmem:[%s1 + $0x3c8] sm:$0xff]
  %v182 = vld [vmem:[%s1 + $0x3d0] sm:$0xff]
  %v183 = vld [vmem:[%s1 + $0x3d8] sm:$0xff]
  %v184 = vld [vmem:[%s1 + $0x3e0] sm:$0xff]
  %v185 = vld [vmem:[%s1 + $0x3e8] sm:$0xff]
  %v186 = vld [vmem:[%s1 + $0x3f0] sm:$0xff]
  %v187 = vld [vmem:[%s1 + $0x3f8] sm:$0xff]
  %v188 = vld [vmem:[%s1 + $0x400] sm:$0xff]
  %v189 = vld [vmem:[%s1 + $0x408] sm:$0xff]
  %v190 = vld [vmem:[%s1 + $0x410] sm:$0xff]
  %v191 = vld [vmem:[%s1 + $0x418] sm:$0xff]
  %v192 = vld [vmem:[%s1 + $0x420] sm:$0xff]
  %v193 = vld [vmem:[%s1 + $0x428] sm:$0xff]
  %v194 = vld [vmem:[%s1 + $0x430] sm:$0xff]
  %v195 = vld [vmem:[%s1 + $0x438] sm:$0xff]
  %v196 = vld [vmem:[%s1 + $0x440] sm:$0xff]
  %v197 = vld [vmem:[%s1 + $0x448] sm:$0xff]
  %v198 = vld [vmem:[%s1 + $0x450] sm:$0xff]
  %v199 = vld [vmem:[%s1 + $0x458] sm:$0xff]
  %v200 = vld [vmem:[%s1 + $0x460] sm:$0xff]
  %v201 = vld [vmem:[%s1 + $0x468] sm:$0xff]
  %v202 = vld [vmem:[%s1 + $0x470] sm:$0xff]
  %v203 = vld [vmem:[%s1 + $0x478] sm:$0xff]
  %v204 = vld [vmem:[%s1 + $0x480] sm:$0xff]
  %v205 = vld [vmem:[%s1 + $0x488] sm:$0xff]
  %v206 = vld [vmem:[%s1 + $0x490] sm:$0xff]
  %v207 = vld [vmem:[%s1 + $0x498] sm:$0xff]
  %v208 = vld [vmem:[%s1 + $0x4a0] sm:$0xff]
  %v209 = vld [vmem:[%s1 + $0x4a8] sm:$0xff]
  %v210 = vld [vmem:[%s1 + $0x4b0] sm:$0xff]
  %v211 = vld [vmem:[%s1 + $0x4b8] sm:$0xff]
  %v212 = vld [vmem:[%s1 + $0x4c0] sm:$0xff]
  %v213 = vld [vmem:[%s1 + $0x4c8] sm:$0xff]
  %v214 = vld [vmem:[%s1 + $0x4d0] sm:$0xff]
  %v215 = vld [vmem:[%s1 + $0x4d8] sm:$0xff]
  %v216 = vld [vmem:[%s1 + $0x4e0] sm:$0xff]
  %v217 = vld [vmem:[%s1 + $0x4e8] sm:$0xff]
  %v218 = vld [vmem:[%s1 + $0x4f0] sm:$0xff]
  %v219 = vld [vmem:[%s1 + $0x4f8] sm:$0xff]
  %v220 = vld [vmem:[%s4] sm:$0xf]
  %v222 = vlaneseq
  %v223 = vshrl.u32 %v222, 7
  %v224 = vsub.s32 0, %v223
  %v225 = vrot.slane %v220, %v224
  %v226 = vlaneseq
  %v227 = vshrl.u32 %v226, 7
  %v228 = vsub.s32 1, %v227
  %v229 = vrot.slane %v220, %v228
  %v230 = vlaneseq
  %v231 = vshrl.u32 %v230, 7
  %v232 = vsub.s32 2, %v231
  %v233 = vrot.slane %v220, %v232
  %v234 = vlaneseq
  %v235 = vshrl.u32 %v234, 7
  %v236 = vsub.s32 3, %v235
  %v237 = vrot.slane %v220, %v236
  %v402 = vunpack.c.l.b16 %v60
  %v403 = vunpack.c.h.b16 %v60
  %v404 = vunpack.c.l.b16 %v61
  %v405 = vunpack.c.h.b16 %v61
  %v406 = vunpack.c.l.b16 %v62
  %v407 = vunpack.c.h.b16 %v62
  %v408 = vunpack.c.l.b16 %v63
  %v409 = vunpack.c.h.b16 %v63
  %v410 = vunpack.c.l.b16 %v64
  %v411 = vunpack.c.h.b16 %v64
  %v412 = vunpack.c.l.b16 %v65
  %v413 = vunpack.c.h.b16 %v65
  %v414 = vunpack.c.l.b16 %v66
  %v415 = vunpack.c.h.b16 %v66
  %v416 = vunpack.c.l.b16 %v67
  %v417 = vunpack.c.h.b16 %v67
  %v418 = vunpack.c.l.b16 %v68
  %v419 = vunpack.c.h.b16 %v68
  %v420 = vunpack.c.l.b16 %v69
  %v421 = vunpack.c.h.b16 %v69
  %v422 = vunpack.c.l.b16 %v70
  %v423 = vunpack.c.h.b16 %v70
  %v424 = vunpack.c.l.b16 %v71
  %v425 = vunpack.c.h.b16 %v71
  %v426 = vunpack.c.l.b16 %v72
  %v427 = vunpack.c.h.b16 %v72
  %v428 = vunpack.c.l.b16 %v73
  %v429 = vunpack.c.h.b16 %v73
  %v430 = vunpack.c.l.b16 %v74
  %v431 = vunpack.c.h.b16 %v74
  %v432 = vunpack.c.l.b16 %v75
  %v433 = vunpack.c.h.b16 %v75
  %v434 = vunpack.c.l.b16 %v76
  %v435 = vunpack.c.h.b16 %v76
  %v436 = vunpack.c.l.b16 %v77
  %v437 = vunpack.c.h.b16 %v77
  %v438 = vunpack.c.l.b16 %v78
  %v439 = vunpack.c.h.b16 %v78
  %v440 = vunpack.c.l.b16 %v79
  %v441 = vunpack.c.h.b16 %v79
  %v442 = vunpack.c.l.b16 %v80
  %v443 = vunpack.c.h.b16 %v80
  %v444 = vunpack.c.l.b16 %v81
  %v445 = vunpack.c.h.b16 %v81
  %v446 = vunpack.c.l.b16 %v82
  %v447 = vunpack.c.h.b16 %v82
  %v448 = vunpack.c.l.b16 %v83
  %v449 = vunpack.c.h.b16 %v83
  %v450 = vunpack.c.l.b16 %v84
  %v451 = vunpack.c.h.b16 %v84
  %v452 = vunpack.c.l.b16 %v85
  %v453 = vunpack.c.h.b16 %v85
  %v454 = vunpack.c.l.b16 %v86
  %v455 = vunpack.c.h.b16 %v86
  %v456 = vunpack.c.l.b16 %v87
  %v457 = vunpack.c.h.b16 %v87
  %v458 = vunpack.c.l.b16 %v88
  %v459 = vunpack.c.h.b16 %v88
  %v460 = vunpack.c.l.b16 %v89
  %v461 = vunpack.c.h.b16 %v89
  %v462 = vunpack.c.l.b16 %v90
  %v463 = vunpack.c.h.b16 %v90
  %v464 = vunpack.c.l.b16 %v91
  %v465 = vunpack.c.h.b16 %v91
  %v466 = vunpack.c.l.b16 %v92
  %v467 = vunpack.c.h.b16 %v92
  %v468 = vunpack.c.l.b16 %v93
  %v469 = vunpack.c.h.b16 %v93
  %v470 = vunpack.c.l.b16 %v94
  %v471 = vunpack.c.h.b16 %v94
  %v472 = vunpack.c.l.b16 %v95
  %v473 = vunpack.c.h.b16 %v95
  %v474 = vunpack.c.l.b16 %v96
  %v475 = vunpack.c.h.b16 %v96
  %v476 = vunpack.c.l.b16 %v97
  %v477 = vunpack.c.h.b16 %v97
  %v478 = vunpack.c.l.b16 %v98
  %v479 = vunpack.c.h.b16 %v98
  %v480 = vunpack.c.l.b16 %v99
  %v481 = vunpack.c.h.b16 %v99
  %v482 = vunpack.c.l.b16 %v100
  %v483 = vunpack.c.h.b16 %v100
  %v484 = vunpack.c.l.b16 %v101
  %v485 = vunpack.c.h.b16 %v101
  %v486 = vunpack.c.l.b16 %v102
  %v487 = vunpack.c.h.b16 %v102
  %v488 = vunpack.c.l.b16 %v103
  %v489 = vunpack.c.h.b16 %v103
  %v490 = vunpack.c.l.b16 %v104
  %v491 = vunpack.c.h.b16 %v104
  %v492 = vunpack.c.l.b16 %v105
  %v493 = vunpack.c.h.b16 %v105
  %v494 = vunpack.c.l.b16 %v106
  %v495 = vunpack.c.h.b16 %v106
  %v496 = vunpack.c.l.b16 %v107
  %v497 = vunpack.c.h.b16 %v107
  %v498 = vunpack.c.l.b16 %v108
  %v499 = vunpack.c.h.b16 %v108
  %v500 = vunpack.c.l.b16 %v109
  %v501 = vunpack.c.h.b16 %v109
  %v502 = vunpack.c.l.b16 %v110
  %v503 = vunpack.c.h.b16 %v110
  %v504 = vunpack.c.l.b16 %v111
  %v505 = vunpack.c.h.b16 %v111
  %v506 = vunpack.c.l.b16 %v112
  %v507 = vunpack.c.h.b16 %v112
  %v508 = vunpack.c.l.b16 %v113
  %v509 = vunpack.c.h.b16 %v113
  %v510 = vunpack.c.l.b16 %v114
  %v511 = vunpack.c.h.b16 %v114
  %v512 = vunpack.c.l.b16 %v115
  %v513 = vunpack.c.h.b16 %v115
  %v514 = vunpack.c.l.b16 %v116
  %v515 = vunpack.c.h.b16 %v116
  %v516 = vunpack.c.l.b16 %v117
  %v517 = vunpack.c.h.b16 %v117
  %v518 = vunpack.c.l.b16 %v118
  %v519 = vunpack.c.h.b16 %v118
  %v520 = vunpack.c.l.b16 %v119
  %v521 = vunpack.c.h.b16 %v119
  %v522 = vunpack.c.l.b16 %v120
  %v523 = vunpack.c.h.b16 %v120
  %v524 = vunpack.c.l.b16 %v121
  %v525 = vunpack.c.h.b16 %v121
  %v526 = vunpack.c.l.b16 %v122
  %v527 = vunpack.c.h.b16 %v122
  %v528 = vunpack.c.l.b16 %v123
  %v529 = vunpack.c.h.b16 %v123
  %v530 = vunpack.c.l.b16 %v124
  %v531 = vunpack.c.h.b16 %v124
  %v532 = vunpack.c.l.b16 %v125
  %v533 = vunpack.c.h.b16 %v125
  %v534 = vunpack.c.l.b16 %v126
  %v535 = vunpack.c.h.b16 %v126
  %v536 = vunpack.c.l.b16 %v127
  %v537 = vunpack.c.h.b16 %v127
  %v538 = vunpack.c.l.b16 %v128
  %v539 = vunpack.c.h.b16 %v128
  %v540 = vunpack.c.l.b16 %v129
  %v541 = vunpack.c.h.b16 %v129
  %v542 = vunpack.c.l.b16 %v130
  %v543 = vunpack.c.h.b16 %v130
  %v544 = vunpack.c.l.b16 %v131
  %v545 = vunpack.c.h.b16 %v131
  %v546 = vunpack.c.l.b16 %v132
  %v547 = vunpack.c.h.b16 %v132
  %v548 = vunpack.c.l.b16 %v133
  %v549 = vunpack.c.h.b16 %v133
  %v550 = vunpack.c.l.b16 %v134
  %v551 = vunpack.c.h.b16 %v134
  %v552 = vunpack.c.l.b16 %v135
  %v553 = vunpack.c.h.b16 %v135
  %v554 = vunpack.c.l.b16 %v136
  %v555 = vunpack.c.h.b16 %v136
  %v556 = vunpack.c.l.b16 %v137
  %v557 = vunpack.c.h.b16 %v137
  %v558 = vunpack.c.l.b16 %v138
  %v559 = vunpack.c.h.b16 %v138
  %v560 = vunpack.c.l.b16 %v139
  %v561 = vunpack.c.h.b16 %v139
  %v562 = vunpack.c.l.b16 %v140
  %v563 = vunpack.c.h.b16 %v140
  %v564 = vunpack.c.l.b16 %v141
  %v565 = vunpack.c.h.b16 %v141
  %v566 = vunpack.c.l.b16 %v142
  %v567 = vunpack.c.h.b16 %v142
  %v568 = vunpack.c.l.b16 %v143
  %v569 = vunpack.c.h.b16 %v143
  %v570 = vunpack.c.l.b16 %v144
  %v571 = vunpack.c.h.b16 %v144
  %v572 = vunpack.c.l.b16 %v145
  %v573 = vunpack.c.h.b16 %v145
  %v574 = vunpack.c.l.b16 %v146
  %v575 = vunpack.c.h.b16 %v146
  %v576 = vunpack.c.l.b16 %v147
  %v577 = vunpack.c.h.b16 %v147
  %v578 = vunpack.c.l.b16 %v148
  %v579 = vunpack.c.h.b16 %v148
  %v580 = vunpack.c.l.b16 %v149
  %v581 = vunpack.c.h.b16 %v149
  %v582 = vunpack.c.l.b16 %v150
  %v583 = vunpack.c.h.b16 %v150
  %v584 = vunpack.c.l.b16 %v151
  %v585 = vunpack.c.h.b16 %v151
  %v586 = vunpack.c.l.b16 %v152
  %v587 = vunpack.c.h.b16 %v152
  %v588 = vunpack.c.l.b16 %v153
  %v589 = vunpack.c.h.b16 %v153
  %v590 = vunpack.c.l.b16 %v154
  %v591 = vunpack.c.h.b16 %v154
  %v592 = vunpack.c.l.b16 %v155
  %v593 = vunpack.c.h.b16 %v155
  %v594 = vunpack.c.l.b16 %v156
  %v595 = vunpack.c.h.b16 %v156
  %v596 = vunpack.c.l.b16 %v157
  %v597 = vunpack.c.h.b16 %v157
  %v598 = vunpack.c.l.b16 %v158
  %v599 = vunpack.c.h.b16 %v158
  %v600 = vunpack.c.l.b16 %v159
  %v601 = vunpack.c.h.b16 %v159
  %v602 = vunpack.c.l.b16 %v160
  %v603 = vunpack.c.h.b16 %v160
  %v604 = vunpack.c.l.b16 %v161
  %v605 = vunpack.c.h.b16 %v161
  %v606 = vunpack.c.l.b16 %v162
  %v607 = vunpack.c.h.b16 %v162
  %v608 = vunpack.c.l.b16 %v163
  %v609 = vunpack.c.h.b16 %v163
  %v610 = vunpack.c.l.b16 %v164
  %v611 = vunpack.c.h.b16 %v164
  %v612 = vunpack.c.l.b16 %v165
  %v613 = vunpack.c.h.b16 %v165
  %v614 = vunpack.c.l.b16 %v166
  %v615 = vunpack.c.h.b16 %v166
  %v616 = vunpack.c.l.b16 %v167
  %v617 = vunpack.c.h.b16 %v167
  %v618 = vunpack.c.l.b16 %v168
  %v619 = vunpack.c.h.b16 %v168
  %v620 = vunpack.c.l.b16 %v169
  %v621 = vunpack.c.h.b16 %v169
  %v622 = vunpack.c.l.b16 %v170
  %v623 = vunpack.c.h.b16 %v170
  %v624 = vunpack.c.l.b16 %v171
  %v625 = vunpack.c.h.b16 %v171
  %v626 = vunpack.c.l.b16 %v172
  %v627 = vunpack.c.h.b16 %v172
  %v628 = vunpack.c.l.b16 %v173
  %v629 = vunpack.c.h.b16 %v173
  %v630 = vunpack.c.l.b16 %v174
  %v631 = vunpack.c.h.b16 %v174
  %v632 = vunpack.c.l.b16 %v175
  %v633 = vunpack.c.h.b16 %v175
  %v634 = vunpack.c.l.b16 %v176
  %v635 = vunpack.c.h.b16 %v176
  %v636 = vunpack.c.l.b16 %v177
  %v637 = vunpack.c.h.b16 %v177
  %v638 = vunpack.c.l.b16 %v178
  %v639 = vunpack.c.h.b16 %v178
  %v640 = vunpack.c.l.b16 %v179
  %v641 = vunpack.c.h.b16 %v179
  %v642 = vunpack.c.l.b16 %v180
  %v643 = vunpack.c.h.b16 %v180
  %v644 = vunpack.c.l.b16 %v181
  %v645 = vunpack.c.h.b16 %v181
  %v646 = vunpack.c.l.b16 %v182
  %v647 = vunpack.c.h.b16 %v182
  %v648 = vunpack.c.l.b16 %v183
  %v649 = vunpack.c.h.b16 %v183
  %v650 = vunpack.c.l.b16 %v184
  %v651 = vunpack.c.h.b16 %v184
  %v652 = vunpack.c.l.b16 %v185
  %v653 = vunpack.c.h.b16 %v185
  %v654 = vunpack.c.l.b16 %v186
  %v655 = vunpack.c.h.b16 %v186
  %v656 = vunpack.c.l.b16 %v187
  %v657 = vunpack.c.h.b16 %v187
  %v658 = vunpack.c.l.b16 %v188
  %v659 = vunpack.c.h.b16 %v188
  %v660 = vunpack.c.l.b16 %v189
  %v661 = vunpack.c.h.b16 %v189
  %v662 = vunpack.c.l.b16 %v190
  %v663 = vunpack.c.h.b16 %v190
  %v664 = vunpack.c.l.b16 %v191
  %v665 = vunpack.c.h.b16 %v191
  %v666 = vunpack.c.l.b16 %v192
  %v667 = vunpack.c.h.b16 %v192
  %v668 = vunpack.c.l.b16 %v193
  %v669 = vunpack.c.h.b16 %v193
  %v670 = vunpack.c.l.b16 %v194
  %v671 = vunpack.c.h.b16 %v194
  %v672 = vunpack.c.l.b16 %v195
  %v673 = vunpack.c.h.b16 %v195
  %v674 = vunpack.c.l.b16 %v196
  %v675 = vunpack.c.h.b16 %v196
  %v676 = vunpack.c.l.b16 %v197
  %v677 = vunpack.c.h.b16 %v197
  %v678 = vunpack.c.l.b16 %v198
  %v679 = vunpack.c.h.b16 %v198
  %v680 = vunpack.c.l.b16 %v199
  %v681 = vunpack.c.h.b16 %v199
  %v682 = vunpack.c.l.b16 %v200
  %v683 = vunpack.c.h.b16 %v200
  %v684 = vunpack.c.l.b16 %v201
  %v685 = vunpack.c.h.b16 %v201
  %v686 = vunpack.c.l.b16 %v202
  %v687 = vunpack.c.h.b16 %v202
  %v688 = vunpack.c.l.b16 %v203
  %v689 = vunpack.c.h.b16 %v203
  %v690 = vunpack.c.l.b16 %v204
  %v691 = vunpack.c.h.b16 %v204
  %v692 = vunpack.c.l.b16 %v205
  %v693 = vunpack.c.h.b16 %v205
  %v694 = vunpack.c.l.b16 %v206
  %v695 = vunpack.c.h.b16 %v206
  %v696 = vunpack.c.l.b16 %v207
  %v697 = vunpack.c.h.b16 %v207
  %v698 = vunpack.c.l.b16 %v208
  %v699 = vunpack.c.h.b16 %v208
  %v700 = vunpack.c.l.b16 %v209
  %v701 = vunpack.c.h.b16 %v209
  %v702 = vunpack.c.l.b16 %v210
  %v703 = vunpack.c.h.b16 %v210
  %v704 = vunpack.c.l.b16 %v211
  %v705 = vunpack.c.h.b16 %v211
  %v706 = vunpack.c.l.b16 %v212
  %v707 = vunpack.c.h.b16 %v212
  %v708 = vunpack.c.l.b16 %v213
  %v709 = vunpack.c.h.b16 %v213
  %v710 = vunpack.c.l.b16 %v214
  %v711 = vunpack.c.h.b16 %v214
  %v712 = vunpack.c.l.b16 %v215
  %v713 = vunpack.c.h.b16 %v215
  %v714 = vunpack.c.l.b16 %v216
  %v715 = vunpack.c.h.b16 %v216
  %v716 = vunpack.c.l.b16 %v217
  %v717 = vunpack.c.h.b16 %v217
  %v718 = vunpack.c.l.b16 %v218
  %v719 = vunpack.c.h.b16 %v218
  %v720 = vunpack.c.l.b16 %v219
  %v721 = vunpack.c.h.b16 %v219
  %v722 = vpack.c.b16 %v406, %v402
  %v723 = vpack.c.b16 %v407, %v403
  %v724 = vpack.c.b16 %v408, %v404
  %v725 = vpack.c.b16 %v409, %v405
  %v726 = vpack.c.b16 %v414, %v410
  %v727 = vpack.c.b16 %v415, %v411
  %v728 = vpack.c.b16 %v416, %v412
  %v729 = vpack.c.b16 %v417, %v413
  %v730 = vpack.c.b16 %v422, %v418
  %v731 = vpack.c.b16 %v423, %v419
  %v732 = vpack.c.b16 %v424, %v420
  %v733 = vpack.c.b16 %v425, %v421
  %v734 = vpack.c.b16 %v430, %v426
  %v735 = vpack.c.b16 %v431, %v427
  %v736 = vpack.c.b16 %v432, %v428
  %v737 = vpack.c.b16 %v433, %v429
  %v738 = vpack.c.b16 %v438, %v434
  %v739 = vpack.c.b16 %v439, %v435
  %v740 = vpack.c.b16 %v440, %v436
  %v741 = vpack.c.b16 %v441, %v437
  %v742 = vpack.c.b16 %v446, %v442
  %v743 = vpack.c.b16 %v447, %v443
  %v744 = vpack.c.b16 %v448, %v444
  %v745 = vpack.c.b16 %v449, %v445
  %v746 = vpack.c.b16 %v454, %v450
  %v747 = vpack.c.b16 %v455, %v451
  %v748 = vpack.c.b16 %v456, %v452
  %v749 = vpack.c.b16 %v457, %v453
  %v750 = vpack.c.b16 %v462, %v458
  %v751 = vpack.c.b16 %v463, %v459
  %v752 = vpack.c.b16 %v464, %v460
  %v753 = vpack.c.b16 %v465, %v461
  %v754 = vpack.c.b16 %v470, %v466
  %v755 = vpack.c.b16 %v471, %v467
  %v756 = vpack.c.b16 %v472, %v468
  %v757 = vpack.c.b16 %v473, %v469
  %v758 = vpack.c.b16 %v478, %v474
  %v759 = vpack.c.b16 %v479, %v475
  %v760 = vpack.c.b16 %v480, %v476
  %v761 = vpack.c.b16 %v481, %v477
  %v762 = vpack.c.b16 %v486, %v482
  %v763 = vpack.c.b16 %v487, %v483
  %v764 = vpack.c.b16 %v488, %v484
  %v765 = vpack.c.b16 %v489, %v485
  %v766 = vpack.c.b16 %v494, %v490
  %v767 = vpack.c.b16 %v495, %v491
  %v768 = vpack.c.b16 %v496, %v492
  %v769 = vpack.c.b16 %v497, %v493
  %v770 = vpack.c.b16 %v502, %v498
  %v771 = vpack.c.b16 %v503, %v499
  %v772 = vpack.c.b16 %v504, %v500
  %v773 = vpack.c.b16 %v505, %v501
  %v774 = vpack.c.b16 %v510, %v506
  %v775 = vpack.c.b16 %v511, %v507
  %v776 = vpack.c.b16 %v512, %v508
  %v777 = vpack.c.b16 %v513, %v509
  %v778 = vpack.c.b16 %v518, %v514
  %v779 = vpack.c.b16 %v519, %v515
  %v780 = vpack.c.b16 %v520, %v516
  %v781 = vpack.c.b16 %v521, %v517
  %v782 = vpack.c.b16 %v526, %v522
  %v783 = vpack.c.b16 %v527, %v523
  %v784 = vpack.c.b16 %v528, %v524
  %v785 = vpack.c.b16 %v529, %v525
  %v786 = vpack.c.b16 %v534, %v530
  %v787 = vpack.c.b16 %v535, %v531
  %v788 = vpack.c.b16 %v536, %v532
  %v789 = vpack.c.b16 %v537, %v533
  %v790 = vpack.c.b16 %v542, %v538
  %v791 = vpack.c.b16 %v543, %v539
  %v792 = vpack.c.b16 %v544, %v540
  %v793 = vpack.c.b16 %v545, %v541
  %v794 = vpack.c.b16 %v550, %v546
  %v795 = vpack.c.b16 %v551, %v547
  %v796 = vpack.c.b16 %v552, %v548
  %v797 = vpack.c.b16 %v553, %v549
  %v798 = vpack.c.b16 %v558, %v554
  %v799 = vpack.c.b16 %v559, %v555
  %v800 = vpack.c.b16 %v560, %v556
  %v801 = vpack.c.b16 %v561, %v557
  %v802 = vpack.c.b16 %v566, %v562
  %v803 = vpack.c.b16 %v567, %v563
  %v804 = vpack.c.b16 %v568, %v564
  %v805 = vpack.c.b16 %v569, %v565
  %v806 = vpack.c.b16 %v574, %v570
  %v807 = vpack.c.b16 %v575, %v571
  %v808 = vpack.c.b16 %v576, %v572
  %v809 = vpack.c.b16 %v577, %v573
  %v810 = vpack.c.b16 %v582, %v578
  %v811 = vpack.c.b16 %v583, %v579
  %v812 = vpack.c.b16 %v584, %v580
  %v813 = vpack.c.b16 %v585, %v581
  %v814 = vpack.c.b16 %v590, %v586
  %v815 = vpack.c.b16 %v591, %v587
  %v816 = vpack.c.b16 %v592, %v588
  %v817 = vpack.c.b16 %v593, %v589
  %v818 = vpack.c.b16 %v598, %v594
  %v819 = vpack.c.b16 %v599, %v595
  %v820 = vpack.c.b16 %v600, %v596
  %v821 = vpack.c.b16 %v601, %v597
  %v822 = vpack.c.b16 %v606, %v602
  %v823 = vpack.c.b16 %v607, %v603
  %v824 = vpack.c.b16 %v608, %v604
  %v825 = vpack.c.b16 %v609, %v605
  %v826 = vpack.c.b16 %v614, %v610
  %v827 = vpack.c.b16 %v615, %v611
  %v828 = vpack.c.b16 %v616, %v612
  %v829 = vpack.c.b16 %v617, %v613
  %v830 = vpack.c.b16 %v622, %v618
  %v831 = vpack.c.b16 %v623, %v619
  %v832 = vpack.c.b16 %v624, %v620
  %v833 = vpack.c.b16 %v625, %v621
  %v834 = vpack.c.b16 %v630, %v626
  %v835 = vpack.c.b16 %v631, %v627
  %v836 = vpack.c.b16 %v632, %v628
  %v837 = vpack.c.b16 %v633, %v629
  %v838 = vpack.c.b16 %v638, %v634
  %v839 = vpack.c.b16 %v639, %v635
  %v840 = vpack.c.b16 %v640, %v636
  %v841 = vpack.c.b16 %v641, %v637
  %v842 = vpack.c.b16 %v646, %v642
  %v843 = vpack.c.b16 %v647, %v643
  %v844 = vpack.c.b16 %v648, %v644
  %v845 = vpack.c.b16 %v649, %v645
  %v846 = vpack.c.b16 %v654, %v650
  %v847 = vpack.c.b16 %v655, %v651
  %v848 = vpack.c.b16 %v656, %v652
  %v849 = vpack.c.b16 %v657, %v653
  %v850 = vpack.c.b16 %v662, %v658
  %v851 = vpack.c.b16 %v663, %v659
  %v852 = vpack.c.b16 %v664, %v660
  %v853 = vpack.c.b16 %v665, %v661
  %v854 = vpack.c.b16 %v670, %v666
  %v855 = vpack.c.b16 %v671, %v667
  %v856 = vpack.c.b16 %v672, %v668
  %v857 = vpack.c.b16 %v673, %v669
  %v858 = vpack.c.b16 %v678, %v674
  %v859 = vpack.c.b16 %v679, %v675
  %v860 = vpack.c.b16 %v680, %v676
  %v861 = vpack.c.b16 %v681, %v677
  %v862 = vpack.c.b16 %v686, %v682
  %v863 = vpack.c.b16 %v687, %v683
  %v864 = vpack.c.b16 %v688, %v684
  %v865 = vpack.c.b16 %v689, %v685
  %v866 = vpack.c.b16 %v694, %v690
  %v867 = vpack.c.b16 %v695, %v691
  %v868 = vpack.c.b16 %v696, %v692
  %v869 = vpack.c.b16 %v697, %v693
  %v870 = vpack.c.b16 %v702, %v698
  %v871 = vpack.c.b16 %v703, %v699
  %v872 = vpack.c.b16 %v704, %v700
  %v873 = vpack.c.b16 %v705, %v701
  %v874 = vpack.c.b16 %v710, %v706
  %v875 = vpack.c.b16 %v711, %v707
  %v876 = vpack.c.b16 %v712, %v708
  %v877 = vpack.c.b16 %v713, %v709
  %v878 = vpack.c.b16 %v718, %v714
  %v879 = vpack.c.b16 %v719, %v715
  %v880 = vpack.c.b16 %v720, %v716
  %v881 = vpack.c.b16 %v721, %v717
  %1042 = vmatprep.subr.bf16.mxu0 %v723
  %1043 = vmatpush1.bf16.msra.mxu0 %v722
  %1044 = vmatprep.subr.bf16.mxu0 %v727
  %1045 = vmatpush1.bf16.msra.mxu0 %v726
  %1046 = vmatprep.subr.bf16.mxu0 %v731
  %1047 = vmatpush1.bf16.msra.mxu0 %v730
  %1048 = vmatprep.subr.bf16.mxu0 %v735
  %1049 = vmatpush1.bf16.msra.mxu0 %v734
  %1050 = vmatprep.subr.bf16.mxu0 %v739
  %1051 = vmatpush1.bf16.msra.mxu0 %v738
  %1052 = vmatprep.subr.bf16.mxu0 %v743
  %1053 = vmatpush1.bf16.msra.mxu0 %v742
  %1054 = vmatprep.subr.bf16.mxu0 %v747
  %1055 = vmatpush1.bf16.msra.mxu0 %v746
  %1056 = vmatprep.subr.bf16.mxu0 %v751
  %1057 = vmatpush1.bf16.msra.mxu0 %v750
  %1058 = vmatprep.subr.bf16.mxu0 %v755
  %1059 = vmatpush1.bf16.msra.mxu0 %v754
  %1060 = vmatprep.subr.bf16.mxu0 %v759
  %1061 = vmatpush1.bf16.msra.mxu0 %v758
  %1062 = vmatprep.subr.bf16.mxu0 %v763
  %1063 = vmatpush1.bf16.msra.mxu0 %v762
  %1064 = vmatprep.subr.bf16.mxu0 %v767
  %1065 = vmatpush1.bf16.msra.mxu0 %v766
  %1066 = vmatprep.subr.bf16.mxu0 %v771
  %1067 = vmatpush1.bf16.msra.mxu0 %v770
  %1068 = vmatprep.subr.bf16.mxu0 %v775
  %1069 = vmatpush1.bf16.msra.mxu0 %v774
  %1070 = vmatprep.subr.bf16.mxu0 %v779
  %1071 = vmatpush1.bf16.msra.mxu0 %v778
  %1072 = vmatprep.subr.bf16.mxu0 %v783
  %1073 = vmatpush1.bf16.msra.mxu0 %v782
  %1074 = vmatprep.mubr.bf16.mxu0 %v56
  %1075 = vmatmul.mubr.bf16.gmra.mrb[0].mxu0 %v55
  %v1076 = vpop.f32.mrb[0].mxu0
  %v1077 = vadd.f32 %v225, %v1076
  %v1078 = vpop.f32.mrb[0].mxu0
  %v1079 = vadd.f32 %v229, %v1078
  %v1080 = vpop.f32.mrb[0].mxu0
  %v1081 = vadd.f32 %v225, %v1080
  %v1082 = vpop.f32.mrb[0].mxu0
  %v1083 = vadd.f32 %v229, %v1082
  %1084 = vdwg.mxu0
  %1085 = vmatprep.subr.bf16.mxu0 %v787
  %1086 = vmatpush1.bf16.msra.mxu0 %v786
  %1087 = vmatprep.subr.bf16.mxu0 %v791
  %1088 = vmatpush1.bf16.msra.mxu0 %v790
  %1089 = vmatprep.subr.bf16.mxu0 %v795
  %1090 = vmatpush1.bf16.msra.mxu0 %v794
  %1091 = vmatprep.subr.bf16.mxu0 %v799
  %1092 = vmatpush1.bf16.msra.mxu0 %v798
  %1093 = vmatprep.subr.bf16.mxu0 %v803
  %1094 = vmatpush1.bf16.msra.mxu0 %v802
  %1095 = vmatprep.subr.bf16.mxu0 %v807
  %1096 = vmatpush1.bf16.msra.mxu0 %v806
  %1097 = vmatprep.subr.bf16.mxu0 %v811
  %1098 = vmatpush1.bf16.msra.mxu0 %v810
  %1099 = vmatprep.subr.bf16.mxu0 %v815
  %1100 = vmatpush1.bf16.msra.mxu0 %v814
  %1101 = vmatprep.subr.bf16.mxu0 %v819
  %1102 = vmatpush1.bf16.msra.mxu0 %v818
  %1103 = vmatprep.subr.bf16.mxu0 %v823
  %1104 = vmatpush1.bf16.msra.mxu0 %v822
  %1105 = vmatprep.subr.bf16.mxu0 %v827
  %1106 = vmatpush1.bf16.msra.mxu0 %v826
  %1107 = vmatprep.subr.bf16.mxu0 %v831
  %1108 = vmatpush1.bf16.msra.mxu0 %v830
  %1109 = vmatprep.subr.bf16.mxu0 %v835
  %1110 = vmatpush1.bf16.msra.mxu0 %v834
  %1111 = vmatprep.subr.bf16.mxu0 %v839
  %1112 = vmatpush1.bf16.msra.mxu0 %v838
  %1113 = vmatprep.subr.bf16.mxu0 %v843
  %1114 = vmatpush1.bf16.msra.mxu0 %v842
  %1115 = vmatprep.subr.bf16.mxu0 %v847
  %1116 = vmatpush1.bf16.msra.mxu0 %v846
  %1117 = vmatprep.mubr.bf16.mxu0 %v58
  %1118 = vmatmul.mubr.bf16.gmra.mrb[0].mxu0 %v57
  %v1119 = vpop.f32.mrb[0].mxu0
  %v1120 = vadd.f32 %v1077, %v1119
  %v1121 = vpop.f32.mrb[0].mxu0
  %v1122 = vadd.f32 %v1079, %v1121
  %v1123 = vpop.f32.mrb[0].mxu0
  %v1124 = vadd.f32 %v1081, %v1123
  %v1125 = vpop.f32.mrb[0].mxu0
  %v1126 = vadd.f32 %v1083, %v1125
  %1127 = vdwg.mxu0
  %1128 = vmatprep.subr.bf16.mxu0 %v851
  %1129 = vmatpush1.bf16.msra.mxu0 %v850
  %1130 = vmatprep.subr.bf16.mxu0 %v855
  %1131 = vmatpush1.bf16.msra.mxu0 %v854
  %1132 = vmatprep.subr.bf16.mxu0 %v859
  %1133 = vmatpush1.bf16.msra.mxu0 %v858
  %1134 = vmatprep.subr.bf16.mxu0 %v863
  %1135 = vmatpush1.bf16.msra.mxu0 %v862
  %1136 = vmatprep.subr.bf16.mxu0 %v867
  %1137 = vmatpush1.bf16.msra.mxu0 %v866
  %1138 = vmatprep.subr.bf16.mxu0 %v871
  %1139 = vmatpush1.bf16.msra.mxu0 %v870
  %1140 = vmatprep.subr.bf16.mxu0 %v875
  %1141 = vmatpush1.bf16.msra.mxu0 %v874
  %1142 = vmatprep.subr.bf16.mxu0 %v879
  %1143 = vmatpush1.bf16.msra.mxu0 %v878
  %1144 = vmatprep.subr.bf16.mxu0 0
  %1145 = vmatpush1.bf16.msra.mxu0 0
  %1146 = vmatprep.subr.bf16.mxu0 0
  %1147 = vmatpush1.bf16.msra.mxu0 0
  %1148 = vmatprep.subr.bf16.mxu0 0
  %1149 = vmatpush1.bf16.msra.mxu0 0
  %1150 = vmatprep.subr.bf16.mxu0 0
  %1151 = vmatpush1.bf16.msra.mxu0 0
  %1152 = vmatprep.subr.bf16.mxu0 0
  %1153 = vmatpush1.bf16.msra.mxu0 0
  %1154 = vmatprep.subr.bf16.mxu0 0
  %1155 = vmatpush1.bf16.msra.mxu0 0
  %1156 = vmatprep.subr.bf16.mxu0 0
  %1157 = vmatpush1.bf16.msra.mxu0 0
  %1158 = vmatprep.subr.bf16.mxu0 0
  %1159 = vmatpush1.bf16.msra.mxu0 0
  %1160 = vmatprep.mubr.bf16.mxu0 0
  %1161 = vmatmul.mubr.bf16.gmra.mrb[0].mxu0 %v59
  %v1162 = vpop.f32.mrb[0].mxu0
  %v1163 = vadd.f32 %v1120, %v1162
  %v1164 = vpop.f32.mrb[0].mxu0
  %v1165 = vadd.f32 %v1122, %v1164
  %v1166 = vpop.f32.mrb[0].mxu0
  %v1167 = vadd.f32 %v1124, %v1166
  %v1168 = vpop.f32.mrb[0].mxu0
  %v1169 = vadd.f32 %v1126, %v1168
  %1170 = vdwg.mxu0
  %1171 = vmatprep.subr.bf16.mxu0 %v725
  %1172 = vmatpush1.bf16.msra.mxu0 %v724
  %1173 = vmatprep.subr.bf16.mxu0 %v729
  %1174 = vmatpush1.bf16.msra.mxu0 %v728
  %1175 = vmatprep.subr.bf16.mxu0 %v733
  %1176 = vmatpush1.bf16.msra.mxu0 %v732
  %1177 = vmatprep.subr.bf16.mxu0 %v737
  %1178 = vmatpush1.bf16.msra.mxu0 %v736
  %1179 = vmatprep.subr.bf16.mxu0 %v741
  %1180 = vmatpush1.bf16.msra.mxu0 %v740
  %1181 = vmatprep.subr.bf16.mxu0 %v745
  %1182 = vmatpush1.bf16.msra.mxu0 %v744
  %1183 = vmatprep.subr.bf16.mxu0 %v749
  %1184 = vmatpush1.bf16.msra.mxu0 %v748
  %1185 = vmatprep.subr.bf16.mxu0 %v753
  %1186 = vmatpush1.bf16.msra.mxu0 %v752
  %1187 = vmatprep.subr.bf16.mxu0 %v757
  %1188 = vmatpush1.bf16.msra.mxu0 %v756
  %1189 = vmatprep.subr.bf16.mxu0 %v761
  %1190 = vmatpush1.bf16.msra.mxu0 %v760
  %1191 = vmatprep.subr.bf16.mxu0 %v765
  %1192 = vmatpush1.bf16.msra.mxu0 %v764
  %1193 = vmatprep.subr.bf16.mxu0 %v769
  %1194 = vmatpush1.bf16.msra.mxu0 %v768
  %1195 = vmatprep.subr.bf16.mxu0 %v773
  %1196 = vmatpush1.bf16.msra.mxu0 %v772
  %1197 = vmatprep.subr.bf16.mxu0 %v777
  %1198 = vmatpush1.bf16.msra.mxu0 %v776
  %1199 = vmatprep.subr.bf16.mxu0 %v781
  %1200 = vmatpush1.bf16.msra.mxu0 %v780
  %1201 = vmatprep.subr.bf16.mxu0 %v785
  %1202 = vmatpush1.bf16.msra.mxu0 %v784
  %1203 = vmatprep.mubr.bf16.mxu0 %v56
  %1204 = vmatmul.mubr.bf16.gmra.mrb[0].mxu0 %v55
  %v1205 = vpop.f32.mrb[0].mxu0
  %v1206 = vadd.f32 %v233, %v1205
  %v1207 = vpop.f32.mrb[0].mxu0
  %v1208 = vadd.f32 %v237, %v1207
  %v1209 = vpop.f32.mrb[0].mxu0
  %v1210 = vadd.f32 %v233, %v1209
  %v1211 = vpop.f32.mrb[0].mxu0
  %v1212 = vadd.f32 %v237, %v1211
  %1213 = vdwg.mxu0
  %1214 = vmatprep.subr.bf16.mxu0 %v789
  %1215 = vmatpush1.bf16.msra.mxu0 %v788
  %1216 = vmatprep.subr.bf16.mxu0 %v793
  %1217 = vmatpush1.bf16.msra.mxu0 %v792
  %1218 = vmatprep.subr.bf16.mxu0 %v797
  %1219 = vmatpush1.bf16.msra.mxu0 %v796
  %1220 = vmatprep.subr.bf16.mxu0 %v801
  %1221 = vmatpush1.bf16.msra.mxu0 %v800
  %1222 = vmatprep.subr.bf16.mxu0 %v805
  %1223 = vmatpush1.bf16.msra.mxu0 %v804
  %1224 = vmatprep.subr.bf16.mxu0 %v809
  %1225 = vmatpush1.bf16.msra.mxu0 %v808
  %1226 = vmatprep.subr.bf16.mxu0 %v813
  %1227 = vmatpush1.bf16.msra.mxu0 %v812
  %1228 = vmatprep.subr.bf16.mxu0 %v817
  %1229 = vmatpush1.bf16.msra.mxu0 %v816
  %1230 = vmatprep.subr.bf16.mxu0 %v821
  %1231 = vmatpush1.bf16.msra.mxu0 %v820
  %1232 = vmatprep.subr.bf16.mxu0 %v825
  %1233 = vmatpush1.bf16.msra.mxu0 %v824
  %1234 = vmatprep.subr.bf16.mxu0 %v829
  %1235 = vmatpush1.bf16.msra.mxu0 %v828
  %1236 = vmatprep.subr.bf16.mxu0 %v833
  %1237 = vmatpush1.bf16.msra.mxu0 %v832
  %1238 = vmatprep.subr.bf16.mxu0 %v837
  %1239 = vmatpush1.bf16.msra.mxu0 %v836
  %1240 = vmatprep.subr.bf16.mxu0 %v841
  %1241 = vmatpush1.bf16.msra.mxu0 %v840
  %1242 = vmatprep.subr.bf16.mxu0 %v845
  %1243 = vmatpush1.bf16.msra.mxu0 %v844
  %1244 = vmatprep.subr.bf16.mxu0 %v849
  %1245 = vmatpush1.bf16.msra.mxu0 %v848
  %1246 = vmatprep.mubr.bf16.mxu0 %v58
  %1247 = vmatmul.mubr.bf16.gmra.mrb[0].mxu0 %v57
  %v1248 = vpop.f32.mrb[0].mxu0
  %v1249 = vadd.f32 %v1206, %v1248
  %v1250 = vpop.f32.mrb[0].mxu0
  %v1251 = vadd.f32 %v1208, %v1250
  %v1252 = vpop.f32.mrb[0].mxu0
  %v1253 = vadd.f32 %v1210, %v1252
  %v1254 = vpop.f32.mrb[0].mxu0
  %v1255 = vadd.f32 %v1212, %v1254
  %1256 = vdwg.mxu0
  %1257 = vmatprep.subr.bf16.mxu0 %v853
  %1258 = vmatpush1.bf16.msra.mxu0 %v852
  %1259 = vmatprep.subr.bf16.mxu0 %v857
  %1260 = vmatpush1.bf16.msra.mxu0 %v856
  %1261 = vmatprep.subr.bf16.mxu0 %v861
  %1262 = vmatpush1.bf16.msra.mxu0 %v860
  %1263 = vmatprep.subr.bf16.mxu0 %v865
  %1264 = vmatpush1.bf16.msra.mxu0 %v864
  %1265 = vmatprep.subr.bf16.mxu0 %v869
  %1266 = vmatpush1.bf16.msra.mxu0 %v868
  %1267 = vmatprep.subr.bf16.mxu0 %v873
  %1268 = vmatpush1.bf16.msra.mxu0 %v872
  %1269 = vmatprep.subr.bf16.mxu0 %v877
  %1270 = vmatpush1.bf16.msra.mxu0 %v876
  %1271 = vmatprep.subr.bf16.mxu0 %v881
  %1272 = vmatpush1.bf16.msra.mxu0 %v880
  %1273 = vmatprep.subr.bf16.mxu0 0
  %1274 = vmatpush1.bf16.msra.mxu0 0
  %1275 = vmatprep.subr.bf16.mxu0 0
  %1276 = vmatpush1.bf16.msra.mxu0 0
  %1277 = vmatprep.subr.bf16.mxu0 0
  %1278 = vmatpush1.bf16.msra.mxu0 0
  %1279 = vmatprep.subr.bf16.mxu0 0
  %1280 = vmatpush1.bf16.msra.mxu0 0
  %1281 = vmatprep.subr.bf16.mxu0 0
  %1282 = vmatpush1.bf16.msra.mxu0 0
  %1283 = vmatprep.subr.bf16.mxu0 0
  %1284 = vmatpush1.bf16.msra.mxu0 0
  %1285 = vmatprep.subr.bf16.mxu0 0
  %1286 = vmatpush1.bf16.msra.mxu0 0
  %1287 = vmatprep.subr.bf16.mxu0 0
  %1288 = vmatpush1.bf16.msra.mxu0 0
  %1289 = vmatprep.mubr.bf16.mxu0 0
  %1290 = vmatmul.mubr.bf16.gmra.mrb[0].mxu0 %v59
  %v1291 = vpop.f32.mrb[0].mxu0
  %v1292 = vadd.f32 %v1249, %v1291
  %v1293 = vpop.f32.mrb[0].mxu0
  %v1294 = vadd.f32 %v1251, %v1293
  %v1295 = vpop.f32.mrb[0].mxu0
  %v1296 = vadd.f32 %v1253, %v1295
  %v1297 = vpop.f32.mrb[0].mxu0
  %v1298 = vadd.f32 %v1255, %v1297
  %1299 = vdwg.mxu0
  %v1300 = vmax.f32 %v1163, 0.0
  %v1301 = vmax.f32 %v1165, 0.0
  %v1302 = vmax.f32 %v1292, 0.0
  %v1303 = vmax.f32 %v1294, 0.0
  %v1304 = vmax.f32 %v1167, 0.0
  %v1305 = vmax.f32 %v1169, 0.0
  %v1306 = vmax.f32 %v1296, 0.0
  %v1307 = vmax.f32 %v1298, 0.0
  %v1308 = vpack.c.bf16 %v1304, %v1300
  %v1309 = vpack.c.bf16 %v1305, %v1301
  %v1310 = vpack.c.bf16 %v1306, %v1302
  %v1311 = vpack.c.bf16 %v1307, %v1303
  %v1312 = vld [vmem:[%s5] sm:$0xff]
  %v1313 = vld [vmem:[%s5 + $0x8] sm:$0xf]
  %v1314 = vld [vmem:[%s5 + $0xc] sm:$0xff]
  %v1315 = vld [vmem:[%s5 + $0x14] sm:$0xf]
  %v1316 = vld [vmem:[%s5 + $0x18] sm:$0xff]
  %v1317 = vld [vmem:[%s5 + $0x20] sm:$0xf]
  %v1318 = vld [vmem:[%s5 + $0x24] sm:$0xff]
  %v1319 = vld [vmem:[%s5 + $0x2c] sm:$0xf]
  %v1320 = vld [vmem:[%s5 + $0x30] sm:$0xff]
  %v1321 = vld [vmem:[%s5 + $0x38] sm:$0xf]
  %v1322 = vld [vmem:[%s5 + $0x3c] sm:$0xff]
  %v1323 = vld [vmem:[%s5 + $0x44] sm:$0xf]
  %v1324 = vld [vmem:[%s5 + $0x48] sm:$0xff]
  %v1325 = vld [vmem:[%s5 + $0x50] sm:$0xf]
  %v1326 = vld [vmem:[%s5 + $0x54] sm:$0xff]
  %v1327 = vld [vmem:[%s5 + $0x5c] sm:$0xf]
  %v1328 = vld [vmem:[%s5 + $0x60] sm:$0xff]
  %v1329 = vld [vmem:[%s5 + $0x68] sm:$0xf]
  %v1330 = vld [vmem:[%s5 + $0x6c] sm:$0xff]
  %v1331 = vld [vmem:[%s5 + $0x74] sm:$0xf]
  %v1332 = vld [vmem:[%s5 + $0x78] sm:$0xff]
  %v1333 = vld [vmem:[%s5 + $0x80] sm:$0xf]
  %v1334 = vld [vmem:[%s5 + $0x84] sm:$0xff]
  %v1335 = vld [vmem:[%s5 + $0x8c] sm:$0xf]
  %v1336 = vld [vmem:[%s5 + $0x90] sm:$0xff]
  %v1337 = vld [vmem:[%s5 + $0x98] sm:$0xf]
  %v1338 = vld [vmem:[%s5 + $0x9c] sm:$0xff]
  %v1339 = vld [vmem:[%s5 + $0xa4] sm:$0xf]
  %v1340 = vld [vmem:[%s5 + $0xa8] sm:$0xff]
  %v1341 = vld [vmem:[%s5 + $0xb0] sm:$0xf]
  %v1342 = vld [vmem:[%s5 + $0xb4] sm:$0xff]
  %v1343 = vld [vmem:[%s5 + $0xbc] sm:$0xf]
  %v1344 = vld [vmem:[%s5 + $0xc0] sm:$0xff]
  %v1345 = vld [vmem:[%s5 + $0xc8] sm:$0xf]
  %v1346 = vld [vmem:[%s5 + $0xcc] sm:$0xff]
  %v1347 = vld [vmem:[%s5 + $0xd4] sm:$0xf]
  %v1348 = vld [vmem:[%s5 + $0xd8] sm:$0xff]
  %v1349 = vld [vmem:[%s5 + $0xe0] sm:$0xf]
  %v1350 = vld [vmem:[%s5 + $0xe4] sm:$0xff]
  %v1351 = vld [vmem:[%s5 + $0xec] sm:$0xf]
  %v1352 = vld [vmem:[%s5 + $0xf0] sm:$0xff]
  %v1353 = vld [vmem:[%s5 + $0xf8] sm:$0xf]
  %v1354 = vld [vmem:[%s5 + $0xfc] sm:$0xff]
  %v1355 = vld [vmem:[%s5 + $0x104] sm:$0xf]
  %v1356 = vld [vmem:[%s5 + $0x108] sm:$0xff]
  %v1357 = vld [vmem:[%s5 + $0x110] sm:$0xf]
  %v1358 = vld [vmem:[%s5 + $0x114] sm:$0xff]
  %v1359 = vld [vmem:[%s5 + $0x11c] sm:$0xf]
  %v1360 = vld [vmem:[%s5 + $0x120] sm:$0xff]
  %v1361 = vld [vmem:[%s5 + $0x128] sm:$0xf]
  %v1362 = vld [vmem:[%s5 + $0x12c] sm:$0xff]
  %v1363 = vld [vmem:[%s5 + $0x134] sm:$0xf]
  %v1364 = vld [vmem:[%s5 + $0x138] sm:$0xff]
  %v1365 = vld [vmem:[%s5 + $0x140] sm:$0xf]
  %v1366 = vld [vmem:[%s5 + $0x144] sm:$0xff]
  %v1367 = vld [vmem:[%s5 + $0x14c] sm:$0xf]
  %v1368 = vld [vmem:[%s5 + $0x150] sm:$0xff]
  %v1369 = vld [vmem:[%s5 + $0x158] sm:$0xf]
  %v1370 = vld [vmem:[%s5 + $0x15c] sm:$0xff]
  %v1371 = vld [vmem:[%s5 + $0x164] sm:$0xf]
  %v1372 = vld [vmem:[%s5 + $0x168] sm:$0xff]
  %v1373 = vld [vmem:[%s5 + $0x170] sm:$0xf]
  %v1374 = vld [vmem:[%s5 + $0x174] sm:$0xff]
  %v1375 = vld [vmem:[%s5 + $0x17c] sm:$0xf]
  %v1376 = vld [vmem:[%s5 + $0x180] sm:$0xff]
  %v1377 = vld [vmem:[%s5 + $0x188] sm:$0xf]
  %v1378 = vld [vmem:[%s5 + $0x18c] sm:$0xff]
  %v1379 = vld [vmem:[%s5 + $0x194] sm:$0xf]
  %v1380 = vld [vmem:[%s5 + $0x198] sm:$0xff]
  %v1381 = vld [vmem:[%s5 + $0x1a0] sm:$0xf]
  %v1382 = vld [vmem:[%s5 + $0x1a4] sm:$0xff]
  %v1383 = vld [vmem:[%s5 + $0x1ac] sm:$0xf]
  %v1384 = vld [vmem:[%s5 + $0x1b0] sm:$0xff]
  %v1385 = vld [vmem:[%s5 + $0x1b8] sm:$0xf]
  %v1386 = vld [vmem:[%s5 + $0x1bc] sm:$0xff]
  %v1387 = vld [vmem:[%s5 + $0x1c4] sm:$0xf]
  %v1388 = vld [vmem:[%s5 + $0x1c8] sm:$0xff]
  %v1389 = vld [vmem:[%s5 + $0x1d0] sm:$0xf]
  %v1390 = vld [vmem:[%s5 + $0x1d4] sm:$0xff]
  %v1391 = vld [vmem:[%s5 + $0x1dc] sm:$0xf]
  %v1392 = vld [vmem:[%s5 + $0x1e0] sm:$0xff]
  %v1393 = vld [vmem:[%s5 + $0x1e8] sm:$0xf]
  %v1394 = vld [vmem:[%s5 + $0x1ec] sm:$0xff]
  %v1395 = vld [vmem:[%s5 + $0x1f4] sm:$0xf]
  %v1396 = vld [vmem:[%s5 + $0x1f8] sm:$0xff]
  %v1397 = vld [vmem:[%s5 + $0x200] sm:$0xf]
  %v1398 = vld [vmem:[%s5 + $0x204] sm:$0xff]
  %v1399 = vld [vmem:[%s5 + $0x20c] sm:$0xf]
  %v1400 = vld [vmem:[%s5 + $0x210] sm:$0xff]
  %v1401 = vld [vmem:[%s5 + $0x218] sm:$0xf]
  %v1402 = vld [vmem:[%s5 + $0x21c] sm:$0xff]
  %v1403 = vld [vmem:[%s5 + $0x224] sm:$0xf]
  %v1404 = vld [vmem:[%s5 + $0x228] sm:$0xff]
  %v1405 = vld [vmem:[%s5 + $0x230] sm:$0xf]
  %v1406 = vld [vmem:[%s5 + $0x234] sm:$0xff]
  %v1407 = vld [vmem:[%s5 + $0x23c] sm:$0xf]
  %v1408 = vld [vmem:[%s5 + $0x240] sm:$0xff]
  %v1409 = vld [vmem:[%s5 + $0x248] sm:$0xf]
  %v1410 = vld [vmem:[%s5 + $0x24c] sm:$0xff]
  %v1411 = vld [vmem:[%s5 + $0x254] sm:$0xf]
  %v1412 = vld [vmem:[%s5 + $0x258] sm:$0xff]
  %v1413 = vld [vmem:[%s5 + $0x260] sm:$0xf]
  %v1414 = vld [vmem:[%s5 + $0x264] sm:$0xff]
  %v1415 = vld [vmem:[%s5 + $0x26c] sm:$0xf]
  %v1416 = vld [vmem:[%s5 + $0x270] sm:$0xff]
  %v1417 = vld [vmem:[%s5 + $0x278] sm:$0xf]
  %v1418 = vld [vmem:[%s5 + $0x27c] sm:$0xff]
  %v1419 = vld [vmem:[%s5 + $0x284] sm:$0xf]
  %v1420 = vld [vmem:[%s0 + $0x18] sm:$0xff]
  %v1421 = vld [vmem:[%s0 + $0x20] sm:$0xff]
  %v1422 = vld [vmem:[%s0 + $0x28] sm:$0xff]
  %v1423 = vld [vmem:[%s0 + $0x30] sm:$0xff]
  %v1424 = vld [vmem:[%s0 + $0x38] sm:$0xff]
  %v1425 = vld [vmem:[%s0 + $0x40] sm:$0xff]
  %v1426 = vld [vmem:[%s0 + $0x80] sm:$0xff]
  %v1427 = vld [vmem:[%s0 + $0x88] sm:$0xff]
  %v1428 = vld [vmem:[%s0 + $0x90] sm:$0xff]
  %v1429 = vld [vmem:[%s0 + $0x98] sm:$0xff]
  %v1430 = vld [vmem:[%s0 + $0xa0] sm:$0xff]
  %v1431 = vld [vmem:[%s0 + $0xa8] sm:$0xff]
  %v1432 = vpack.c.bf16 %v1426, %v1420
  %v1433 = vpack.c.bf16 %v1427, %v1421
  %v1434 = vpack.c.bf16 %v1428, %v1422
  %v1435 = vpack.c.bf16 %v1429, %v1423
  %v1436 = vpack.c.bf16 %v1430, %v1424
  %v1437 = vpack.c.bf16 %v1431, %v1425
  %v1438 = vld [vmem:[%s2] sm:$0xff]
  %v1439 = vld [vmem:[%s2 + $0x8] sm:$0xff]
  %v1440 = vld [vmem:[%s2 + $0x10] sm:$0xff]
  %v1441 = vld [vmem:[%s2 + $0x18] sm:$0xff]
  %v1442 = vld [vmem:[%s2 + $0x20] sm:$0xff]
  %v1443 = vld [vmem:[%s2 + $0x28] sm:$0xff]
  %v1444 = vld [vmem:[%s2 + $0x30] sm:$0xff]
  %v1445 = vld [vmem:[%s2 + $0x38] sm:$0xff]
  %v1446 = vld [vmem:[%s2 + $0x40] sm:$0xff]
  %v1447 = vld [vmem:[%s2 + $0x48] sm:$0xff]
  %v1448 = vld [vmem:[%s2 + $0x50] sm:$0xff]
  %v1449 = vld [vmem:[%s2 + $0x58] sm:$0xff]
  %v1450 = vld [vmem:[%s2 + $0x60] sm:$0xff]
  %v1451 = vld [vmem:[%s2 + $0x68] sm:$0xff]
  %v1452 = vld [vmem:[%s2 + $0x70] sm:$0xff]
  %v1453 = vld [vmem:[%s2 + $0x78] sm:$0xff]
  %v1454 = vld [vmem:[%s2 + $0x80] sm:$0xff]
  %v1455 = vld [vmem:[%s2 + $0x88] sm:$0xff]
  %v1456 = vld [vmem:[%s2 + $0x90] sm:$0xff]
  %v1457 = vld [vmem:[%s2 + $0x98] sm:$0xff]
  %v1458 = vld [vmem:[%s2 + $0xa0] sm:$0xff]
  %v1459 = vld [vmem:[%s2 + $0xa8] sm:$0xff]
  %v1460 = vld [vmem:[%s2 + $0xb0] sm:$0xff]
  %v1461 = vld [vmem:[%s2 + $0xb8] sm:$0xff]
  %v1462 = vld [vmem:[%s2 + $0xc0] sm:$0xff]
  %v1463 = vld [vmem:[%s2 + $0xc8] sm:$0xff]
  %v1464 = vld [vmem:[%s2 + $0xd0] sm:$0xff]
  %v1465 = vld [vmem:[%s2 + $0xd8] sm:$0xff]
  %v1466 = vld [vmem:[%s2 + $0xe0] sm:$0xff]
  %v1467 = vld [vmem:[%s2 + $0xe8] sm:$0xff]
  %v1468 = vld [vmem:[%s2 + $0xf0] sm:$0xff]
  %v1469 = vld [vmem:[%s2 + $0xf8] sm:$0xff]
  %v1470 = vld [vmem:[%s2 + $0x100] sm:$0xff]
  %v1471 = vld [vmem:[%s2 + $0x108] sm:$0xff]
  %v1472 = vld [vmem:[%s2 + $0x110] sm:$0xff]
  %v1473 = vld [vmem:[%s2 + $0x118] sm:$0xff]
  %v1474 = vld [vmem:[%s2 + $0x120] sm:$0xff]
  %v1475 = vld [vmem:[%s2 + $0x128] sm:$0xff]
  %v1476 = vld [vmem:[%s2 + $0x130] sm:$0xff]
  %v1477 = vld [vmem:[%s2 + $0x138] sm:$0xff]
  %v1478 = vld [vmem:[%s2 + $0x140] sm:$0xff]
  %v1479 = vld [vmem:[%s2 + $0x148] sm:$0xff]
  %v1480 = vld [vmem:[%s2 + $0x150] sm:$0xff]
  %v1481 = vld [vmem:[%s2 + $0x158] sm:$0xff]
  %v1482 = vld [vmem:[%s2 + $0x160] sm:$0xff]
  %v1483 = vld [vmem:[%s2 + $0x168] sm:$0xff]
  %v1484 = vld [vmem:[%s2 + $0x170] sm:$0xff]
  %v1485 = vld [vmem:[%s2 + $0x178] sm:$0xff]
  %v1486 = vld [vmem:[%s2 + $0x180] sm:$0xff]
  %v1487 = vld [vmem:[%s2 + $0x188] sm:$0xff]
  %v1488 = vld [vmem:[%s2 + $0x190] sm:$0xff]
  %v1489 = vld [vmem:[%s2 + $0x198] sm:$0xff]
  %v1490 = vld [vmem:[%s2 + $0x1a0] sm:$0xff]
  %v1491 = vld [vmem:[%s2 + $0x1a8] sm:$0xff]
  %v1492 = vld [vmem:[%s2 + $0x1b0] sm:$0xff]
  %v1493 = vld [vmem:[%s2 + $0x1b8] sm:$0xff]
  %v1494 = vld [vmem:[%s2 + $0x1c0] sm:$0xff]
  %v1495 = vld [vmem:[%s2 + $0x1c8] sm:$0xff]
  %v1496 = vld [vmem:[%s2 + $0x1d0] sm:$0xff]
  %v1497 = vld [vmem:[%s2 + $0x1d8] sm:$0xff]
  %v1498 = vld [vmem:[%s2 + $0x1e0] sm:$0xff]
  %v1499 = vld [vmem:[%s2 + $0x1e8] sm:$0xff]
  %v1500 = vld [vmem:[%s2 + $0x1f0] sm:$0xff]
  %v1501 = vld [vmem:[%s2 + $0x1f8] sm:$0xff]
  %v1502 = vld [vmem:[%s2 + $0x200] sm:$0xff]
  %v1503 = vld [vmem:[%s2 + $0x208] sm:$0xff]
  %v1504 = vld [vmem:[%s2 + $0x210] sm:$0xff]
  %v1505 = vld [vmem:[%s2 + $0x218] sm:$0xff]
  %v1506 = vld [vmem:[%s2 + $0x220] sm:$0xff]
  %v1507 = vld [vmem:[%s2 + $0x228] sm:$0xff]
  %v1508 = vld [vmem:[%s2 + $0x230] sm:$0xff]
  %v1509 = vld [vmem:[%s2 + $0x238] sm:$0xff]
  %v1510 = vld [vmem:[%s2 + $0x240] sm:$0xff]
  %v1511 = vld [vmem:[%s2 + $0x248] sm:$0xff]
  %v1512 = vld [vmem:[%s2 + $0x250] sm:$0xff]
  %v1513 = vld [vmem:[%s2 + $0x258] sm:$0xff]
  %v1514 = vld [vmem:[%s2 + $0x260] sm:$0xff]
  %v1515 = vld [vmem:[%s2 + $0x268] sm:$0xff]
  %v1516 = vld [vmem:[%s2 + $0x270] sm:$0xff]
  %v1517 = vld [vmem:[%s2 + $0x278] sm:$0xff]
  %v1518 = vld [vmem:[%s2 + $0x280] sm:$0xff]
  %v1519 = vld [vmem:[%s2 + $0x288] sm:$0xff]
  %v1520 = vld [vmem:[%s2 + $0x290] sm:$0xff]
  %v1521 = vld [vmem:[%s2 + $0x298] sm:$0xff]
  %v1522 = vld [vmem:[%s2 + $0x2a0] sm:$0xff]
  %v1523 = vld [vmem:[%s2 + $0x2a8] sm:$0xff]
  %v1524 = vld [vmem:[%s2 + $0x2b0] sm:$0xff]
  %v1525 = vld [vmem:[%s2 + $0x2b8] sm:$0xff]
  %v1526 = vld [vmem:[%s2 + $0x2c0] sm:$0xff]
  %v1527 = vld [vmem:[%s2 + $0x2c8] sm:$0xff]
  %v1528 = vld [vmem:[%s2 + $0x2d0] sm:$0xff]
  %v1529 = vld [vmem:[%s2 + $0x2d8] sm:$0xff]
  %v1530 = vld [vmem:[%s2 + $0x2e0] sm:$0xff]
  %v1531 = vld [vmem:[%s2 + $0x2e8] sm:$0xff]
  %v1532 = vld [vmem:[%s2 + $0x2f0] sm:$0xff]
  %v1533 = vld [vmem:[%s2 + $0x2f8] sm:$0xff]
  %v1534 = vld [vmem:[%s2 + $0x300] sm:$0xff]
  %v1535 = vld [vmem:[%s2 + $0x308] sm:$0xff]
  %v1536 = vld [vmem:[%s2 + $0x310] sm:$0xff]
  %v1537 = vld [vmem:[%s2 + $0x318] sm:$0xff]
  %v1538 = vld [vmem:[%s2 + $0x320] sm:$0xff]
  %v1539 = vld [vmem:[%s2 + $0x328] sm:$0xff]
  %v1540 = vld [vmem:[%s2 + $0x330] sm:$0xff]
  %v1541 = vld [vmem:[%s2 + $0x338] sm:$0xff]
  %v1542 = vld [vmem:[%s2 + $0x340] sm:$0xff]
  %v1543 = vld [vmem:[%s2 + $0x348] sm:$0xff]
  %v1544 = vld [vmem:[%s2 + $0x350] sm:$0xff]
  %v1545 = vld [vmem:[%s2 + $0x358] sm:$0xff]
  %v1546 = vld [vmem:[%s2 + $0x360] sm:$0xff]
  %v1547 = vld [vmem:[%s2 + $0x368] sm:$0xff]
  %v1548 = vld [vmem:[%s2 + $0x370] sm:$0xff]
  %v1549 = vld [vmem:[%s2 + $0x378] sm:$0xff]
  %v1550 = vld [vmem:[%s2 + $0x380] sm:$0xff]
  %v1551 = vld [vmem:[%s2 + $0x388] sm:$0xff]
  %v1552 = vld [vmem:[%s2 + $0x390] sm:$0xff]
  %v1553 = vld [vmem:[%s2 + $0x398] sm:$0xff]
  %v1554 = vld [vmem:[%s2 + $0x3a0] sm:$0xff]
  %v1555 = vld [vmem:[%s2 + $0x3a8] sm:$0xff]
  %v1556 = vld [vmem:[%s2 + $0x3b0] sm:$0xff]
  %v1557 = vld [vmem:[%s2 + $0x3b8] sm:$0xff]
  %v1558 = vld [vmem:[%s2 + $0x3c0] sm:$0xff]
  %v1559 = vld [vmem:[%s2 + $0x3c8] sm:$0xff]
  %v1560 = vld [vmem:[%s2 + $0x3d0] sm:$0xff]
  %v1561 = vld [vmem:[%s2 + $0x3d8] sm:$0xff]
  %v1562 = vld [vmem:[%s2 + $0x3e0] sm:$0xff]
  %v1563 = vld [vmem:[%s2 + $0x3e8] sm:$0xff]
  %v1564 = vld [vmem:[%s2 + $0x3f0] sm:$0xff]
  %v1565 = vld [vmem:[%s2 + $0x3f8] sm:$0xff]
  %v1566 = vld [vmem:[%s2 + $0x400] sm:$0xff]
  %v1567 = vld [vmem:[%s2 + $0x408] sm:$0xff]
  %v1568 = vld [vmem:[%s2 + $0x410] sm:$0xff]
  %v1569 = vld [vmem:[%s2 + $0x418] sm:$0xff]
  %v1570 = vld [vmem:[%s2 + $0x420] sm:$0xff]
  %v1571 = vld [vmem:[%s2 + $0x428] sm:$0xff]
  %v1572 = vld [vmem:[%s2 + $0x430] sm:$0xff]
  %v1573 = vld [vmem:[%s2 + $0x438] sm:$0xff]
  %v1574 = vld [vmem:[%s2 + $0x440] sm:$0xff]
  %v1575 = vld [vmem:[%s2 + $0x448] sm:$0xff]
  %v1576 = vld [vmem:[%s2 + $0x450] sm:$0xff]
  %v1577 = vld [vmem:[%s2 + $0x458] sm:$0xff]
  %v1578 = vld [vmem:[%s2 + $0x460] sm:$0xff]
  %v1579 = vld [vmem:[%s2 + $0x468] sm:$0xff]
  %v1580 = vld [vmem:[%s2 + $0x470] sm:$0xff]
  %v1581 = vld [vmem:[%s2 + $0x478] sm:$0xff]
  %v1582 = vld [vmem:[%s2 + $0x480] sm:$0xff]
  %v1583 = vld [vmem:[%s2 + $0x488] sm:$0xff]
  %v1584 = vld [vmem:[%s2 + $0x490] sm:$0xff]
  %v1585 = vld [vmem:[%s2 + $0x498] sm:$0xff]
  %v1586 = vld [vmem:[%s2 + $0x4a0] sm:$0xff]
  %v1587 = vld [vmem:[%s2 + $0x4a8] sm:$0xff]
  %v1588 = vld [vmem:[%s2 + $0x4b0] sm:$0xff]
  %v1589 = vld [vmem:[%s2 + $0x4b8] sm:$0xff]
  %v1590 = vld [vmem:[%s2 + $0x4c0] sm:$0xff]
  %v1591 = vld [vmem:[%s2 + $0x4c8] sm:$0xff]
  %v1592 = vld [vmem:[%s2 + $0x4d0] sm:$0xff]
  %v1593 = vld [vmem:[%s2 + $0x4d8] sm:$0xff]
  %v1594 = vld [vmem:[%s2 + $0x4e0] sm:$0xff]
  %v1595 = vld [vmem:[%s2 + $0x4e8] sm:$0xff]
  %v1596 = vld [vmem:[%s2 + $0x4f0] sm:$0xff]
  %v1597 = vld [vmem:[%s2 + $0x4f8] sm:$0xff]
  %v1598 = vld [vmem:[%s2 + $0x500] sm:$0xff]
  %v1599 = vld [vmem:[%s2 + $0x508] sm:$0xff]
  %v1600 = vld [vmem:[%s2 + $0x510] sm:$0xff]
  %v1601 = vld [vmem:[%s2 + $0x518] sm:$0xff]
  %v1602 = vld [vmem:[%s2 + $0x520] sm:$0xff]
  %v1603 = vld [vmem:[%s2 + $0x528] sm:$0xff]
  %v1604 = vld [vmem:[%s2 + $0x530] sm:$0xff]
  %v1605 = vld [vmem:[%s2 + $0x538] sm:$0xff]
  %v1606 = vld [vmem:[%s2 + $0x540] sm:$0xff]
  %v1607 = vld [vmem:[%s2 + $0x548] sm:$0xff]
  %v1608 = vld [vmem:[%s2 + $0x550] sm:$0xff]
  %v1609 = vld [vmem:[%s2 + $0x558] sm:$0xff]
  %v1610 = vld [vmem:[%s2 + $0x560] sm:$0xff]
  %v1611 = vld [vmem:[%s2 + $0x568] sm:$0xff]
  %v1612 = vld [vmem:[%s2 + $0x570] sm:$0xff]
  %v1613 = vld [vmem:[%s2 + $0x578] sm:$0xff]
  %v1614 = vld [vmem:[%s2 + $0x580] sm:$0xff]
  %v1615 = vld [vmem:[%s2 + $0x588] sm:$0xff]
  %v1616 = vld [vmem:[%s2 + $0x590] sm:$0xff]
  %v1617 = vld [vmem:[%s2 + $0x598] sm:$0xff]
  %v1618 = vld [vmem:[%s2 + $0x5a0] sm:$0xff]
  %v1619 = vld [vmem:[%s2 + $0x5a8] sm:$0xff]
  %v1620 = vld [vmem:[%s2 + $0x5b0] sm:$0xff]
  %v1621 = vld [vmem:[%s2 + $0x5b8] sm:$0xff]
  %v1622 = vld [vmem:[%s2 + $0x5c0] sm:$0xff]
  %v1623 = vld [vmem:[%s2 + $0x5c8] sm:$0xff]
  %v1624 = vld [vmem:[%s2 + $0x5d0] sm:$0xff]
  %v1625 = vld [vmem:[%s2 + $0x5d8] sm:$0xff]
  %v1626 = vld [vmem:[%s2 + $0x5e0] sm:$0xff]
  %v1627 = vld [vmem:[%s2 + $0x5e8] sm:$0xff]
  %v1628 = vld [vmem:[%s2 + $0x5f0] sm:$0xff]
  %v1629 = vld [vmem:[%s2 + $0x5f8] sm:$0xff]
  %v1822 = vunpack.c.l.b16 %v1438
  %v1823 = vunpack.c.h.b16 %v1438
  %v1824 = vunpack.c.l.b16 %v1439
  %v1825 = vunpack.c.h.b16 %v1439
  %v1826 = vunpack.c.l.b16 %v1440
  %v1827 = vunpack.c.h.b16 %v1440
  %v1828 = vunpack.c.l.b16 %v1441
  %v1829 = vunpack.c.h.b16 %v1441
  %v1830 = vunpack.c.l.b16 %v1442
  %v1831 = vunpack.c.h.b16 %v1442
  %v1832 = vunpack.c.l.b16 %v1443
  %v1833 = vunpack.c.h.b16 %v1443
  %v1834 = vunpack.c.l.b16 %v1444
  %v1835 = vunpack.c.h.b16 %v1444
  %v1836 = vunpack.c.l.b16 %v1445
  %v1837 = vunpack.c.h.b16 %v1445
  %v1838 = vunpack.c.l.b16 %v1446
  %v1839 = vunpack.c.h.b16 %v1446
  %v1840 = vunpack.c.l.b16 %v1447
  %v1841 = vunpack.c.h.b16 %v1447
  %v1842 = vunpack.c.l.b16 %v1448
  %v1843 = vunpack.c.h.b16 %v1448
  %v1844 = vunpack.c.l.b16 %v1449
  %v1845 = vunpack.c.h.b16 %v1449
  %v1846 = vunpack.c.l.b16 %v1450
  %v1847 = vunpack.c.h.b16 %v1450
  %v1848 = vunpack.c.l.b16 %v1451
  %v1849 = vunpack.c.h.b16 %v1451
  %v1850 = vunpack.c.l.b16 %v1452
  %v1851 = vunpack.c.h.b16 %v1452
  %v1852 = vunpack.c.l.b16 %v1453
  %v1853 = vunpack.c.h.b16 %v1453
  %v1854 = vunpack.c.l.b16 %v1454
  %v1855 = vunpack.c.h.b16 %v1454
  %v1856 = vunpack.c.l.b16 %v1455
  %v1857 = vunpack.c.h.b16 %v1455
  %v1858 = vunpack.c.l.b16 %v1456
  %v1859 = vunpack.c.h.b16 %v1456
  %v1860 = vunpack.c.l.b16 %v1457
  %v1861 = vunpack.c.h.b16 %v1457
  %v1862 = vunpack.c.l.b16 %v1458
  %v1863 = vunpack.c.h.b16 %v1458
  %v1864 = vunpack.c.l.b16 %v1459
  %v1865 = vunpack.c.h.b16 %v1459
  %v1866 = vunpack.c.l.b16 %v1460
  %v1867 = vunpack.c.h.b16 %v1460
  %v1868 = vunpack.c.l.b16 %v1461
  %v1869 = vunpack.c.h.b16 %v1461
  %v1870 = vunpack.c.l.b16 %v1462
  %v1871 = vunpack.c.h.b16 %v1462
  %v1872 = vunpack.c.l.b16 %v1463
  %v1873 = vunpack.c.h.b16 %v1463
  %v1874 = vunpack.c.l.b16 %v1464
  %v1875 = vunpack.c.h.b16 %v1464
  %v1876 = vunpack.c.l.b16 %v1465
  %v1877 = vunpack.c.h.b16 %v1465
  %v1878 = vunpack.c.l.b16 %v1466
  %v1879 = vunpack.c.h.b16 %v1466
  %v1880 = vunpack.c.l.b16 %v1467
  %v1881 = vunpack.c.h.b16 %v1467
  %v1882 = vunpack.c.l.b16 %v1468
  %v1883 = vunpack.c.h.b16 %v1468
  %v1884 = vunpack.c.l.b16 %v1469
  %v1885 = vunpack.c.h.b16 %v1469
  %v1886 = vunpack.c.l.b16 %v1470
  %v1887 = vunpack.c.h.b16 %v1470
  %v1888 = vunpack.c.l.b16 %v1471
  %v1889 = vunpack.c.h.b16 %v1471
  %v1890 = vunpack.c.l.b16 %v1472
  %v1891 = vunpack.c.h.b16 %v1472
  %v1892 = vunpack.c.l.b16 %v1473
  %v1893 = vunpack.c.h.b16 %v1473
  %v1894 = vunpack.c.l.b16 %v1474
  %v1895 = vunpack.c.h.b16 %v1474
  %v1896 = vunpack.c.l.b16 %v1475
  %v1897 = vunpack.c.h.b16 %v1475
  %v1898 = vunpack.c.l.b16 %v1476
  %v1899 = vunpack.c.h.b16 %v1476
  %v1900 = vunpack.c.l.b16 %v1477
  %v1901 = vunpack.c.h.b16 %v1477
  %v1902 = vunpack.c.l.b16 %v1478
  %v1903 = vunpack.c.h.b16 %v1478
  %v1904 = vunpack.c.l.b16 %v1479
  %v1905 = vunpack.c.h.b16 %v1479
  %v1906 = vunpack.c.l.b16 %v1480
  %v1907 = vunpack.c.h.b16 %v1480
  %v1908 = vunpack.c.l.b16 %v1481
  %v1909 = vunpack.c.h.b16 %v1481
  %v1910 = vunpack.c.l.b16 %v1482
  %v1911 = vunpack.c.h.b16 %v1482
  %v1912 = vunpack.c.l.b16 %v1483
  %v1913 = vunpack.c.h.b16 %v1483
  %v1914 = vunpack.c.l.b16 %v1484
  %v1915 = vunpack.c.h.b16 %v1484
  %v1916 = vunpack.c.l.b16 %v1485
  %v1917 = vunpack.c.h.b16 %v1485
  %v1918 = vunpack.c.l.b16 %v1486
  %v1919 = vunpack.c.h.b16 %v1486
  %v1920 = vunpack.c.l.b16 %v1487
  %v1921 = vunpack.c.h.b16 %v1487
  %v1922 = vunpack.c.l.b16 %v1488
  %v1923 = vunpack.c.h.b16 %v1488
  %v1924 = vunpack.c.l.b16 %v1489
  %v1925 = vunpack.c.h.b16 %v1489
  %v1926 = vunpack.c.l.b16 %v1490
  %v1927 = vunpack.c.h.b16 %v1490
  %v1928 = vunpack.c.l.b16 %v1491
  %v1929 = vunpack.c.h.b16 %v1491
  %v1930 = vunpack.c.l.b16 %v1492
  %v1931 = vunpack.c.h.b16 %v1492
  %v1932 = vunpack.c.l.b16 %v1493
  %v1933 = vunpack.c.h.b16 %v1493
  %v1934 = vunpack.c.l.b16 %v1494
  %v1935 = vunpack.c.h.b16 %v1494
  %v1936 = vunpack.c.l.b16 %v1495
  %v1937 = vunpack.c.h.b16 %v1495
  %v1938 = vunpack.c.l.b16 %v1496
  %v1939 = vunpack.c.h.b16 %v1496
  %v1940 = vunpack.c.l.b16 %v1497
  %v1941 = vunpack.c.h.b16 %v1497
  %v1942 = vunpack.c.l.b16 %v1498
  %v1943 = vunpack.c.h.b16 %v1498
  %v1944 = vunpack.c.l.b16 %v1499
  %v1945 = vunpack.c.h.b16 %v1499
  %v1946 = vunpack.c.l.b16 %v1500
  %v1947 = vunpack.c.h.b16 %v1500
  %v1948 = vunpack.c.l.b16 %v1501
  %v1949 = vunpack.c.h.b16 %v1501
  %v1950 = vunpack.c.l.b16 %v1502
  %v1951 = vunpack.c.h.b16 %v1502
  %v1952 = vunpack.c.l.b16 %v1503
  %v1953 = vunpack.c.h.b16 %v1503
  %v1954 = vunpack.c.l.b16 %v1504
  %v1955 = vunpack.c.h.b16 %v1504
  %v1956 = vunpack.c.l.b16 %v1505
  %v1957 = vunpack.c.h.b16 %v1505
  %v1958 = vunpack.c.l.b16 %v1506
  %v1959 = vunpack.c.h.b16 %v1506
  %v1960 = vunpack.c.l.b16 %v1507
  %v1961 = vunpack.c.h.b16 %v1507
  %v1962 = vunpack.c.l.b16 %v1508
  %v1963 = vunpack.c.h.b16 %v1508
  %v1964 = vunpack.c.l.b16 %v1509
  %v1965 = vunpack.c.h.b16 %v1509
  %v1966 = vunpack.c.l.b16 %v1510
  %v1967 = vunpack.c.h.b16 %v1510
  %v1968 = vunpack.c.l.b16 %v1511
  %v1969 = vunpack.c.h.b16 %v1511
  %v1970 = vunpack.c.l.b16 %v1512
  %v1971 = vunpack.c.h.b16 %v1512
  %v1972 = vunpack.c.l.b16 %v1513
  %v1973 = vunpack.c.h.b16 %v1513
  %v1974 = vunpack.c.l.b16 %v1514
  %v1975 = vunpack.c.h.b16 %v1514
  %v1976 = vunpack.c.l.b16 %v1515
  %v1977 = vunpack.c.h.b16 %v1515
  %v1978 = vunpack.c.l.b16 %v1516
  %v1979 = vunpack.c.h.b16 %v1516
  %v1980 = vunpack.c.l.b16 %v1517
  %v1981 = vunpack.c.h.b16 %v1517
  %v1982 = vunpack.c.l.b16 %v1518
  %v1983 = vunpack.c.h.b16 %v1518
  %v1984 = vunpack.c.l.b16 %v1519
  %v1985 = vunpack.c.h.b16 %v1519
  %v1986 = vunpack.c.l.b16 %v1520
  %v1987 = vunpack.c.h.b16 %v1520
  %v1988 = vunpack.c.l.b16 %v1521
  %v1989 = vunpack.c.h.b16 %v1521
  %v1990 = vunpack.c.l.b16 %v1522
  %v1991 = vunpack.c.h.b16 %v1522
  %v1992 = vunpack.c.l.b16 %v1523
  %v1993 = vunpack.c.h.b16 %v1523
  %v1994 = vunpack.c.l.b16 %v1524
  %v1995 = vunpack.c.h.b16 %v1524
  %v1996 = vunpack.c.l.b16 %v1525
  %v1997 = vunpack.c.h.b16 %v1525
  %v1998 = vunpack.c.l.b16 %v1526
  %v1999 = vunpack.c.h.b16 %v1526
  %v2000 = vunpack.c.l.b16 %v1527
  %v2001 = vunpack.c.h.b16 %v1527
  %v2002 = vunpack.c.l.b16 %v1528
  %v2003 = vunpack.c.h.b16 %v1528
  %v2004 = vunpack.c.l.b16 %v1529
  %v2005 = vunpack.c.h.b16 %v1529
  %v2006 = vunpack.c.l.b16 %v1530
  %v2007 = vunpack.c.h.b16 %v1530
  %v2008 = vunpack.c.l.b16 %v1531
  %v2009 = vunpack.c.h.b16 %v1531
  %v2010 = vunpack.c.l.b16 %v1532
  %v2011 = vunpack.c.h.b16 %v1532
  %v2012 = vunpack.c.l.b16 %v1533
  %v2013 = vunpack.c.h.b16 %v1533
  %v2014 = vunpack.c.l.b16 %v1534
  %v2015 = vunpack.c.h.b16 %v1534
  %v2016 = vunpack.c.l.b16 %v1535
  %v2017 = vunpack.c.h.b16 %v1535
  %v2018 = vunpack.c.l.b16 %v1536
  %v2019 = vunpack.c.h.b16 %v1536
  %v2020 = vunpack.c.l.b16 %v1537
  %v2021 = vunpack.c.h.b16 %v1537
  %v2022 = vunpack.c.l.b16 %v1538
  %v2023 = vunpack.c.h.b16 %v1538
  %v2024 = vunpack.c.l.b16 %v1539
  %v2025 = vunpack.c.h.b16 %v1539
  %v2026 = vunpack.c.l.b16 %v1540
  %v2027 = vunpack.c.h.b16 %v1540
  %v2028 = vunpack.c.l.b16 %v1541
  %v2029 = vunpack.c.h.b16 %v1541
  %v2030 = vunpack.c.l.b16 %v1542
  %v2031 = vunpack.c.h.b16 %v1542
  %v2032 = vunpack.c.l.b16 %v1543
  %v2033 = vunpack.c.h.b16 %v1543
  %v2034 = vunpack.c.l.b16 %v1544
  %v2035 = vunpack.c.h.b16 %v1544
  %v2036 = vunpack.c.l.b16 %v1545
  %v2037 = vunpack.c.h.b16 %v1545
  %v2038 = vunpack.c.l.b16 %v1546
  %v2039 = vunpack.c.h.b16 %v1546
  %v2040 = vunpack.c.l.b16 %v1547
  %v2041 = vunpack.c.h.b16 %v1547
  %v2042 = vunpack.c.l.b16 %v1548
  %v2043 = vunpack.c.h.b16 %v1548
  %v2044 = vunpack.c.l.b16 %v1549
  %v2045 = vunpack.c.h.b16 %v1549
  %v2046 = vunpack.c.l.b16 %v1550
  %v2047 = vunpack.c.h.b16 %v1550
  %v2048 = vunpack.c.l.b16 %v1551
  %v2049 = vunpack.c.h.b16 %v1551
  %v2050 = vunpack.c.l.b16 %v1552
  %v2051 = vunpack.c.h.b16 %v1552
  %v2052 = vunpack.c.l.b16 %v1553
  %v2053 = vunpack.c.h.b16 %v1553
  %v2054 = vunpack.c.l.b16 %v1554
  %v2055 = vunpack.c.h.b16 %v1554
  %v2056 = vunpack.c.l.b16 %v1555
  %v2057 = vunpack.c.h.b16 %v1555
  %v2058 = vunpack.c.l.b16 %v1556
  %v2059 = vunpack.c.h.b16 %v1556
  %v2060 = vunpack.c.l.b16 %v1557
  %v2061 = vunpack.c.h.b16 %v1557
  %v2062 = vunpack.c.l.b16 %v1558
  %v2063 = vunpack.c.h.b16 %v1558
  %v2064 = vunpack.c.l.b16 %v1559
  %v2065 = vunpack.c.h.b16 %v1559
  %v2066 = vunpack.c.l.b16 %v1560
  %v2067 = vunpack.c.h.b16 %v1560
  %v2068 = vunpack.c.l.b16 %v1561
  %v2069 = vunpack.c.h.b16 %v1561
  %v2070 = vunpack.c.l.b16 %v1562
  %v2071 = vunpack.c.h.b16 %v1562
  %v2072 = vunpack.c.l.b16 %v1563
  %v2073 = vunpack.c.h.b16 %v1563
  %v2074 = vunpack.c.l.b16 %v1564
  %v2075 = vunpack.c.h.b16 %v1564
  %v2076 = vunpack.c.l.b16 %v1565
  %v2077 = vunpack.c.h.b16 %v1565
  %v2078 = vunpack.c.l.b16 %v1566
  %v2079 = vunpack.c.h.b16 %v1566
  %v2080 = vunpack.c.l.b16 %v1567
  %v2081 = vunpack.c.h.b16 %v1567
  %v2082 = vunpack.c.l.b16 %v1568
  %v2083 = vunpack.c.h.b16 %v1568
  %v2084 = vunpack.c.l.b16 %v1569
  %v2085 = vunpack.c.h.b16 %v1569
  %v2086 = vunpack.c.l.b16 %v1570
  %v2087 = vunpack.c.h.b16 %v1570
  %v2088 = vunpack.c.l.b16 %v1571
  %v2089 = vunpack.c.h.b16 %v1571
  %v2090 = vunpack.c.l.b16 %v1572
  %v2091 = vunpack.c.h.b16 %v1572
  %v2092 = vunpack.c.l.b16 %v1573
  %v2093 = vunpack.c.h.b16 %v1573
  %v2094 = vunpack.c.l.b16 %v1574
  %v2095 = vunpack.c.h.b16 %v1574
  %v2096 = vunpack.c.l.b16 %v1575
  %v2097 = vunpack.c.h.b16 %v1575
  %v2098 = vunpack.c.l.b16 %v1576
  %v2099 = vunpack.c.h.b16 %v1576
  %v2100 = vunpack.c.l.b16 %v1577
  %v2101 = vunpack.c.h.b16 %v1577
  %v2102 = vunpack.c.l.b16 %v1578
  %v2103 = vunpack.c.h.b16 %v1578
  %v2104 = vunpack.c.l.b16 %v1579
  %v2105 = vunpack.c.h.b16 %v1579
  %v2106 = vunpack.c.l.b16 %v1580
  %v2107 = vunpack.c.h.b16 %v1580
  %v2108 = vunpack.c.l.b16 %v1581
  %v2109 = vunpack.c.h.b16 %v1581
  %v2110 = vunpack.c.l.b16 %v1582
  %v2111 = vunpack.c.h.b16 %v1582
  %v2112 = vunpack.c.l.b16 %v1583
  %v2113 = vunpack.c.h.b16 %v1583
  %v2114 = vunpack.c.l.b16 %v1584
  %v2115 = vunpack.c.h.b16 %v1584
  %v2116 = vunpack.c.l.b16 %v1585
  %v2117 = vunpack.c.h.b16 %v1585
  %v2118 = vunpack.c.l.b16 %v1586
  %v2119 = vunpack.c.h.b16 %v1586
  %v2120 = vunpack.c.l.b16 %v1587
  %v2121 = vunpack.c.h.b16 %v1587
  %v2122 = vunpack.c.l.b16 %v1588
  %v2123 = vunpack.c.h.b16 %v1588
  %v2124 = vunpack.c.l.b16 %v1589
  %v2125 = vunpack.c.h.b16 %v1589
  %v2126 = vunpack.c.l.b16 %v1590
  %v2127 = vunpack.c.h.b16 %v1590
  %v2128 = vunpack.c.l.b16 %v1591
  %v2129 = vunpack.c.h.b16 %v1591
  %v2130 = vunpack.c.l.b16 %v1592
  %v2131 = vunpack.c.h.b16 %v1592
  %v2132 = vunpack.c.l.b16 %v1593
  %v2133 = vunpack.c.h.b16 %v1593
  %v2134 = vunpack.c.l.b16 %v1594
  %v2135 = vunpack.c.h.b16 %v1594
  %v2136 = vunpack.c.l.b16 %v1595
  %v2137 = vunpack.c.h.b16 %v1595
  %v2138 = vunpack.c.l.b16 %v1596
  %v2139 = vunpack.c.h.b16 %v1596
  %v2140 = vunpack.c.l.b16 %v1597
  %v2141 = vunpack.c.h.b16 %v1597
  %v2142 = vunpack.c.l.b16 %v1598
  %v2143 = vunpack.c.h.b16 %v1598
  %v2144 = vunpack.c.l.b16 %v1599
  %v2145 = vunpack.c.h.b16 %v1599
  %v2146 = vunpack.c.l.b16 %v1600
  %v2147 = vunpack.c.h.b16 %v1600
  %v2148 = vunpack.c.l.b16 %v1601
  %v2149 = vunpack.c.h.b16 %v1601
  %v2150 = vunpack.c.l.b16 %v1602
  %v2151 = vunpack.c.h.b16 %v1602
  %v2152 = vunpack.c.l.b16 %v1603
  %v2153 = vunpack.c.h.b16 %v1603
  %v2154 = vunpack.c.l.b16 %v1604
  %v2155 = vunpack.c.h.b16 %v1604
  %v2156 = vunpack.c.l.b16 %v1605
  %v2157 = vunpack.c.h.b16 %v1605
  %v2158 = vunpack.c.l.b16 %v1606
  %v2159 = vunpack.c.h.b16 %v1606
  %v2160 = vunpack.c.l.b16 %v1607
  %v2161 = vunpack.c.h.b16 %v1607
  %v2162 = vunpack.c.l.b16 %v1608
  %v2163 = vunpack.c.h.b16 %v1608
  %v2164 = vunpack.c.l.b16 %v1609
  %v2165 = vunpack.c.h.b16 %v1609
  %v2166 = vunpack.c.l.b16 %v1610
  %v2167 = vunpack.c.h.b16 %v1610
  %v2168 = vunpack.c.l.b16 %v1611
  %v2169 = vunpack.c.h.b16 %v1611
  %v2170 = vunpack.c.l.b16 %v1612
  %v2171 = vunpack.c.h.b16 %v1612
  %v2172 = vunpack.c.l.b16 %v1613
  %v2173 = vunpack.c.h.b16 %v1613
  %v2174 = vunpack.c.l.b16 %v1614
  %v2175 = vunpack.c.h.b16 %v1614
  %v2176 = vunpack.c.l.b16 %v1615
  %v2177 = vunpack.c.h.b16 %v1615
  %v2178 = vunpack.c.l.b16 %v1616
  %v2179 = vunpack.c.h.b16 %v1616
  %v2180 = vunpack.c.l.b16 %v1617
  %v2181 = vunpack.c.h.b16 %v1617
  %v2182 = vunpack.c.l.b16 %v1618
  %v2183 = vunpack.c.h.b16 %v1618
  %v2184 = vunpack.c.l.b16 %v1619
  %v2185 = vunpack.c.h.b16 %v1619
  %v2186 = vunpack.c.l.b16 %v1620
  %v2187 = vunpack.c.h.b16 %v1620
  %v2188 = vunpack.c.l.b16 %v1621
  %v2189 = vunpack.c.h.b16 %v1621
  %v2190 = vunpack.c.l.b16 %v1622
  %v2191 = vunpack.c.h.b16 %v1622
  %v2192 = vunpack.c.l.b16 %v1623
  %v2193 = vunpack.c.h.b16 %v1623
  %v2194 = vunpack.c.l.b16 %v1624
  %v2195 = vunpack.c.h.b16 %v1624
  %v2196 = vunpack.c.l.b16 %v1625
  %v2197 = vunpack.c.h.b16 %v1625
  %v2198 = vunpack.c.l.b16 %v1626
  %v2199 = vunpack.c.h.b16 %v1626
  %v2200 = vunpack.c.l.b16 %v1627
  %v2201 = vunpack.c.h.b16 %v1627
  %v2202 = vunpack.c.l.b16 %v1628
  %v2203 = vunpack.c.h.b16 %v1628
  %v2204 = vunpack.c.l.b16 %v1629
  %v2205 = vunpack.c.h.b16 %v1629
  %v2206 = vpack.c.b16 %v1826, %v1822
  %v2207 = vpack.c.b16 %v1827, %v1823
  %v2208 = vpack.c.b16 %v1828, %v1824
  %v2209 = vpack.c.b16 %v1829, %v1825
  %v2210 = vpack.c.b16 %v1834, %v1830
  %v2211 = vpack.c.b16 %v1835, %v1831
  %v2212 = vpack.c.b16 %v1836, %v1832
  %v2213 = vpack.c.b16 %v1837, %v1833
  %v2214 = vpack.c.b16 %v1842, %v1838
  %v2215 = vpack.c.b16 %v1843, %v1839
  %v2216 = vpack.c.b16 %v1844, %v1840
  %v2217 = vpack.c.b16 %v1845, %v1841
  %v2218 = vpack.c.b16 %v1850, %v1846
  %v2219 = vpack.c.b16 %v1851, %v1847
  %v2220 = vpack.c.b16 %v1852, %v1848
  %v2221 = vpack.c.b16 %v1853, %v1849
  %v2222 = vpack.c.b16 %v1858, %v1854
  %v2223 = vpack.c.b16 %v1859, %v1855
  %v2224 = vpack.c.b16 %v1860, %v1856
  %v2225 = vpack.c.b16 %v1861, %v1857
  %v2226 = vpack.c.b16 %v1866, %v1862
  %v2227 = vpack.c.b16 %v1867, %v1863
  %v2228 = vpack.c.b16 %v1868, %v1864
  %v2229 = vpack.c.b16 %v1869, %v1865
  %v2230 = vpack.c.b16 %v1874, %v1870
  %v2231 = vpack.c.b16 %v1875, %v1871
  %v2232 = vpack.c.b16 %v1876, %v1872
  %v2233 = vpack.c.b16 %v1877, %v1873
  %v2234 = vpack.c.b16 %v1882, %v1878
  %v2235 = vpack.c.b16 %v1883, %v1879
  %v2236 = vpack.c.b16 %v1884, %v1880
  %v2237 = vpack.c.b16 %v1885, %v1881
  %v2238 = vpack.c.b16 %v1890, %v1886
  %v2239 = vpack.c.b16 %v1891, %v1887
  %v2240 = vpack.c.b16 %v1892, %v1888
  %v2241 = vpack.c.b16 %v1893, %v1889
  %v2242 = vpack.c.b16 %v1898, %v1894
  %v2243 = vpack.c.b16 %v1899, %v1895
  %v2244 = vpack.c.b16 %v1900, %v1896
  %v2245 = vpack.c.b16 %v1901, %v1897
  %v2246 = vpack.c.b16 %v1906, %v1902
  %v2247 = vpack.c.b16 %v1907, %v1903
  %v2248 = vpack.c.b16 %v1908, %v1904
  %v2249 = vpack.c.b16 %v1909, %v1905
  %v2250 = vpack.c.b16 %v1914, %v1910
  %v2251 = vpack.c.b16 %v1915, %v1911
  %v2252 = vpack.c.b16 %v1916, %v1912
  %v2253 = vpack.c.b16 %v1917, %v1913
  %v2254 = vpack.c.b16 %v1922, %v1918
  %v2255 = vpack.c.b16 %v1923, %v1919
  %v2256 = vpack.c.b16 %v1924, %v1920
  %v2257 = vpack.c.b16 %v1925, %v1921
  %v2258 = vpack.c.b16 %v1930, %v1926
  %v2259 = vpack.c.b16 %v1931, %v1927
  %v2260 = vpack.c.b16 %v1932, %v1928
  %v2261 = vpack.c.b16 %v1933, %v1929
  %v2262 = vpack.c.b16 %v1938, %v1934
  %v2263 = vpack.c.b16 %v1939, %v1935
  %v2264 = vpack.c.b16 %v1940, %v1936
  %v2265 = vpack.c.b16 %v1941, %v1937
  %v2266 = vpack.c.b16 %v1946, %v1942
  %v2267 = vpack.c.b16 %v1947, %v1943
  %v2268 = vpack.c.b16 %v1948, %v1944
  %v2269 = vpack.c.b16 %v1949, %v1945
  %v2270 = vpack.c.b16 %v1954, %v1950
  %v2271 = vpack.c.b16 %v1955, %v1951
  %v2272 = vpack.c.b16 %v1956, %v1952
  %v2273 = vpack.c.b16 %v1957, %v1953
  %v2274 = vpack.c.b16 %v1962, %v1958
  %v2275 = vpack.c.b16 %v1963, %v1959
  %v2276 = vpack.c.b16 %v1964, %v1960
  %v2277 = vpack.c.b16 %v1965, %v1961
  %v2278 = vpack.c.b16 %v1970, %v1966
  %v2279 = vpack.c.b16 %v1971, %v1967
  %v2280 = vpack.c.b16 %v1972, %v1968
  %v2281 = vpack.c.b16 %v1973, %v1969
  %v2282 = vpack.c.b16 %v1978, %v1974
  %v2283 = vpack.c.b16 %v1979, %v1975
  %v2284 = vpack.c.b16 %v1980, %v1976
  %v2285 = vpack.c.b16 %v1981, %v1977
  %v2286 = vpack.c.b16 %v1986, %v1982
  %v2287 = vpack.c.b16 %v1987, %v1983
  %v2288 = vpack.c.b16 %v1988, %v1984
  %v2289 = vpack.c.b16 %v1989, %v1985
  %v2290 = vpack.c.b16 %v1994, %v1990
  %v2291 = vpack.c.b16 %v1995, %v1991
  %v2292 = vpack.c.b16 %v1996, %v1992
  %v2293 = vpack.c.b16 %v1997, %v1993
  %v2294 = vpack.c.b16 %v2002, %v1998
  %v2295 = vpack.c.b16 %v2003, %v1999
  %v2296 = vpack.c.b16 %v2004, %v2000
  %v2297 = vpack.c.b16 %v2005, %v2001
  %v2298 = vpack.c.b16 %v2010, %v2006
  %v2299 = vpack.c.b16 %v2011, %v2007
  %v2300 = vpack.c.b16 %v2012, %v2008
  %v2301 = vpack.c.b16 %v2013, %v2009
  %v2302 = vpack.c.b16 %v2018, %v2014
  %v2303 = vpack.c.b16 %v2019, %v2015
  %v2304 = vpack.c.b16 %v2020, %v2016
  %v2305 = vpack.c.b16 %v2021, %v2017
  %v2306 = vpack.c.b16 %v2026, %v2022
  %v2307 = vpack.c.b16 %v2027, %v2023
  %v2308 = vpack.c.b16 %v2028, %v2024
  %v2309 = vpack.c.b16 %v2029, %v2025
  %v2310 = vpack.c.b16 %v2034, %v2030
  %v2311 = vpack.c.b16 %v2035, %v2031
  %v2312 = vpack.c.b16 %v2036, %v2032
  %v2313 = vpack.c.b16 %v2037, %v2033
  %v2314 = vpack.c.b16 %v2042, %v2038
  %v2315 = vpack.c.b16 %v2043, %v2039
  %v2316 = vpack.c.b16 %v2044, %v2040
  %v2317 = vpack.c.b16 %v2045, %v2041
  %v2318 = vpack.c.b16 %v2050, %v2046
  %v2319 = vpack.c.b16 %v2051, %v2047
  %v2320 = vpack.c.b16 %v2052, %v2048
  %v2321 = vpack.c.b16 %v2053, %v2049
  %v2322 = vpack.c.b16 %v2058, %v2054
  %v2323 = vpack.c.b16 %v2059, %v2055
  %v2324 = vpack.c.b16 %v2060, %v2056
  %v2325 = vpack.c.b16 %v2061, %v2057
  %v2326 = vpack.c.b16 %v2066, %v2062
  %v2327 = vpack.c.b16 %v2067, %v2063
  %v2328 = vpack.c.b16 %v2068, %v2064
  %v2329 = vpack.c.b16 %v2069, %v2065
  %v2330 = vpack.c.b16 %v2074, %v2070
  %v2331 = vpack.c.b16 %v2075, %v2071
  %v2332 = vpack.c.b16 %v2076, %v2072
  %v2333 = vpack.c.b16 %v2077, %v2073
  %v2334 = vpack.c.b16 %v2082, %v2078
  %v2335 = vpack.c.b16 %v2083, %v2079
  %v2336 = vpack.c.b16 %v2084, %v2080
  %v2337 = vpack.c.b16 %v2085, %v2081
  %v2338 = vpack.c.b16 %v2090, %v2086
  %v2339 = vpack.c.b16 %v2091, %v2087
  %v2340 = vpack.c.b16 %v2092, %v2088
  %v2341 = vpack.c.b16 %v2093, %v2089
  %v2342 = vpack.c.b16 %v2098, %v2094
  %v2343 = vpack.c.b16 %v2099, %v2095
  %v2344 = vpack.c.b16 %v2100, %v2096
  %v2345 = vpack.c.b16 %v2101, %v2097
  %v2346 = vpack.c.b16 %v2106, %v2102
  %v2347 = vpack.c.b16 %v2107, %v2103
  %v2348 = vpack.c.b16 %v2108, %v2104
  %v2349 = vpack.c.b16 %v2109, %v2105
  %v2350 = vpack.c.b16 %v2114, %v2110
  %v2351 = vpack.c.b16 %v2115, %v2111
  %v2352 = vpack.c.b16 %v2116, %v2112
  %v2353 = vpack.c.b16 %v2117, %v2113
  %v2354 = vpack.c.b16 %v2122, %v2118
  %v2355 = vpack.c.b16 %v2123, %v2119
  %v2356 = vpack.c.b16 %v2124, %v2120
  %v2357 = vpack.c.b16 %v2125, %v2121
  %v2358 = vpack.c.b16 %v2130, %v2126
  %v2359 = vpack.c.b16 %v2131, %v2127
  %v2360 = vpack.c.b16 %v2132, %v2128
  %v2361 = vpack.c.b16 %v2133, %v2129
  %v2362 = vpack.c.b16 %v2138, %v2134
  %v2363 = vpack.c.b16 %v2139, %v2135
  %v2364 = vpack.c.b16 %v2140, %v2136
  %v2365 = vpack.c.b16 %v2141, %v2137
  %v2366 = vpack.c.b16 %v2146, %v2142
  %v2367 = vpack.c.b16 %v2147, %v2143
  %v2368 = vpack.c.b16 %v2148, %v2144
  %v2369 = vpack.c.b16 %v2149, %v2145
  %v2370 = vpack.c.b16 %v2154, %v2150
  %v2371 = vpack.c.b16 %v2155, %v2151
  %v2372 = vpack.c.b16 %v2156, %v2152
  %v2373 = vpack.c.b16 %v2157, %v2153
  %v2374 = vpack.c.b16 %v2162, %v2158
  %v2375 = vpack.c.b16 %v2163, %v2159
  %v2376 = vpack.c.b16 %v2164, %v2160
  %v2377 = vpack.c.b16 %v2165, %v2161
  %v2378 = vpack.c.b16 %v2170, %v2166
  %v2379 = vpack.c.b16 %v2171, %v2167
  %v2380 = vpack.c.b16 %v2172, %v2168
  %v2381 = vpack.c.b16 %v2173, %v2169
  %v2382 = vpack.c.b16 %v2178, %v2174
  %v2383 = vpack.c.b16 %v2179, %v2175
  %v2384 = vpack.c.b16 %v2180, %v2176
  %v2385 = vpack.c.b16 %v2181, %v2177
  %v2386 = vpack.c.b16 %v2186, %v2182
  %v2387 = vpack.c.b16 %v2187, %v2183
  %v2388 = vpack.c.b16 %v2188, %v2184
  %v2389 = vpack.c.b16 %v2189, %v2185
  %v2390 = vpack.c.b16 %v2194, %v2190
  %v2391 = vpack.c.b16 %v2195, %v2191
  %v2392 = vpack.c.b16 %v2196, %v2192
  %v2393 = vpack.c.b16 %v2197, %v2193
  %v2394 = vpack.c.b16 %v2202, %v2198
  %v2395 = vpack.c.b16 %v2203, %v2199
  %v2396 = vpack.c.b16 %v2204, %v2200
  %v2397 = vpack.c.b16 %v2205, %v2201
  %2590 = vmatprep.subr.bf16.mxu0 %v2207
  %2591 = vmatpush1.bf16.msra.mxu0 %v2206
  %2592 = vmatprep.subr.bf16.mxu0 %v2211
  %2593 = vmatpush1.bf16.msra.mxu0 %v2210
  %2594 = vmatprep.subr.bf16.mxu0 %v2215
  %2595 = vmatpush1.bf16.msra.mxu0 %v2214
  %2596 = vmatprep.subr.bf16.mxu0 %v2219
  %2597 = vmatpush1.bf16.msra.mxu0 %v2218
  %2598 = vmatprep.subr.bf16.mxu0 %v2223
  %2599 = vmatpush1.bf16.msra.mxu0 %v2222
  %2600 = vmatprep.subr.bf16.mxu0 %v2227
  %2601 = vmatpush1.bf16.msra.mxu0 %v2226
  %2602 = vmatprep.subr.bf16.mxu0 %v2231
  %2603 = vmatpush1.bf16.msra.mxu0 %v2230
  %2604 = vmatprep.subr.bf16.mxu0 %v2235
  %2605 = vmatpush1.bf16.msra.mxu0 %v2234
  %2606 = vmatprep.subr.bf16.mxu0 %v2239
  %2607 = vmatpush1.bf16.msra.mxu0 %v2238
  %2608 = vmatprep.subr.bf16.mxu0 %v2243
  %2609 = vmatpush1.bf16.msra.mxu0 %v2242
  %2610 = vmatprep.subr.bf16.mxu0 %v2247
  %2611 = vmatpush1.bf16.msra.mxu0 %v2246
  %2612 = vmatprep.subr.bf16.mxu0 %v2251
  %2613 = vmatpush1.bf16.msra.mxu0 %v2250
  %2614 = vmatprep.subr.bf16.mxu0 %v2255
  %2615 = vmatpush1.bf16.msra.mxu0 %v2254
  %2616 = vmatprep.subr.bf16.mxu0 %v2259
  %2617 = vmatpush1.bf16.msra.mxu0 %v2258
  %2618 = vmatprep.subr.bf16.mxu0 %v2263
  %2619 = vmatpush1.bf16.msra.mxu0 %v2262
  %2620 = vmatprep.subr.bf16.mxu0 %v2267
  %2621 = vmatpush1.bf16.msra.mxu0 %v2266
  %2622 = vmatprep.mubr.bf16.mxu0 %v1433
  %2623 = vmatmul.mubr.bf16.gmra.mrb[0].mxu0 %v1432
  %v2624 = vpop.f32.mrb[0].mxu0
  %v2625 = vadd.f32 %v225, %v2624
  %v2626 = vpop.f32.mrb[0].mxu0
  %v2627 = vadd.f32 %v229, %v2626
  %v2628 = vpop.f32.mrb[0].mxu0
  %v2629 = vadd.f32 %v225, %v2628
  %v2630 = vpop.f32.mrb[0].mxu0
  %v2631 = vadd.f32 %v229, %v2630
  %2632 = vdwg.mxu0
  %2633 = vmatprep.subr.bf16.mxu0 %v2271
  %2634 = vmatpush1.bf16.msra.mxu0 %v2270
  %2635 = vmatprep.subr.bf16.mxu0 %v2275
  %2636 = vmatpush1.bf16.msra.mxu0 %v2274
  %2637 = vmatprep.subr.bf16.mxu0 %v2279
  %2638 = vmatpush1.bf16.msra.mxu0 %v2278
  %2639 = vmatprep.subr.bf16.mxu0 %v2283
  %2640 = vmatpush1.bf16.msra.mxu0 %v2282
  %2641 = vmatprep.subr.bf16.mxu0 %v2287
  %2642 = vmatpush1.bf16.msra.mxu0 %v2286
  %2643 = vmatprep.subr.bf16.mxu0 %v2291
  %2644 = vmatpush1.bf16.msra.mxu0 %v2290
  %2645 = vmatprep.subr.bf16.mxu0 %v2295
  %2646 = vmatpush1.bf16.msra.mxu0 %v2294
  %2647 = vmatprep.subr.bf16.mxu0 %v2299
  %2648 = vmatpush1.bf16.msra.mxu0 %v2298
  %2649 = vmatprep.subr.bf16.mxu0 %v2303
  %2650 = vmatpush1.bf16.msra.mxu0 %v2302
  %2651 = vmatprep.subr.bf16.mxu0 %v2307
  %2652 = vmatpush1.bf16.msra.mxu0 %v2306
  %2653 = vmatprep.subr.bf16.mxu0 %v2311
  %2654 = vmatpush1.bf16.msra.mxu0 %v2310
  %2655 = vmatprep.subr.bf16.mxu0 %v2315
  %2656 = vmatpush1.bf16.msra.mxu0 %v2314
  %2657 = vmatprep.subr.bf16.mxu0 %v2319
  %2658 = vmatpush1.bf16.msra.mxu0 %v2318
  %2659 = vmatprep.subr.bf16.mxu0 %v2323
  %2660 = vmatpush1.bf16.msra.mxu0 %v2322
  %2661 = vmatprep.subr.bf16.mxu0 %v2327
  %2662 = vmatpush1.bf16.msra.mxu0 %v2326
  %2663 = vmatprep.subr.bf16.mxu0 %v2331
  %2664 = vmatpush1.bf16.msra.mxu0 %v2330
  %2665 = vmatprep.mubr.bf16.mxu0 %v1435
  %2666 = vmatmul.mubr.bf16.gmra.mrb[0].mxu0 %v1434
  %v2667 = vpop.f32.mrb[0].mxu0
  %v2668 = vadd.f32 %v2625, %v2667
  %v2669 = vpop.f32.mrb[0].mxu0
  %v2670 = vadd.f32 %v2627, %v2669
  %v2671 = vpop.f32.mrb[0].mxu0
  %v2672 = vadd.f32 %v2629, %v2671
  %v2673 = vpop.f32.mrb[0].mxu0
  %v2674 = vadd.f32 %v2631, %v2673
  %2675 = vdwg.mxu0
  %2676 = vmatprep.subr.bf16.mxu0 %v2335
  %2677 = vmatpush1.bf16.msra.mxu0 %v2334
  %2678 = vmatprep.subr.bf16.mxu0 %v2339
  %2679 = vmatpush1.bf16.msra.mxu0 %v2338
  %2680 = vmatprep.subr.bf16.mxu0 %v2343
  %2681 = vmatpush1.bf16.msra.mxu0 %v2342
  %2682 = vmatprep.subr.bf16.mxu0 %v2347
  %2683 = vmatpush1.bf16.msra.mxu0 %v2346
  %2684 = vmatprep.subr.bf16.mxu0 %v2351
  %2685 = vmatpush1.bf16.msra.mxu0 %v2350
  %2686 = vmatprep.subr.bf16.mxu0 %v2355
  %2687 = vmatpush1.bf16.msra.mxu0 %v2354
  %2688 = vmatprep.subr.bf16.mxu0 %v2359
  %2689 = vmatpush1.bf16.msra.mxu0 %v2358
  %2690 = vmatprep.subr.bf16.mxu0 %v2363
  %2691 = vmatpush1.bf16.msra.mxu0 %v2362
  %2692 = vmatprep.subr.bf16.mxu0 %v2367
  %2693 = vmatpush1.bf16.msra.mxu0 %v2366
  %2694 = vmatprep.subr.bf16.mxu0 %v2371
  %2695 = vmatpush1.bf16.msra.mxu0 %v2370
  %2696 = vmatprep.subr.bf16.mxu0 %v2375
  %2697 = vmatpush1.bf16.msra.mxu0 %v2374
  %2698 = vmatprep.subr.bf16.mxu0 %v2379
  %2699 = vmatpush1.bf16.msra.mxu0 %v2378
  %2700 = vmatprep.subr.bf16.mxu0 %v2383
  %2701 = vmatpush1.bf16.msra.mxu0 %v2382
  %2702 = vmatprep.subr.bf16.mxu0 %v2387
  %2703 = vmatpush1.bf16.msra.mxu0 %v2386
  %2704 = vmatprep.subr.bf16.mxu0 %v2391
  %2705 = vmatpush1.bf16.msra.mxu0 %v2390
  %2706 = vmatprep.subr.bf16.mxu0 %v2395
  %2707 = vmatpush1.bf16.msra.mxu0 %v2394
  %2708 = vmatprep.mubr.bf16.mxu0 %v1437
  %2709 = vmatmul.mubr.bf16.gmra.mrb[0].mxu0 %v1436
  %v2710 = vpop.f32.mrb[0].mxu0
  %v2711 = vadd.f32 %v2668, %v2710
  %v2712 = vpop.f32.mrb[0].mxu0
  %v2713 = vadd.f32 %v2670, %v2712
  %v2714 = vpop.f32.mrb[0].mxu0
  %v2715 = vadd.f32 %v2672, %v2714
  %v2716 = vpop.f32.mrb[0].mxu0
  %v2717 = vadd.f32 %v2674, %v2716
  %2718 = vdwg.mxu0
  %2719 = vmatprep.subr.bf16.mxu0 %v2209
  %2720 = vmatpush1.bf16.msra.mxu0 %v2208
  %2721 = vmatprep.subr.bf16.mxu0 %v2213
  %2722 = vmatpush1.bf16.msra.mxu0 %v2212
  %2723 = vmatprep.subr.bf16.mxu0 %v2217
  %2724 = vmatpush1.bf16.msra.mxu0 %v2216
  %2725 = vmatprep.subr.bf16.mxu0 %v2221
  %2726 = vmatpush1.bf16.msra.mxu0 %v2220
  %2727 = vmatprep.subr.bf16.mxu0 %v2225
  %2728 = vmatpush1.bf16.msra.mxu0 %v2224
  %2729 = vmatprep.subr.bf16.mxu0 %v2229
  %2730 = vmatpush1.bf16.msra.mxu0 %v2228
  %2731 = vmatprep.subr.bf16.mxu0 %v2233
  %2732 = vmatpush1.bf16.msra.mxu0 %v2232
  %2733 = vmatprep.subr.bf16.mxu0 %v2237
  %2734 = vmatpush1.bf16.msra.mxu0 %v2236
  %2735 = vmatprep.subr.bf16.mxu0 %v2241
  %2736 = vmatpush1.bf16.msra.mxu0 %v2240
  %2737 = vmatprep.subr.bf16.mxu0 %v2245
  %2738 = vmatpush1.bf16.msra.mxu0 %v2244
  %2739 = vmatprep.subr.bf16.mxu0 %v2249
  %2740 = vmatpush1.bf16.msra.mxu0 %v2248
  %2741 = vmatprep.subr.bf16.mxu0 %v2253
  %2742 = vmatpush1.bf16.msra.mxu0 %v2252
  %2743 = vmatprep.subr.bf16.mxu0 %v2257
  %2744 = vmatpush1.bf16.msra.mxu0 %v2256
  %2745 = vmatprep.subr.bf16.mxu0 %v2261
  %2746 = vmatpush1.bf16.msra.mxu0 %v2260
  %2747 = vmatprep.subr.bf16.mxu0 %v2265
  %2748 = vmatpush1.bf16.msra.mxu0 %v2264
  %2749 = vmatprep.subr.bf16.mxu0 %v2269
  %2750 = vmatpush1.bf16.msra.mxu0 %v2268
  %2751 = vmatprep.mubr.bf16.mxu0 %v1433
  %2752 = vmatmul.mubr.bf16.gmra.mrb[0].mxu0 %v1432
  %v2753 = vpop.f32.mrb[0].mxu0
  %v2754 = vadd.f32 %v233, %v2753
  %v2755 = vpop.f32.mrb[0].mxu0
  %v2756 = vadd.f32 %v237, %v2755
  %v2757 = vpop.f32.mrb[0].mxu0
  %v2758 = vadd.f32 %v233, %v2757
  %v2759 = vpop.f32.mrb[0].mxu0
  %v2760 = vadd.f32 %v237, %v2759
  %2761 = vdwg.mxu0
  %2762 = vmatprep.subr.bf16.mxu0 %v2273
  %2763 = vmatpush1.bf16.msra.mxu0 %v2272
  %2764 = vmatprep.subr.bf16.mxu0 %v2277
  %2765 = vmatpush1.bf16.msra.mxu0 %v2276
  %2766 = vmatprep.subr.bf16.mxu0 %v2281
  %2767 = vmatpush1.bf16.msra.mxu0 %v2280
  %2768 = vmatprep.subr.bf16.mxu0 %v2285
  %2769 = vmatpush1.bf16.msra.mxu0 %v2284
  %2770 = vmatprep.subr.bf16.mxu0 %v2289
  %2771 = vmatpush1.bf16.msra.mxu0 %v2288
  %2772 = vmatprep.subr.bf16.mxu0 %v2293
  %2773 = vmatpush1.bf16.msra.mxu0 %v2292
  %2774 = vmatprep.subr.bf16.mxu0 %v2297
  %2775 = vmatpush1.bf16.msra.mxu0 %v2296
  %2776 = vmatprep.subr.bf16.mxu0 %v2301
  %2777 = vmatpush1.bf16.msra.mxu0 %v2300
  %2778 = vmatprep.subr.bf16.mxu0 %v2305
  %2779 = vmatpush1.bf16.msra.mxu0 %v2304
  %2780 = vmatprep.subr.bf16.mxu0 %v2309
  %2781 = vmatpush1.bf16.msra.mxu0 %v2308
  %2782 = vmatprep.subr.bf16.mxu0 %v2313
  %2783 = vmatpush1.bf16.msra.mxu0 %v2312
  %2784 = vmatprep.subr.bf16.mxu0 %v2317
  %2785 = vmatpush1.bf16.msra.mxu0 %v2316
  %2786 = vmatprep.subr.bf16.mxu0 %v2321
  %2787 = vmatpush1.bf16.msra.mxu0 %v2320
  %2788 = vmatprep.subr.bf16.mxu0 %v2325
  %2789 = vmatpush1.bf16.msra.mxu0 %v2324
  %2790 = vmatprep.subr.bf16.mxu0 %v2329
  %2791 = vmatpush1.bf16.msra.mxu0 %v2328
  %2792 = vmatprep.subr.bf16.mxu0 %v2333
  %2793 = vmatpush1.bf16.msra.mxu0 %v2332
  %2794 = vmatprep.mubr.bf16.mxu0 %v1435
  %2795 = vmatmul.mubr.bf16.gmra.mrb[0].mxu0 %v1434
  %v2796 = vpop.f32.mrb[0].mxu0
  %v2797 = vadd.f32 %v2754, %v2796
  %v2798 = vpop.f32.mrb[0].mxu0
  %v2799 = vadd.f32 %v2756, %v2798
  %v2800 = vpop.f32.mrb[0].mxu0
  %v2801 = vadd.f32 %v2758, %v2800
  %v2802 = vpop.f32.mrb[0].mxu0
  %v2803 = vadd.f32 %v2760, %v2802
  %2804 = vdwg.mxu0
  %2805 = vmatprep.subr.bf16.mxu0 %v2337
  %2806 = vmatpush1.bf16.msra.mxu0 %v2336
  %2807 = vmatprep.subr.bf16.mxu0 %v2341
  %2808 = vmatpush1.bf16.msra.mxu0 %v2340
  %2809 = vmatprep.subr.bf16.mxu0 %v2345
  %2810 = vmatpush1.bf16.msra.mxu0 %v2344
  %2811 = vmatprep.subr.bf16.mxu0 %v2349
  %2812 = vmatpush1.bf16.msra.mxu0 %v2348
  %2813 = vmatprep.subr.bf16.mxu0 %v2353
  %2814 = vmatpush1.bf16.msra.mxu0 %v2352
  %2815 = vmatprep.subr.bf16.mxu0 %v2357
  %2816 = vmatpush1.bf16.msra.mxu0 %v2356
  %2817 = vmatprep.subr.bf16.mxu0 %v2361
  %2818 = vmatpush1.bf16.msra.mxu0 %v2360
  %2819 = vmatprep.subr.bf16.mxu0 %v2365
  %2820 = vmatpush1.bf16.msra.mxu0 %v2364
  %2821 = vmatprep.subr.bf16.mxu0 %v2369
  %2822 = vmatpush1.bf16.msra.mxu0 %v2368
  %2823 = vmatprep.subr.bf16.mxu0 %v2373
  %2824 = vmatpush1.bf16.msra.mxu0 %v2372
  %2825 = vmatprep.subr.bf16.mxu0 %v2377
  %2826 = vmatpush1.bf16.msra.mxu0 %v2376
  %2827 = vmatprep.subr.bf16.mxu0 %v2381
  %2828 = vmatpush1.bf16.msra.mxu0 %v2380
  %2829 = vmatprep.subr.bf16.mxu0 %v2385
  %2830 = vmatpush1.bf16.msra.mxu0 %v2384
  %2831 = vmatprep.subr.bf16.mxu0 %v2389
  %2832 = vmatpush1.bf16.msra.mxu0 %v2388
  %2833 = vmatprep.subr.bf16.mxu0 %v2393
  %2834 = vmatpush1.bf16.msra.mxu0 %v2392
  %2835 = vmatprep.subr.bf16.mxu0 %v2397
  %2836 = vmatpush1.bf16.msra.mxu0 %v2396
  %2837 = vmatprep.mubr.bf16.mxu0 %v1437
  %2838 = vmatmul.mubr.bf16.gmra.mrb[0].mxu0 %v1436
  %v2839 = vpop.f32.mrb[0].mxu0
  %v2840 = vadd.f32 %v2797, %v2839
  %v2841 = vpop.f32.mrb[0].mxu0
  %v2842 = vadd.f32 %v2799, %v2841
  %v2843 = vpop.f32.mrb[0].mxu0
  %v2844 = vadd.f32 %v2801, %v2843
  %v2845 = vpop.f32.mrb[0].mxu0
  %v2846 = vadd.f32 %v2803, %v2845
  %2847 = vdwg.mxu0
  %v2848 = vmax.f32 %v2711, 0.0
  %v2849 = vmax.f32 %v2713, 0.0
  %v2850 = vmax.f32 %v2840, 0.0
  %v2851 = vmax.f32 %v2842, 0.0
  %v2852 = vmax.f32 %v2715, 0.0
  %v2853 = vmax.f32 %v2717, 0.0
  %v2854 = vmax.f32 %v2844, 0.0
  %v2855 = vmax.f32 %v2846, 0.0
  %v2856 = vpack.c.bf16 %v2852, %v2848
  %v2857 = vpack.c.bf16 %v2853, %v2849
  %v2858 = vpack.c.bf16 %v2854, %v2850
  %v2859 = vpack.c.bf16 %v2855, %v2851
  %v2860 = vld [vmem:[%s6] sm:$0xff]
  %v2861 = vld [vmem:[%s6 + $0x8] sm:$0xf]
  %v2862 = vld [vmem:[%s6 + $0xc] sm:$0xff]
  %v2863 = vld [vmem:[%s6 + $0x14] sm:$0xf]
  %v2864 = vld [vmem:[%s6 + $0x18] sm:$0xff]
  %v2865 = vld [vmem:[%s6 + $0x20] sm:$0xf]
  %v2866 = vld [vmem:[%s6 + $0x24] sm:$0xff]
  %v2867 = vld [vmem:[%s6 + $0x2c] sm:$0xf]
  %v2868 = vld [vmem:[%s6 + $0x30] sm:$0xff]
  %v2869 = vld [vmem:[%s6 + $0x38] sm:$0xf]
  %v2870 = vld [vmem:[%s6 + $0x3c] sm:$0xff]
  %v2871 = vld [vmem:[%s6 + $0x44] sm:$0xf]
  %v2872 = vld [vmem:[%s6 + $0x48] sm:$0xff]
  %v2873 = vld [vmem:[%s6 + $0x50] sm:$0xf]
  %v2874 = vld [vmem:[%s6 + $0x54] sm:$0xff]
  %v2875 = vld [vmem:[%s6 + $0x5c] sm:$0xf]
  %v2876 = vld [vmem:[%s6 + $0x60] sm:$0xff]
  %v2877 = vld [vmem:[%s6 + $0x68] sm:$0xf]
  %v2878 = vld [vmem:[%s6 + $0x6c] sm:$0xff]
  %v2879 = vld [vmem:[%s6 + $0x74] sm:$0xf]
  %v2880 = vld [vmem:[%s6 + $0x78] sm:$0xff]
  %v2881 = vld [vmem:[%s6 + $0x80] sm:$0xf]
  %v2882 = vld [vmem:[%s6 + $0x84] sm:$0xff]
  %v2883 = vld [vmem:[%s6 + $0x8c] sm:$0xf]
  %v2884 = vld [vmem:[%s6 + $0x90] sm:$0xff]
  %v2885 = vld [vmem:[%s6 + $0x98] sm:$0xf]
  %v2886 = vld [vmem:[%s6 + $0x9c] sm:$0xff]
  %v2887 = vld [vmem:[%s6 + $0xa4] sm:$0xf]
  %v2888 = vld [vmem:[%s6 + $0xa8] sm:$0xff]
  %v2889 = vld [vmem:[%s6 + $0xb0] sm:$0xf]
  %v2890 = vld [vmem:[%s6 + $0xb4] sm:$0xff]
  %v2891 = vld [vmem:[%s6 + $0xbc] sm:$0xf]
  %v2892 = vld [vmem:[%s6 + $0xc0] sm:$0xff]
  %v2893 = vld [vmem:[%s6 + $0xc8] sm:$0xf]
  %v2894 = vld [vmem:[%s6 + $0xcc] sm:$0xff]
  %v2895 = vld [vmem:[%s6 + $0xd4] sm:$0xf]
  %v2896 = vld [vmem:[%s6 + $0xd8] sm:$0xff]
  %v2897 = vld [vmem:[%s6 + $0xe0] sm:$0xf]
  %v2898 = vld [vmem:[%s6 + $0xe4] sm:$0xff]
  %v2899 = vld [vmem:[%s6 + $0xec] sm:$0xf]
  %v2900 = vld [vmem:[%s6 + $0xf0] sm:$0xff]
  %v2901 = vld [vmem:[%s6 + $0xf8] sm:$0xf]
  %v2902 = vld [vmem:[%s6 + $0xfc] sm:$0xff]
  %v2903 = vld [vmem:[%s6 + $0x104] sm:$0xf]
  %v2904 = vld [vmem:[%s6 + $0x108] sm:$0xff]
  %v2905 = vld [vmem:[%s6 + $0x110] sm:$0xf]
  %v2906 = vld [vmem:[%s6 + $0x114] sm:$0xff]
  %v2907 = vld [vmem:[%s6 + $0x11c] sm:$0xf]
  %v2908 = vld [vmem:[%s6 + $0x120] sm:$0xff]
  %v2909 = vld [vmem:[%s6 + $0x128] sm:$0xf]
  %v2910 = vld [vmem:[%s6 + $0x12c] sm:$0xff]
  %v2911 = vld [vmem:[%s6 + $0x134] sm:$0xf]
  %v2912 = vld [vmem:[%s6 + $0x138] sm:$0xff]
  %v2913 = vld [vmem:[%s6 + $0x140] sm:$0xf]
  %v2914 = vld [vmem:[%s6 + $0x144] sm:$0xff]
  %v2915 = vld [vmem:[%s6 + $0x14c] sm:$0xf]
  %v2916 = vld [vmem:[%s6 + $0x150] sm:$0xff]
  %v2917 = vld [vmem:[%s6 + $0x158] sm:$0xf]
  %v2918 = vld [vmem:[%s6 + $0x15c] sm:$0xff]
  %v2919 = vld [vmem:[%s6 + $0x164] sm:$0xf]
  %v2920 = vld [vmem:[%s6 + $0x168] sm:$0xff]
  %v2921 = vld [vmem:[%s6 + $0x170] sm:$0xf]
  %v2922 = vld [vmem:[%s6 + $0x174] sm:$0xff]
  %v2923 = vld [vmem:[%s6 + $0x17c] sm:$0xf]
  %v2924 = vld [vmem:[%s6 + $0x180] sm:$0xff]
  %v2925 = vld [vmem:[%s6 + $0x188] sm:$0xf]
  %v2926 = vld [vmem:[%s6 + $0x18c] sm:$0xff]
  %v2927 = vld [vmem:[%s6 + $0x194] sm:$0xf]
  %v2928 = vld [vmem:[%s6 + $0x198] sm:$0xff]
  %v2929 = vld [vmem:[%s6 + $0x1a0] sm:$0xf]
  %v2930 = vld [vmem:[%s6 + $0x1a4] sm:$0xff]
  %v2931 = vld [vmem:[%s6 + $0x1ac] sm:$0xf]
  %v2932 = vld [vmem:[%s6 + $0x1b0] sm:$0xff]
  %v2933 = vld [vmem:[%s6 + $0x1b8] sm:$0xf]
  %v2934 = vld [vmem:[%s6 + $0x1bc] sm:$0xff]
  %v2935 = vld [vmem:[%s6 + $0x1c4] sm:$0xf]
  %v2936 = vld [vmem:[%s6 + $0x1c8] sm:$0xff]
  %v2937 = vld [vmem:[%s6 + $0x1d0] sm:$0xf]
  %v2938 = vld [vmem:[%s6 + $0x1d4] sm:$0xff]
  %v2939 = vld [vmem:[%s6 + $0x1dc] sm:$0xf]
  %v2940 = vld [vmem:[%s6 + $0x1e0] sm:$0xff]
  %v2941 = vld [vmem:[%s6 + $0x1e8] sm:$0xf]
  %v2942 = vld [vmem:[%s6 + $0x1ec] sm:$0xff]
  %v2943 = vld [vmem:[%s6 + $0x1f4] sm:$0xf]
  %v2944 = vld [vmem:[%s6 + $0x1f8] sm:$0xff]
  %v2945 = vld [vmem:[%s6 + $0x200] sm:$0xf]
  %v2946 = vld [vmem:[%s6 + $0x204] sm:$0xff]
  %v2947 = vld [vmem:[%s6 + $0x20c] sm:$0xf]
  %v2948 = vld [vmem:[%s6 + $0x210] sm:$0xff]
  %v2949 = vld [vmem:[%s6 + $0x218] sm:$0xf]
  %v2950 = vld [vmem:[%s6 + $0x21c] sm:$0xff]
  %v2951 = vld [vmem:[%s6 + $0x224] sm:$0xf]
  %v2952 = vld [vmem:[%s6 + $0x228] sm:$0xff]
  %v2953 = vld [vmem:[%s6 + $0x230] sm:$0xf]
  %v2954 = vld [vmem:[%s6 + $0x234] sm:$0xff]
  %v2955 = vld [vmem:[%s6 + $0x23c] sm:$0xf]
  %v2956 = vld [vmem:[%s6 + $0x240] sm:$0xff]
  %v2957 = vld [vmem:[%s6 + $0x248] sm:$0xf]
  %v2958 = vld [vmem:[%s6 + $0x24c] sm:$0xff]
  %v2959 = vld [vmem:[%s6 + $0x254] sm:$0xf]
  %v2960 = vld [vmem:[%s6 + $0x258] sm:$0xff]
  %v2961 = vld [vmem:[%s6 + $0x260] sm:$0xf]
  %v2962 = vld [vmem:[%s6 + $0x264] sm:$0xff]
  %v2963 = vld [vmem:[%s6 + $0x26c] sm:$0xf]
  %v2964 = vld [vmem:[%s6 + $0x270] sm:$0xff]
  %v2965 = vld [vmem:[%s6 + $0x278] sm:$0xf]
  %v2966 = vld [vmem:[%s6 + $0x27c] sm:$0xff]
  %v2967 = vld [vmem:[%s6 + $0x284] sm:$0xf]
  %v3076 = vunpack.c.l.b16 %v2860
  %v3077 = vunpack.c.h.b16 %v2860
  %v3078 = vunpack.c.l.b16 %v2861
  %v3079 = vunpack.c.l.b16 %v2862
  %v3080 = vunpack.c.h.b16 %v2862
  %v3081 = vunpack.c.l.b16 %v2863
  %v3082 = vunpack.c.l.b16 %v2864
  %v3083 = vunpack.c.h.b16 %v2864
  %v3084 = vunpack.c.l.b16 %v2865
  %v3085 = vunpack.c.l.b16 %v2866
  %v3086 = vunpack.c.h.b16 %v2866
  %v3087 = vunpack.c.l.b16 %v2867
  %v3088 = vunpack.c.l.b16 %v2868
  %v3089 = vunpack.c.h.b16 %v2868
  %v3090 = vunpack.c.l.b16 %v2869
  %v3091 = vunpack.c.l.b16 %v2870
  %v3092 = vunpack.c.h.b16 %v2870
  %v3093 = vunpack.c.l.b16 %v2871
  %v3094 = vunpack.c.l.b16 %v2872
  %v3095 = vunpack.c.h.b16 %v2872
  %v3096 = vunpack.c.l.b16 %v2873
  %v3097 = vunpack.c.l.b16 %v2874
  %v3098 = vunpack.c.h.b16 %v2874
  %v3099 = vunpack.c.l.b16 %v2875
  %v3100 = vunpack.c.l.b16 %v2876
  %v3101 = vunpack.c.h.b16 %v2876
  %v3102 = vunpack.c.l.b16 %v2877
  %v3103 = vunpack.c.l.b16 %v2878
  %v3104 = vunpack.c.h.b16 %v2878
  %v3105 = vunpack.c.l.b16 %v2879
  %v3106 = vunpack.c.l.b16 %v2880
  %v3107 = vunpack.c.h.b16 %v2880
  %v3108 = vunpack.c.l.b16 %v2881
  %v3109 = vunpack.c.l.b16 %v2882
  %v3110 = vunpack.c.h.b16 %v2882
  %v3111 = vunpack.c.l.b16 %v2883
  %v3112 = vunpack.c.l.b16 %v2884
  %v3113 = vunpack.c.h.b16 %v2884
  %v3114 = vunpack.c.l.b16 %v2885
  %v3115 = vunpack.c.l.b16 %v2886
  %v3116 = vunpack.c.h.b16 %v2886
  %v3117 = vunpack.c.l.b16 %v2887
  %v3118 = vunpack.c.l.b16 %v2888
  %v3119 = vunpack.c.h.b16 %v2888
  %v3120 = vunpack.c.l.b16 %v2889
  %v3121 = vunpack.c.l.b16 %v2890
  %v3122 = vunpack.c.h.b16 %v2890
  %v3123 = vunpack.c.l.b16 %v2891
  %v3124 = vunpack.c.l.b16 %v2892
  %v3125 = vunpack.c.h.b16 %v2892
  %v3126 = vunpack.c.l.b16 %v2893
  %v3127 = vunpack.c.l.b16 %v2894
  %v3128 = vunpack.c.h.b16 %v2894
  %v3129 = vunpack.c.l.b16 %v2895
  %v3130 = vunpack.c.l.b16 %v2896
  %v3131 = vunpack.c.h.b16 %v2896
  %v3132 = vunpack.c.l.b16 %v2897
  %v3133 = vunpack.c.l.b16 %v2898
  %v3134 = vunpack.c.h.b16 %v2898
  %v3135 = vunpack.c.l.b16 %v2899
  %v3136 = vunpack.c.l.b16 %v2900
  %v3137 = vunpack.c.h.b16 %v2900
  %v3138 = vunpack.c.l.b16 %v2901
  %v3139 = vunpack.c.l.b16 %v2902
  %v3140 = vunpack.c.h.b16 %v2902
  %v3141 = vunpack.c.l.b16 %v2903
  %v3142 = vunpack.c.l.b16 %v2904
  %v3143 = vunpack.c.h.b16 %v2904
  %v3144 = vunpack.c.l.b16 %v2905
  %v3145 = vunpack.c.l.b16 %v2906
  %v3146 = vunpack.c.h.b16 %v2906
  %v3147 = vunpack.c.l.b16 %v2907
  %v3148 = vunpack.c.l.b16 %v2908
  %v3149 = vunpack.c.h.b16 %v2908
  %v3150 = vunpack.c.l.b16 %v2909
  %v3151 = vunpack.c.l.b16 %v2910
  %v3152 = vunpack.c.h.b16 %v2910
  %v3153 = vunpack.c.l.b16 %v2911
  %v3154 = vunpack.c.l.b16 %v2912
  %v3155 = vunpack.c.h.b16 %v2912
  %v3156 = vunpack.c.l.b16 %v2913
  %v3157 = vunpack.c.l.b16 %v2914
  %v3158 = vunpack.c.h.b16 %v2914
  %v3159 = vunpack.c.l.b16 %v2915
  %v3160 = vunpack.c.l.b16 %v2916
  %v3161 = vunpack.c.h.b16 %v2916
  %v3162 = vunpack.c.l.b16 %v2917
  %v3163 = vunpack.c.l.b16 %v2918
  %v3164 = vunpack.c.h.b16 %v2918
  %v3165 = vunpack.c.l.b16 %v2919
  %v3166 = vunpack.c.l.b16 %v2920
  %v3167 = vunpack.c.h.b16 %v2920
  %v3168 = vunpack.c.l.b16 %v2921
  %v3169 = vunpack.c.l.b16 %v2922
  %v3170 = vunpack.c.h.b16 %v2922
  %v3171 = vunpack.c.l.b16 %v2923
  %v3172 = vunpack.c.l.b16 %v2924
  %v3173 = vunpack.c.h.b16 %v2924
  %v3174 = vunpack.c.l.b16 %v2925
  %v3175 = vunpack.c.l.b16 %v2926
  %v3176 = vunpack.c.h.b16 %v2926
  %v3177 = vunpack.c.l.b16 %v2927
  %v3178 = vunpack.c.l.b16 %v2928
  %v3179 = vunpack.c.h.b16 %v2928
  %v3180 = vunpack.c.l.b16 %v2929
  %v3181 = vunpack.c.l.b16 %v2930
  %v3182 = vunpack.c.h.b16 %v2930
  %v3183 = vunpack.c.l.b16 %v2931
  %v3184 = vunpack.c.l.b16 %v2932
  %v3185 = vunpack.c.h.b16 %v2932
  %v3186 = vunpack.c.l.b16 %v2933
  %v3187 = vunpack.c.l.b16 %v2934
  %v3188 = vunpack.c.h.b16 %v2934
  %v3189 = vunpack.c.l.b16 %v2935
  %v3190 = vunpack.c.l.b16 %v2936
  %v3191 = vunpack.c.h.b16 %v2936
  %v3192 = vunpack.c.l.b16 %v2937
  %v3193 = vunpack.c.l.b16 %v2938
  %v3194 = vunpack.c.h.b16 %v2938
  %v3195 = vunpack.c.l.b16 %v2939
  %v3196 = vunpack.c.l.b16 %v2940
  %v3197 = vunpack.c.h.b16 %v2940
  %v3198 = vunpack.c.l.b16 %v2941
  %v3199 = vunpack.c.l.b16 %v2942
  %v3200 = vunpack.c.h.b16 %v2942
  %v3201 = vunpack.c.l.b16 %v2943
  %v3202 = vunpack.c.l.b16 %v2944
  %v3203 = vunpack.c.h.b16 %v2944
  %v3204 = vunpack.c.l.b16 %v2945
  %v3205 = vunpack.c.l.b16 %v2946
  %v3206 = vunpack.c.h.b16 %v2946
  %v3207 = vunpack.c.l.b16 %v2947
  %v3208 = vunpack.c.l.b16 %v2948
  %v3209 = vunpack.c.h.b16 %v2948
  %v3210 = vunpack.c.l.b16 %v2949
  %v3211 = vunpack.c.l.b16 %v2950
  %v3212 = vunpack.c.h.b16 %v2950
  %v3213 = vunpack.c.l.b16 %v2951
  %v3214 = vunpack.c.l.b16 %v2952
  %v3215 = vunpack.c.h.b16 %v2952
  %v3216 = vunpack.c.l.b16 %v2953
  %v3217 = vunpack.c.l.b16 %v2954
  %v3218 = vunpack.c.h.b16 %v2954
  %v3219 = vunpack.c.l.b16 %v2955
  %v3220 = vunpack.c.l.b16 %v2956
  %v3221 = vunpack.c.h.b16 %v2956
  %v3222 = vunpack.c.l.b16 %v2957
  %v3223 = vunpack.c.l.b16 %v2958
  %v3224 = vunpack.c.h.b16 %v2958
  %v3225 = vunpack.c.l.b16 %v2959
  %v3226 = vunpack.c.l.b16 %v2960
  %v3227 = vunpack.c.h.b16 %v2960
  %v3228 = vunpack.c.l.b16 %v2961
  %v3229 = vunpack.c.l.b16 %v2962
  %v3230 = vunpack.c.h.b16 %v2962
  %v3231 = vunpack.c.l.b16 %v2963
  %v3232 = vunpack.c.l.b16 %v2964
  %v3233 = vunpack.c.h.b16 %v2964
  %v3234 = vunpack.c.l.b16 %v2965
  %v3235 = vunpack.c.l.b16 %v2966
  %v3236 = vunpack.c.h.b16 %v2966
  %v3237 = vunpack.c.l.b16 %v2967
  %v3238 = vpack.c.b16 %v3079, %v3076
  %v3239 = vpack.c.b16 %v3080, %v3077
  %v3240 = vpack.c.b16 %v3081, %v3078
  %v3241 = vpack.c.b16 %v3085, %v3082
  %v3242 = vpack.c.b16 %v3086, %v3083
  %v3243 = vpack.c.b16 %v3087, %v3084
  %v3244 = vpack.c.b16 %v3091, %v3088
  %v3245 = vpack.c.b16 %v3092, %v3089
  %v3246 = vpack.c.b16 %v3093, %v3090
  %v3247 = vpack.c.b16 %v3097, %v3094
  %v3248 = vpack.c.b16 %v3098, %v3095
  %v3249 = vpack.c.b16 %v3099, %v3096
  %v3250 = vpack.c.b16 %v3103, %v3100
  %v3251 = vpack.c.b16 %v3104, %v3101
  %v3252 = vpack.c.b16 %v3105, %v3102
  %v3253 = vpack.c.b16 %v3109, %v3106
  %v3254 = vpack.c.b16 %v3110, %v3107
  %v3255 = vpack.c.b16 %v3111, %v3108
  %v3256 = vpack.c.b16 %v3115, %v3112
  %v3257 = vpack.c.b16 %v3116, %v3113
  %v3258 = vpack.c.b16 %v3117, %v3114
  %v3259 = vpack.c.b16 %v3121, %v3118
  %v3260 = vpack.c.b16 %v3122, %v3119
  %v3261 = vpack.c.b16 %v3123, %v3120
  %v3262 = vpack.c.b16 %v3127, %v3124
  %v3263 = vpack.c.b16 %v3128, %v3125
  %v3264 = vpack.c.b16 %v3129, %v3126
  %v3265 = vpack.c.b16 %v3133, %v3130
  %v3266 = vpack.c.b16 %v3134, %v3131
  %v3267 = vpack.c.b16 %v3135, %v3132
  %v3268 = vpack.c.b16 %v3139, %v3136
  %v3269 = vpack.c.b16 %v3140, %v3137
  %v3270 = vpack.c.b16 %v3141, %v3138
  %v3271 = vpack.c.b16 %v3145, %v3142
  %v3272 = vpack.c.b16 %v3146, %v3143
  %v3273 = vpack.c.b16 %v3147, %v3144
  %v3274 = vpack.c.b16 %v3151, %v3148
  %v3275 = vpack.c.b16 %v3152, %v3149
  %v3276 = vpack.c.b16 %v3153, %v3150
  %v3277 = vpack.c.b16 %v3157, %v3154
  %v3278 = vpack.c.b16 %v3158, %v3155
  %v3279 = vpack.c.b16 %v3159, %v3156
  %v3280 = vpack.c.b16 %v3163, %v3160
  %v3281 = vpack.c.b16 %v3164, %v3161
  %v3282 = vpack.c.b16 %v3165, %v3162
  %v3283 = vpack.c.b16 %v3169, %v3166
  %v3284 = vpack.c.b16 %v3170, %v3167
  %v3285 = vpack.c.b16 %v3171, %v3168
  %v3286 = vpack.c.b16 %v3175, %v3172
  %v3287 = vpack.c.b16 %v3176, %v3173
  %v3288 = vpack.c.b16 %v3177, %v3174
  %v3289 = vpack.c.b16 %v3181, %v3178
  %v3290 = vpack.c.b16 %v3182, %v3179
  %v3291 = vpack.c.b16 %v3183, %v3180
  %v3292 = vpack.c.b16 %v3187, %v3184
  %v3293 = vpack.c.b16 %v3188, %v3185
  %v3294 = vpack.c.b16 %v3189, %v3186
  %v3295 = vpack.c.b16 %v3193, %v3190
  %v3296 = vpack.c.b16 %v3194, %v3191
  %v3297 = vpack.c.b16 %v3195, %v3192
  %v3298 = vpack.c.b16 %v3199, %v3196
  %v3299 = vpack.c.b16 %v3200, %v3197
  %v3300 = vpack.c.b16 %v3201, %v3198
  %v3301 = vpack.c.b16 %v3205, %v3202
  %v3302 = vpack.c.b16 %v3206, %v3203
  %v3303 = vpack.c.b16 %v3207, %v3204
  %v3304 = vpack.c.b16 %v3211, %v3208
  %v3305 = vpack.c.b16 %v3212, %v3209
  %v3306 = vpack.c.b16 %v3213, %v3210
  %v3307 = vpack.c.b16 %v3217, %v3214
  %v3308 = vpack.c.b16 %v3218, %v3215
  %v3309 = vpack.c.b16 %v3219, %v3216
  %v3310 = vpack.c.b16 %v3223, %v3220
  %v3311 = vpack.c.b16 %v3224, %v3221
  %v3312 = vpack.c.b16 %v3225, %v3222
  %v3313 = vpack.c.b16 %v3229, %v3226
  %v3314 = vpack.c.b16 %v3230, %v3227
  %v3315 = vpack.c.b16 %v3231, %v3228
  %v3316 = vpack.c.b16 %v3235, %v3232
  %v3317 = vpack.c.b16 %v3236, %v3233
  %v3318 = vpack.c.b16 %v3237, %v3234
  %vm3400 = vcmask 392192
  %v3402 = vsel %vm3400, %v2859, 0
  %3404 = vmatprep.subr.bf16.mxu0 %v3239
  %3405 = vmatpush1.bf16.msra.mxu0 %v3238
  %3406 = vmatprep.subr.bf16.mxu0 %v3242
  %3407 = vmatpush1.bf16.msra.mxu0 %v3241
  %3408 = vmatprep.subr.bf16.mxu0 %v3245
  %3409 = vmatpush1.bf16.msra.mxu0 %v3244
  %3410 = vmatprep.subr.bf16.mxu0 %v3248
  %3411 = vmatpush1.bf16.msra.mxu0 %v3247
  %3412 = vmatprep.subr.bf16.mxu0 %v3251
  %3413 = vmatpush1.bf16.msra.mxu0 %v3250
  %3414 = vmatprep.subr.bf16.mxu0 %v3254
  %3415 = vmatpush1.bf16.msra.mxu0 %v3253
  %3416 = vmatprep.subr.bf16.mxu0 %v3257
  %3417 = vmatpush1.bf16.msra.mxu0 %v3256
  %3418 = vmatprep.subr.bf16.mxu0 %v3260
  %3419 = vmatpush1.bf16.msra.mxu0 %v3259
  %3420 = vmatprep.subr.bf16.mxu0 %v3263
  %3421 = vmatpush1.bf16.msra.mxu0 %v3262
  %3422 = vmatprep.subr.bf16.mxu0 %v3266
  %3423 = vmatpush1.bf16.msra.mxu0 %v3265
  %3424 = vmatprep.subr.bf16.mxu0 %v3269
  %3425 = vmatpush1.bf16.msra.mxu0 %v3268
  %3426 = vmatprep.subr.bf16.mxu0 %v3272
  %3427 = vmatpush1.bf16.msra.mxu0 %v3271
  %3428 = vmatprep.subr.bf16.mxu0 %v3275
  %3429 = vmatpush1.bf16.msra.mxu0 %v3274
  %3430 = vmatprep.subr.bf16.mxu0 %v3278
  %3431 = vmatpush1.bf16.msra.mxu0 %v3277
  %3432 = vmatprep.subr.bf16.mxu0 %v3281
  %3433 = vmatpush1.bf16.msra.mxu0 %v3280
  %3434 = vmatprep.subr.bf16.mxu0 %v3284
  %3435 = vmatpush1.bf16.msra.mxu0 %v3283
  %3436 = vmatprep.mubr.bf16.mxu0 %v2857
  %3437 = vmatmul.mubr.bf16.gmra.mrb[0].mxu0 %v2856
  %v3438 = vpop.f32.mrb[0].mxu0
  %v3439 = vadd.f32 0.0, %v3438
  %v3440 = vpop.f32.mrb[0].mxu0
  %v3441 = vadd.f32 0.0, %v3440
  %v3442 = vpop.f32.mrb[0].mxu0
  %v3443 = vadd.f32 0.0, %v3442
  %v3444 = vpop.f32.mrb[0].mxu0
  %v3445 = vadd.f32 0.0, %v3444
  %3446 = vdwg.mxu0
  %3447 = vmatprep.subr.bf16.mxu0 %v3287
  %3448 = vmatpush1.bf16.msra.mxu0 %v3286
  %3449 = vmatprep.subr.bf16.mxu0 %v3290
  %3450 = vmatpush1.bf16.msra.mxu0 %v3289
  %3451 = vmatprep.subr.bf16.mxu0 %v3293
  %3452 = vmatpush1.bf16.msra.mxu0 %v3292
  %3453 = vmatprep.subr.bf16.mxu0 %v3296
  %3454 = vmatpush1.bf16.msra.mxu0 %v3295
  %3455 = vmatprep.subr.bf16.mxu0 %v3299
  %3456 = vmatpush1.bf16.msra.mxu0 %v3298
  %3457 = vmatprep.subr.bf16.mxu0 %v3302
  %3458 = vmatpush1.bf16.msra.mxu0 %v3301
  %3459 = vmatprep.subr.bf16.mxu0 %v3305
  %3460 = vmatpush1.bf16.msra.mxu0 %v3304
  %3461 = vmatprep.subr.bf16.mxu0 %v3308
  %3462 = vmatpush1.bf16.msra.mxu0 %v3307
  %3463 = vmatprep.subr.bf16.mxu0 %v3311
  %3464 = vmatpush1.bf16.msra.mxu0 %v3310
  %3465 = vmatprep.subr.bf16.mxu0 %v3314
  %3466 = vmatpush1.bf16.msra.mxu0 %v3313
  %3467 = vmatprep.subr.bf16.mxu0 %v3317
  %3468 = vmatpush1.bf16.msra.mxu0 %v3316
  %3469 = vmatprep.subr.bf16.mxu0 0
  %3470 = vmatpush1.bf16.msra.mxu0 0
  %3471 = vmatprep.subr.bf16.mxu0 0
  %3472 = vmatpush1.bf16.msra.mxu0 0
  %3473 = vmatprep.subr.bf16.mxu0 0
  %3474 = vmatpush1.bf16.msra.mxu0 0
  %3475 = vmatprep.subr.bf16.mxu0 0
  %3476 = vmatpush1.bf16.msra.mxu0 0
  %3477 = vmatprep.subr.bf16.mxu0 0
  %3478 = vmatpush1.bf16.msra.mxu0 0
  %3479 = vmatprep.mubr.bf16.mxu0 %v3402
  %3480 = vmatmul.mubr.bf16.gmra.mrb[0].mxu0 %v2858
  %v3481 = vpop.f32.mrb[0].mxu0
  %v3482 = vadd.f32 %v3439, %v3481
  %v3483 = vpop.f32.mrb[0].mxu0
  %v3484 = vadd.f32 %v3441, %v3483
  %v3485 = vpop.f32.mrb[0].mxu0
  %v3486 = vadd.f32 %v3443, %v3485
  %v3487 = vpop.f32.mrb[0].mxu0
  %v3488 = vadd.f32 %v3445, %v3487
  %3489 = vdwg.mxu0
  %3490 = vmatprep.subr.bf16.mxu0 0
  %3491 = vmatpush1.bf16.msra.mxu0 %v3240
  %3492 = vmatprep.subr.bf16.mxu0 0
  %3493 = vmatpush1.bf16.msra.mxu0 %v3243
  %3494 = vmatprep.subr.bf16.mxu0 0
  %3495 = vmatpush1.bf16.msra.mxu0 %v3246
  %3496 = vmatprep.subr.bf16.mxu0 0
  %3497 = vmatpush1.bf16.msra.mxu0 %v3249
  %3498 = vmatprep.subr.bf16.mxu0 0
  %3499 = vmatpush1.bf16.msra.mxu0 %v3252
  %3500 = vmatprep.subr.bf16.mxu0 0
  %3501 = vmatpush1.bf16.msra.mxu0 %v3255
  %3502 = vmatprep.subr.bf16.mxu0 0
  %3503 = vmatpush1.bf16.msra.mxu0 %v3258
  %3504 = vmatprep.subr.bf16.mxu0 0
  %3505 = vmatpush1.bf16.msra.mxu0 %v3261
  %3506 = vmatprep.subr.bf16.mxu0 0
  %3507 = vmatpush1.bf16.msra.mxu0 %v3264
  %3508 = vmatprep.subr.bf16.mxu0 0
  %3509 = vmatpush1.bf16.msra.mxu0 %v3267
  %3510 = vmatprep.subr.bf16.mxu0 0
  %3511 = vmatpush1.bf16.msra.mxu0 %v3270
  %3512 = vmatprep.subr.bf16.mxu0 0
  %3513 = vmatpush1.bf16.msra.mxu0 %v3273
  %3514 = vmatprep.subr.bf16.mxu0 0
  %3515 = vmatpush1.bf16.msra.mxu0 %v3276
  %3516 = vmatprep.subr.bf16.mxu0 0
  %3517 = vmatpush1.bf16.msra.mxu0 %v3279
  %3518 = vmatprep.subr.bf16.mxu0 0
  %3519 = vmatpush1.bf16.msra.mxu0 %v3282
  %3520 = vmatprep.subr.bf16.mxu0 0
  %3521 = vmatpush1.bf16.msra.mxu0 %v3285
  %3522 = vmatprep.mubr.bf16.mxu0 %v2857
  %3523 = vmatmul.mubr.bf16.gmra.mrb[0].mxu0 %v2856
  %v3524 = vpop.f32.mrb[0].mxu0
  %v3525 = vadd.f32 0.0, %v3524
  %v3526 = vpop.f32.mrb[0].mxu0
  %v3527 = vpop.f32.mrb[0].mxu0
  %v3528 = vadd.f32 0.0, %v3527
  %v3529 = vpop.f32.mrb[0].mxu0
  %3530 = vdwg.mxu0
  %3531 = vmatprep.subr.bf16.mxu0 0
  %3532 = vmatpush1.bf16.msra.mxu0 %v3288
  %3533 = vmatprep.subr.bf16.mxu0 0
  %3534 = vmatpush1.bf16.msra.mxu0 %v3291
  %3535 = vmatprep.subr.bf16.mxu0 0
  %3536 = vmatpush1.bf16.msra.mxu0 %v3294
  %3537 = vmatprep.subr.bf16.mxu0 0
  %3538 = vmatpush1.bf16.msra.mxu0 %v3297
  %3539 = vmatprep.subr.bf16.mxu0 0
  %3540 = vmatpush1.bf16.msra.mxu0 %v3300
  %3541 = vmatprep.subr.bf16.mxu0 0
  %3542 = vmatpush1.bf16.msra.mxu0 %v3303
  %3543 = vmatprep.subr.bf16.mxu0 0
  %3544 = vmatpush1.bf16.msra.mxu0 %v3306
  %3545 = vmatprep.subr.bf16.mxu0 0
  %3546 = vmatpush1.bf16.msra.mxu0 %v3309
  %3547 = vmatprep.subr.bf16.mxu0 0
  %3548 = vmatpush1.bf16.msra.mxu0 %v3312
  %3549 = vmatprep.subr.bf16.mxu0 0
  %3550 = vmatpush1.bf16.msra.mxu0 %v3315
  %3551 = vmatprep.subr.bf16.mxu0 0
  %3552 = vmatpush1.bf16.msra.mxu0 %v3318
  %3553 = vmatprep.subr.bf16.mxu0 0
  %3554 = vmatpush1.bf16.msra.mxu0 0
  %3555 = vmatprep.subr.bf16.mxu0 0
  %3556 = vmatpush1.bf16.msra.mxu0 0
  %3557 = vmatprep.subr.bf16.mxu0 0
  %3558 = vmatpush1.bf16.msra.mxu0 0
  %3559 = vmatprep.subr.bf16.mxu0 0
  %3560 = vmatpush1.bf16.msra.mxu0 0
  %3561 = vmatprep.subr.bf16.mxu0 0
  %3562 = vmatpush1.bf16.msra.mxu0 0
  %3563 = vmatprep.mubr.bf16.mxu0 %v3402
  %3564 = vmatmul.mubr.bf16.gmra.mrb[0].mxu0 %v2858
  %v3565 = vpop.f32.mrb[0].mxu0
  %v3566 = vadd.f32 %v3525, %v3565
  %v3567 = vpop.f32.mrb[0].mxu0
  %v3568 = vpop.f32.mrb[0].mxu0
  %v3569 = vadd.f32 %v3528, %v3568
  %v3570 = vpop.f32.mrb[0].mxu0
  %3571 = vdwg.mxu0
  %v3680 = vunpack.c.l.b16 %v1312
  %v3681 = vunpack.c.h.b16 %v1312
  %v3682 = vunpack.c.l.b16 %v1313
  %v3683 = vunpack.c.l.b16 %v1314
  %v3684 = vunpack.c.h.b16 %v1314
  %v3685 = vunpack.c.l.b16 %v1315
  %v3686 = vunpack.c.l.b16 %v1316
  %v3687 = vunpack.c.h.b16 %v1316
  %v3688 = vunpack.c.l.b16 %v1317
  %v3689 = vunpack.c.l.b16 %v1318
  %v3690 = vunpack.c.h.b16 %v1318
  %v3691 = vunpack.c.l.b16 %v1319
  %v3692 = vunpack.c.l.b16 %v1320
  %v3693 = vunpack.c.h.b16 %v1320
  %v3694 = vunpack.c.l.b16 %v1321
  %v3695 = vunpack.c.l.b16 %v1322
  %v3696 = vunpack.c.h.b16 %v1322
  %v3697 = vunpack.c.l.b16 %v1323
  %v3698 = vunpack.c.l.b16 %v1324
  %v3699 = vunpack.c.h.b16 %v1324
  %v3700 = vunpack.c.l.b16 %v1325
  %v3701 = vunpack.c.l.b16 %v1326
  %v3702 = vunpack.c.h.b16 %v1326
  %v3703 = vunpack.c.l.b16 %v1327
  %v3704 = vunpack.c.l.b16 %v1328
  %v3705 = vunpack.c.h.b16 %v1328
  %v3706 = vunpack.c.l.b16 %v1329
  %v3707 = vunpack.c.l.b16 %v1330
  %v3708 = vunpack.c.h.b16 %v1330
  %v3709 = vunpack.c.l.b16 %v1331
  %v3710 = vunpack.c.l.b16 %v1332
  %v3711 = vunpack.c.h.b16 %v1332
  %v3712 = vunpack.c.l.b16 %v1333
  %v3713 = vunpack.c.l.b16 %v1334
  %v3714 = vunpack.c.h.b16 %v1334
  %v3715 = vunpack.c.l.b16 %v1335
  %v3716 = vunpack.c.l.b16 %v1336
  %v3717 = vunpack.c.h.b16 %v1336
  %v3718 = vunpack.c.l.b16 %v1337
  %v3719 = vunpack.c.l.b16 %v1338
  %v3720 = vunpack.c.h.b16 %v1338
  %v3721 = vunpack.c.l.b16 %v1339
  %v3722 = vunpack.c.l.b16 %v1340
  %v3723 = vunpack.c.h.b16 %v1340
  %v3724 = vunpack.c.l.b16 %v1341
  %v3725 = vunpack.c.l.b16 %v1342
  %v3726 = vunpack.c.h.b16 %v1342
  %v3727 = vunpack.c.l.b16 %v1343
  %v3728 = vunpack.c.l.b16 %v1344
  %v3729 = vunpack.c.h.b16 %v1344
  %v3730 = vunpack.c.l.b16 %v1345
  %v3731 = vunpack.c.l.b16 %v1346
  %v3732 = vunpack.c.h.b16 %v1346
  %v3733 = vunpack.c.l.b16 %v1347
  %v3734 = vunpack.c.l.b16 %v1348
  %v3735 = vunpack.c.h.b16 %v1348
  %v3736 = vunpack.c.l.b16 %v1349
  %v3737 = vunpack.c.l.b16 %v1350
  %v3738 = vunpack.c.h.b16 %v1350
  %v3739 = vunpack.c.l.b16 %v1351
  %v3740 = vunpack.c.l.b16 %v1352
  %v3741 = vunpack.c.h.b16 %v1352
  %v3742 = vunpack.c.l.b16 %v1353
  %v3743 = vunpack.c.l.b16 %v1354
  %v3744 = vunpack.c.h.b16 %v1354
  %v3745 = vunpack.c.l.b16 %v1355
  %v3746 = vunpack.c.l.b16 %v1356
  %v3747 = vunpack.c.h.b16 %v1356
  %v3748 = vunpack.c.l.b16 %v1357
  %v3749 = vunpack.c.l.b16 %v1358
  %v3750 = vunpack.c.h.b16 %v1358
  %v3751 = vunpack.c.l.b16 %v1359
  %v3752 = vunpack.c.l.b16 %v1360
  %v3753 = vunpack.c.h.b16 %v1360
  %v3754 = vunpack.c.l.b16 %v1361
  %v3755 = vunpack.c.l.b16 %v1362
  %v3756 = vunpack.c.h.b16 %v1362
  %v3757 = vunpack.c.l.b16 %v1363
  %v3758 = vunpack.c.l.b16 %v1364
  %v3759 = vunpack.c.h.b16 %v1364
  %v3760 = vunpack.c.l.b16 %v1365
  %v3761 = vunpack.c.l.b16 %v1366
  %v3762 = vunpack.c.h.b16 %v1366
  %v3763 = vunpack.c.l.b16 %v1367
  %v3764 = vunpack.c.l.b16 %v1368
  %v3765 = vunpack.c.h.b16 %v1368
  %v3766 = vunpack.c.l.b16 %v1369
  %v3767 = vunpack.c.l.b16 %v1370
  %v3768 = vunpack.c.h.b16 %v1370
  %v3769 = vunpack.c.l.b16 %v1371
  %v3770 = vunpack.c.l.b16 %v1372
  %v3771 = vunpack.c.h.b16 %v1372
  %v3772 = vunpack.c.l.b16 %v1373
  %v3773 = vunpack.c.l.b16 %v1374
  %v3774 = vunpack.c.h.b16 %v1374
  %v3775 = vunpack.c.l.b16 %v1375
  %v3776 = vunpack.c.l.b16 %v1376
  %v3777 = vunpack.c.h.b16 %v1376
  %v3778 = vunpack.c.l.b16 %v1377
  %v3779 = vunpack.c.l.b16 %v1378
  %v3780 = vunpack.c.h.b16 %v1378
  %v3781 = vunpack.c.l.b16 %v1379
  %v3782 = vunpack.c.l.b16 %v1380
  %v3783 = vunpack.c.h.b16 %v1380
  %v3784 = vunpack.c.l.b16 %v1381
  %v3785 = vunpack.c.l.b16 %v1382
  %v3786 = vunpack.c.h.b16 %v1382
  %v3787 = vunpack.c.l.b16 %v1383
  %v3788 = vunpack.c.l.b16 %v1384
  %v3789 = vunpack.c.h.b16 %v1384
  %v3790 = vunpack.c.l.b16 %v1385
  %v3791 = vunpack.c.l.b16 %v1386
  %v3792 = vunpack.c.h.b16 %v1386
  %v3793 = vunpack.c.l.b16 %v1387
  %v3794 = vunpack.c.l.b16 %v1388
  %v3795 = vunpack.c.h.b16 %v1388
  %v3796 = vunpack.c.l.b16 %v1389
  %v3797 = vunpack.c.l.b16 %v1390
  %v3798 = vunpack.c.h.b16 %v1390
  %v3799 = vunpack.c.l.b16 %v1391
  %v3800 = vunpack.c.l.b16 %v1392
  %v3801 = vunpack.c.h.b16 %v1392
  %v3802 = vunpack.c.l.b16 %v1393
  %v3803 = vunpack.c.l.b16 %v1394
  %v3804 = vunpack.c.h.b16 %v1394
  %v3805 = vunpack.c.l.b16 %v1395
  %v3806 = vunpack.c.l.b16 %v1396
  %v3807 = vunpack.c.h.b16 %v1396
  %v3808 = vunpack.c.l.b16 %v1397
  %v3809 = vunpack.c.l.b16 %v1398
  %v3810 = vunpack.c.h.b16 %v1398
  %v3811 = vunpack.c.l.b16 %v1399
  %v3812 = vunpack.c.l.b16 %v1400
  %v3813 = vunpack.c.h.b16 %v1400
  %v3814 = vunpack.c.l.b16 %v1401
  %v3815 = vunpack.c.l.b16 %v1402
  %v3816 = vunpack.c.h.b16 %v1402
  %v3817 = vunpack.c.l.b16 %v1403
  %v3818 = vunpack.c.l.b16 %v1404
  %v3819 = vunpack.c.h.b16 %v1404
  %v3820 = vunpack.c.l.b16 %v1405
  %v3821 = vunpack.c.l.b16 %v1406
  %v3822 = vunpack.c.h.b16 %v1406
  %v3823 = vunpack.c.l.b16 %v1407
  %v3824 = vunpack.c.l.b16 %v1408
  %v3825 = vunpack.c.h.b16 %v1408
  %v3826 = vunpack.c.l.b16 %v1409
  %v3827 = vunpack.c.l.b16 %v1410
  %v3828 = vunpack.c.h.b16 %v1410
  %v3829 = vunpack.c.l.b16 %v1411
  %v3830 = vunpack.c.l.b16 %v1412
  %v3831 = vunpack.c.h.b16 %v1412
  %v3832 = vunpack.c.l.b16 %v1413
  %v3833 = vunpack.c.l.b16 %v1414
  %v3834 = vunpack.c.h.b16 %v1414
  %v3835 = vunpack.c.l.b16 %v1415
  %v3836 = vunpack.c.l.b16 %v1416
  %v3837 = vunpack.c.h.b16 %v1416
  %v3838 = vunpack.c.l.b16 %v1417
  %v3839 = vunpack.c.l.b16 %v1418
  %v3840 = vunpack.c.h.b16 %v1418
  %v3841 = vunpack.c.l.b16 %v1419
  %v3842 = vpack.c.b16 %v3683, %v3680
  %v3843 = vpack.c.b16 %v3684, %v3681
  %v3844 = vpack.c.b16 %v3685, %v3682
  %v3845 = vpack.c.b16 %v3689, %v3686
  %v3846 = vpack.c.b16 %v3690, %v3687
  %v3847 = vpack.c.b16 %v3691, %v3688
  %v3848 = vpack.c.b16 %v3695, %v3692
  %v3849 = vpack.c.b16 %v3696, %v3693
  %v3850 = vpack.c.b16 %v3697, %v3694
  %v3851 = vpack.c.b16 %v3701, %v3698
  %v3852 = vpack.c.b16 %v3702, %v3699
  %v3853 = vpack.c.b16 %v3703, %v3700
  %v3854 = vpack.c.b16 %v3707, %v3704
  %v3855 = vpack.c.b16 %v3708, %v3705
  %v3856 = vpack.c.b16 %v3709, %v3706
  %v3857 = vpack.c.b16 %v3713, %v3710
  %v3858 = vpack.c.b16 %v3714, %v3711
  %v3859 = vpack.c.b16 %v3715, %v3712
  %v3860 = vpack.c.b16 %v3719, %v3716
  %v3861 = vpack.c.b16 %v3720, %v3717
  %v3862 = vpack.c.b16 %v3721, %v3718
  %v3863 = vpack.c.b16 %v3725, %v3722
  %v3864 = vpack.c.b16 %v3726, %v3723
  %v3865 = vpack.c.b16 %v3727, %v3724
  %v3866 = vpack.c.b16 %v3731, %v3728
  %v3867 = vpack.c.b16 %v3732, %v3729
  %v3868 = vpack.c.b16 %v3733, %v3730
  %v3869 = vpack.c.b16 %v3737, %v3734
  %v3870 = vpack.c.b16 %v3738, %v3735
  %v3871 = vpack.c.b16 %v3739, %v3736
  %v3872 = vpack.c.b16 %v3743, %v3740
  %v3873 = vpack.c.b16 %v3744, %v3741
  %v3874 = vpack.c.b16 %v3745, %v3742
  %v3875 = vpack.c.b16 %v3749, %v3746
  %v3876 = vpack.c.b16 %v3750, %v3747
  %v3877 = vpack.c.b16 %v3751, %v3748
  %v3878 = vpack.c.b16 %v3755, %v3752
  %v3879 = vpack.c.b16 %v3756, %v3753
  %v3880 = vpack.c.b16 %v3757, %v3754
  %v3881 = vpack.c.b16 %v3761, %v3758
  %v3882 = vpack.c.b16 %v3762, %v3759
  %v3883 = vpack.c.b16 %v3763, %v3760
  %v3884 = vpack.c.b16 %v3767, %v3764
  %v3885 = vpack.c.b16 %v3768, %v3765
  %v3886 = vpack.c.b16 %v3769, %v3766
  %v3887 = vpack.c.b16 %v3773, %v3770
  %v3888 = vpack.c.b16 %v3774, %v3771
  %v3889 = vpack.c.b16 %v3775, %v3772
  %v3890 = vpack.c.b16 %v3779, %v3776
  %v3891 = vpack.c.b16 %v3780, %v3777
  %v3892 = vpack.c.b16 %v3781, %v3778
  %v3893 = vpack.c.b16 %v3785, %v3782
  %v3894 = vpack.c.b16 %v3786, %v3783
  %v3895 = vpack.c.b16 %v3787, %v3784
  %v3896 = vpack.c.b16 %v3791, %v3788
  %v3897 = vpack.c.b16 %v3792, %v3789
  %v3898 = vpack.c.b16 %v3793, %v3790
  %v3899 = vpack.c.b16 %v3797, %v3794
  %v3900 = vpack.c.b16 %v3798, %v3795
  %v3901 = vpack.c.b16 %v3799, %v3796
  %v3902 = vpack.c.b16 %v3803, %v3800
  %v3903 = vpack.c.b16 %v3804, %v3801
  %v3904 = vpack.c.b16 %v3805, %v3802
  %v3905 = vpack.c.b16 %v3809, %v3806
  %v3906 = vpack.c.b16 %v3810, %v3807
  %v3907 = vpack.c.b16 %v3811, %v3808
  %v3908 = vpack.c.b16 %v3815, %v3812
  %v3909 = vpack.c.b16 %v3816, %v3813
  %v3910 = vpack.c.b16 %v3817, %v3814
  %v3911 = vpack.c.b16 %v3821, %v3818
  %v3912 = vpack.c.b16 %v3822, %v3819
  %v3913 = vpack.c.b16 %v3823, %v3820
  %v3914 = vpack.c.b16 %v3827, %v3824
  %v3915 = vpack.c.b16 %v3828, %v3825
  %v3916 = vpack.c.b16 %v3829, %v3826
  %v3917 = vpack.c.b16 %v3833, %v3830
  %v3918 = vpack.c.b16 %v3834, %v3831
  %v3919 = vpack.c.b16 %v3835, %v3832
  %v3920 = vpack.c.b16 %v3839, %v3836
  %v3921 = vpack.c.b16 %v3840, %v3837
  %v3922 = vpack.c.b16 %v3841, %v3838
  %v4005 = vsel %vm3400, %v1311, 0
  %4007 = vmatprep.subr.bf16.mxu0 %v3843
  %4008 = vmatpush1.bf16.msra.mxu0 %v3842
  %4009 = vmatprep.subr.bf16.mxu0 %v3846
  %4010 = vmatpush1.bf16.msra.mxu0 %v3845
  %4011 = vmatprep.subr.bf16.mxu0 %v3849
  %4012 = vmatpush1.bf16.msra.mxu0 %v3848
  %4013 = vmatprep.subr.bf16.mxu0 %v3852
  %4014 = vmatpush1.bf16.msra.mxu0 %v3851
  %4015 = vmatprep.subr.bf16.mxu0 %v3855
  %4016 = vmatpush1.bf16.msra.mxu0 %v3854
  %4017 = vmatprep.subr.bf16.mxu0 %v3858
  %4018 = vmatpush1.bf16.msra.mxu0 %v3857
  %4019 = vmatprep.subr.bf16.mxu0 %v3861
  %4020 = vmatpush1.bf16.msra.mxu0 %v3860
  %4021 = vmatprep.subr.bf16.mxu0 %v3864
  %4022 = vmatpush1.bf16.msra.mxu0 %v3863
  %4023 = vmatprep.subr.bf16.mxu0 %v3867
  %4024 = vmatpush1.bf16.msra.mxu0 %v3866
  %4025 = vmatprep.subr.bf16.mxu0 %v3870
  %4026 = vmatpush1.bf16.msra.mxu0 %v3869
  %4027 = vmatprep.subr.bf16.mxu0 %v3873
  %4028 = vmatpush1.bf16.msra.mxu0 %v3872
  %4029 = vmatprep.subr.bf16.mxu0 %v3876
  %4030 = vmatpush1.bf16.msra.mxu0 %v3875
  %4031 = vmatprep.subr.bf16.mxu0 %v3879
  %4032 = vmatpush1.bf16.msra.mxu0 %v3878
  %4033 = vmatprep.subr.bf16.mxu0 %v3882
  %4034 = vmatpush1.bf16.msra.mxu0 %v3881
  %4035 = vmatprep.subr.bf16.mxu0 %v3885
  %4036 = vmatpush1.bf16.msra.mxu0 %v3884
  %4037 = vmatprep.subr.bf16.mxu0 %v3888
  %4038 = vmatpush1.bf16.msra.mxu0 %v3887
  %4039 = vmatprep.mubr.bf16.mxu0 %v1309
  %4040 = vmatmul.mubr.bf16.gmra.mrb[0].mxu0 %v1308
  %v4041 = vpop.f32.mrb[0].mxu0
  %v4042 = vadd.f32 %v3482, %v4041
  %v4043 = vpop.f32.mrb[0].mxu0
  %v4044 = vadd.f32 %v3484, %v4043
  %v4045 = vpop.f32.mrb[0].mxu0
  %v4046 = vadd.f32 %v3486, %v4045
  %v4047 = vpop.f32.mrb[0].mxu0
  %v4048 = vadd.f32 %v3488, %v4047
  %4049 = vdwg.mxu0
  %4050 = vmatprep.subr.bf16.mxu0 %v3891
  %4051 = vmatpush1.bf16.msra.mxu0 %v3890
  %4052 = vmatprep.subr.bf16.mxu0 %v3894
  %4053 = vmatpush1.bf16.msra.mxu0 %v3893
  %4054 = vmatprep.subr.bf16.mxu0 %v3897
  %4055 = vmatpush1.bf16.msra.mxu0 %v3896
  %4056 = vmatprep.subr.bf16.mxu0 %v3900
  %4057 = vmatpush1.bf16.msra.mxu0 %v3899
  %4058 = vmatprep.subr.bf16.mxu0 %v3903
  %4059 = vmatpush1.bf16.msra.mxu0 %v3902
  %4060 = vmatprep.subr.bf16.mxu0 %v3906
  %4061 = vmatpush1.bf16.msra.mxu0 %v3905
  %4062 = vmatprep.subr.bf16.mxu0 %v3909
  %4063 = vmatpush1.bf16.msra.mxu0 %v3908
  %4064 = vmatprep.subr.bf16.mxu0 %v3912
  %4065 = vmatpush1.bf16.msra.mxu0 %v3911
  %4066 = vmatprep.subr.bf16.mxu0 %v3915
  %4067 = vmatpush1.bf16.msra.mxu0 %v3914
  %4068 = vmatprep.subr.bf16.mxu0 %v3918
  %4069 = vmatpush1.bf16.msra.mxu0 %v3917
  %4070 = vmatprep.subr.bf16.mxu0 %v3921
  %4071 = vmatpush1.bf16.msra.mxu0 %v3920
  %4072 = vmatprep.subr.bf16.mxu0 0
  %4073 = vmatpush1.bf16.msra.mxu0 0
  %4074 = vmatprep.subr.bf16.mxu0 0
  %4075 = vmatpush1.bf16.msra.mxu0 0
  %4076 = vmatprep.subr.bf16.mxu0 0
  %4077 = vmatpush1.bf16.msra.mxu0 0
  %4078 = vmatprep.subr.bf16.mxu0 0
  %4079 = vmatpush1.bf16.msra.mxu0 0
  %4080 = vmatprep.subr.bf16.mxu0 0
  %4081 = vmatpush1.bf16.msra.mxu0 0
  %4082 = vmatprep.mubr.bf16.mxu0 %v4005
  %4083 = vmatmul.mubr.bf16.gmra.mrb[0].mxu0 %v1310
  %v4084 = vpop.f32.mrb[0].mxu0
  %v4085 = vadd.f32 %v4042, %v4084
  %v4086 = vpop.f32.mrb[0].mxu0
  %v4087 = vadd.f32 %v4044, %v4086
  %v4088 = vpop.f32.mrb[0].mxu0
  %v4089 = vadd.f32 %v4046, %v4088
  %v4090 = vpop.f32.mrb[0].mxu0
  %v4091 = vadd.f32 %v4048, %v4090
  %4092 = vdwg.mxu0
  %4093 = vmatprep.subr.bf16.mxu0 0
  %4094 = vmatpush1.bf16.msra.mxu0 %v3844
  %4095 = vmatprep.subr.bf16.mxu0 0
  %4096 = vmatpush1.bf16.msra.mxu0 %v3847
  %4097 = vmatprep.subr.bf16.mxu0 0
  %4098 = vmatpush1.bf16.msra.mxu0 %v3850
  %4099 = vmatprep.subr.bf16.mxu0 0
  %4100 = vmatpush1.bf16.msra.mxu0 %v3853
  %4101 = vmatprep.subr.bf16.mxu0 0
  %4102 = vmatpush1.bf16.msra.mxu0 %v3856
  %4103 = vmatprep.subr.bf16.mxu0 0
  %4104 = vmatpush1.bf16.msra.mxu0 %v3859
  %4105 = vmatprep.subr.bf16.mxu0 0
  %4106 = vmatpush1.bf16.msra.mxu0 %v3862
  %4107 = vmatprep.subr.bf16.mxu0 0
  %4108 = vmatpush1.bf16.msra.mxu0 %v3865
  %4109 = vmatprep.subr.bf16.mxu0 0
  %4110 = vmatpush1.bf16.msra.mxu0 %v3868
  %4111 = vmatprep.subr.bf16.mxu0 0
  %4112 = vmatpush1.bf16.msra.mxu0 %v3871
  %4113 = vmatprep.subr.bf16.mxu0 0
  %4114 = vmatpush1.bf16.msra.mxu0 %v3874
  %4115 = vmatprep.subr.bf16.mxu0 0
  %4116 = vmatpush1.bf16.msra.mxu0 %v3877
  %4117 = vmatprep.subr.bf16.mxu0 0
  %4118 = vmatpush1.bf16.msra.mxu0 %v3880
  %4119 = vmatprep.subr.bf16.mxu0 0
  %4120 = vmatpush1.bf16.msra.mxu0 %v3883
  %4121 = vmatprep.subr.bf16.mxu0 0
  %4122 = vmatpush1.bf16.msra.mxu0 %v3886
  %4123 = vmatprep.subr.bf16.mxu0 0
  %4124 = vmatpush1.bf16.msra.mxu0 %v3889
  %4125 = vmatprep.mubr.bf16.mxu0 %v1309
  %4126 = vmatmul.mubr.bf16.gmra.mrb[0].mxu0 %v1308
  %v4127 = vpop.f32.mrb[0].mxu0
  %v4128 = vadd.f32 %v3566, %v4127
  %v4129 = vpop.f32.mrb[0].mxu0
  %v4130 = vpop.f32.mrb[0].mxu0
  %v4131 = vadd.f32 %v3569, %v4130
  %v4132 = vpop.f32.mrb[0].mxu0
  %4133 = vdwg.mxu0
  %4134 = vmatprep.subr.bf16.mxu0 0
  %4135 = vmatpush1.bf16.msra.mxu0 %v3892
  %4136 = vmatprep.subr.bf16.mxu0 0
  %4137 = vmatpush1.bf16.msra.mxu0 %v3895
  %4138 = vmatprep.subr.bf16.mxu0 0
  %4139 = vmatpush1.bf16.msra.mxu0 %v3898
  %4140 = vmatprep.subr.bf16.mxu0 0
  %4141 = vmatpush1.bf16.msra.mxu0 %v3901
  %4142 = vmatprep.subr.bf16.mxu0 0
  %4143 = vmatpush1.bf16.msra.mxu0 %v3904
  %4144 = vmatprep.subr.bf16.mxu0 0
  %4145 = vmatpush1.bf16.msra.mxu0 %v3907
  %4146 = vmatprep.subr.bf16.mxu0 0
  %4147 = vmatpush1.bf16.msra.mxu0 %v3910
  %4148 = vmatprep.subr.bf16.mxu0 0
  %4149 = vmatpush1.bf16.msra.mxu0 %v3913
  %4150 = vmatprep.subr.bf16.mxu0 0
  %4151 = vmatpush1.bf16.msra.mxu0 %v3916
  %4152 = vmatprep.subr.bf16.mxu0 0
  %4153 = vmatpush1.bf16.msra.mxu0 %v3919
  %4154 = vmatprep.subr.bf16.mxu0 0
  %4155 = vmatpush1.bf16.msra.mxu0 %v3922
  %4156 = vmatprep.subr.bf16.mxu0 0
  %4157 = vmatpush1.bf16.msra.mxu0 0
  %4158 = vmatprep.subr.bf16.mxu0 0
  %4159 = vmatpush1.bf16.msra.mxu0 0
  %4160 = vmatprep.subr.bf16.mxu0 0
  %4161 = vmatpush1.bf16.msra.mxu0 0
  %4162 = vmatprep.subr.bf16.mxu0 0
  %4163 = vmatpush1.bf16.msra.mxu0 0
  %4164 = vmatprep.subr.bf16.mxu0 0
  %4165 = vmatpush1.bf16.msra.mxu0 0
  %4166 = vmatprep.mubr.bf16.mxu0 %v4005
  %4167 = vmatmul.mubr.bf16.gmra.mrb[0].mxu0 %v1310
  %v4168 = vpop.f32.mrb[0].mxu0
  %v4169 = vadd.f32 %v4128, %v4168
  %v4170 = vpop.f32.mrb[0].mxu0
  %v4171 = vpop.f32.mrb[0].mxu0
  %v4172 = vadd.f32 %v4131, %v4171
  %v4173 = vpop.f32.mrb[0].mxu0
  %4174 = vdwg.mxu0
  %v4175 = vld [vmem:[%s0 + $0x38] sm:$0xff]
  %v4176 = vld [vmem:[%s0 + $0x40] sm:$0xff]
  %v4177 = vld [vmem:[%s0 + $0x48] sm:$0xff]
  %v4178 = vld [vmem:[%s0 + $0x50] sm:$0xff]
  %v4179 = vld [vmem:[%s0 + $0x58] sm:$0xff]
  %v4180 = vld [vmem:[%s0 + $0x60] sm:$0xff]
  %v4181 = vld [vmem:[%s0 + $0xa0] sm:$0xff]
  %v4182 = vld [vmem:[%s0 + $0xa8] sm:$0xff]
  %v4183 = vld [vmem:[%s0 + $0xb0] sm:$0xff]
  %v4184 = vld [vmem:[%s0 + $0xb8] sm:$0xff]
  %v4185 = vld [vmem:[%s0 + $0xc0] sm:$0xff]
  %v4186 = vld [vmem:[%s0 + $0xc8] sm:$0xff]
  %v4187 = vpack.c.bf16 %v4181, %v4175
  %v4188 = vpack.c.bf16 %v4182, %v4176
  %v4189 = vpack.c.bf16 %v4183, %v4177
  %v4190 = vpack.c.bf16 %v4184, %v4178
  %v4191 = vpack.c.bf16 %v4185, %v4179
  %v4192 = vpack.c.bf16 %v4186, %v4180
  %v4193 = vld [vmem:[%s3] sm:$0xff]
  %v4194 = vld [vmem:[%s3 + $0x8] sm:$0xff]
  %v4195 = vld [vmem:[%s3 + $0x10] sm:$0xff]
  %v4196 = vld [vmem:[%s3 + $0x18] sm:$0xff]
  %v4197 = vld [vmem:[%s3 + $0x20] sm:$0xff]
  %v4198 = vld [vmem:[%s3 + $0x28] sm:$0xff]
  %v4199 = vld [vmem:[%s3 + $0x30] sm:$0xff]
  %v4200 = vld [vmem:[%s3 + $0x38] sm:$0xff]
  %v4201 = vld [vmem:[%s3 + $0x40] sm:$0xff]
  %v4202 = vld [vmem:[%s3 + $0x48] sm:$0xff]
  %v4203 = vld [vmem:[%s3 + $0x50] sm:$0xff]
  %v4204 = vld [vmem:[%s3 + $0x58] sm:$0xff]
  %v4205 = vld [vmem:[%s3 + $0x60] sm:$0xff]
  %v4206 = vld [vmem:[%s3 + $0x68] sm:$0xff]
  %v4207 = vld [vmem:[%s3 + $0x70] sm:$0xff]
  %v4208 = vld [vmem:[%s3 + $0x78] sm:$0xff]
  %v4209 = vld [vmem:[%s3 + $0x80] sm:$0xff]
  %v4210 = vld [vmem:[%s3 + $0x88] sm:$0xff]
  %v4211 = vld [vmem:[%s3 + $0x90] sm:$0xff]
  %v4212 = vld [vmem:[%s3 + $0x98] sm:$0xff]
  %v4213 = vld [vmem:[%s3 + $0xa0] sm:$0xff]
  %v4214 = vld [vmem:[%s3 + $0xa8] sm:$0xff]
  %v4215 = vld [vmem:[%s3 + $0xb0] sm:$0xff]
  %v4216 = vld [vmem:[%s3 + $0xb8] sm:$0xff]
  %v4217 = vld [vmem:[%s3 + $0xc0] sm:$0xff]
  %v4218 = vld [vmem:[%s3 + $0xc8] sm:$0xff]
  %v4219 = vld [vmem:[%s3 + $0xd0] sm:$0xff]
  %v4220 = vld [vmem:[%s3 + $0xd8] sm:$0xff]
  %v4221 = vld [vmem:[%s3 + $0xe0] sm:$0xff]
  %v4222 = vld [vmem:[%s3 + $0xe8] sm:$0xff]
  %v4223 = vld [vmem:[%s3 + $0xf0] sm:$0xff]
  %v4224 = vld [vmem:[%s3 + $0xf8] sm:$0xff]
  %v4225 = vld [vmem:[%s3 + $0x100] sm:$0xff]
  %v4226 = vld [vmem:[%s3 + $0x108] sm:$0xff]
  %v4227 = vld [vmem:[%s3 + $0x110] sm:$0xff]
  %v4228 = vld [vmem:[%s3 + $0x118] sm:$0xff]
  %v4229 = vld [vmem:[%s3 + $0x120] sm:$0xff]
  %v4230 = vld [vmem:[%s3 + $0x128] sm:$0xff]
  %v4231 = vld [vmem:[%s3 + $0x130] sm:$0xff]
  %v4232 = vld [vmem:[%s3 + $0x138] sm:$0xff]
  %v4233 = vld [vmem:[%s3 + $0x140] sm:$0xff]
  %v4234 = vld [vmem:[%s3 + $0x148] sm:$0xff]
  %v4235 = vld [vmem:[%s3 + $0x150] sm:$0xff]
  %v4236 = vld [vmem:[%s3 + $0x158] sm:$0xff]
  %v4237 = vld [vmem:[%s3 + $0x160] sm:$0xff]
  %v4238 = vld [vmem:[%s3 + $0x168] sm:$0xff]
  %v4239 = vld [vmem:[%s3 + $0x170] sm:$0xff]
  %v4240 = vld [vmem:[%s3 + $0x178] sm:$0xff]
  %v4241 = vld [vmem:[%s3 + $0x180] sm:$0xff]
  %v4242 = vld [vmem:[%s3 + $0x188] sm:$0xff]
  %v4243 = vld [vmem:[%s3 + $0x190] sm:$0xff]
  %v4244 = vld [vmem:[%s3 + $0x198] sm:$0xff]
  %v4245 = vld [vmem:[%s3 + $0x1a0] sm:$0xff]
  %v4246 = vld [vmem:[%s3 + $0x1a8] sm:$0xff]
  %v4247 = vld [vmem:[%s3 + $0x1b0] sm:$0xff]
  %v4248 = vld [vmem:[%s3 + $0x1b8] sm:$0xff]
  %v4249 = vld [vmem:[%s3 + $0x1c0] sm:$0xff]
  %v4250 = vld [vmem:[%s3 + $0x1c8] sm:$0xff]
  %v4251 = vld [vmem:[%s3 + $0x1d0] sm:$0xff]
  %v4252 = vld [vmem:[%s3 + $0x1d8] sm:$0xff]
  %v4253 = vld [vmem:[%s3 + $0x1e0] sm:$0xff]
  %v4254 = vld [vmem:[%s3 + $0x1e8] sm:$0xff]
  %v4255 = vld [vmem:[%s3 + $0x1f0] sm:$0xff]
  %v4256 = vld [vmem:[%s3 + $0x1f8] sm:$0xff]
  %v4257 = vld [vmem:[%s3 + $0x200] sm:$0xff]
  %v4258 = vld [vmem:[%s3 + $0x208] sm:$0xff]
  %v4259 = vld [vmem:[%s3 + $0x210] sm:$0xff]
  %v4260 = vld [vmem:[%s3 + $0x218] sm:$0xff]
  %v4261 = vld [vmem:[%s3 + $0x220] sm:$0xff]
  %v4262 = vld [vmem:[%s3 + $0x228] sm:$0xff]
  %v4263 = vld [vmem:[%s3 + $0x230] sm:$0xff]
  %v4264 = vld [vmem:[%s3 + $0x238] sm:$0xff]
  %v4265 = vld [vmem:[%s3 + $0x240] sm:$0xff]
  %v4266 = vld [vmem:[%s3 + $0x248] sm:$0xff]
  %v4267 = vld [vmem:[%s3 + $0x250] sm:$0xff]
  %v4268 = vld [vmem:[%s3 + $0x258] sm:$0xff]
  %v4269 = vld [vmem:[%s3 + $0x260] sm:$0xff]
  %v4270 = vld [vmem:[%s3 + $0x268] sm:$0xff]
  %v4271 = vld [vmem:[%s3 + $0x270] sm:$0xff]
  %v4272 = vld [vmem:[%s3 + $0x278] sm:$0xff]
  %v4273 = vld [vmem:[%s3 + $0x280] sm:$0xff]
  %v4274 = vld [vmem:[%s3 + $0x288] sm:$0xff]
  %v4275 = vld [vmem:[%s3 + $0x290] sm:$0xff]
  %v4276 = vld [vmem:[%s3 + $0x298] sm:$0xff]
  %v4277 = vld [vmem:[%s3 + $0x2a0] sm:$0xff]
  %v4278 = vld [vmem:[%s3 + $0x2a8] sm:$0xff]
  %v4279 = vld [vmem:[%s3 + $0x2b0] sm:$0xff]
  %v4280 = vld [vmem:[%s3 + $0x2b8] sm:$0xff]
  %v4281 = vld [vmem:[%s3 + $0x2c0] sm:$0xff]
  %v4282 = vld [vmem:[%s3 + $0x2c8] sm:$0xff]
  %v4283 = vld [vmem:[%s3 + $0x2d0] sm:$0xff]
  %v4284 = vld [vmem:[%s3 + $0x2d8] sm:$0xff]
  %v4285 = vld [vmem:[%s3 + $0x2e0] sm:$0xff]
  %v4286 = vld [vmem:[%s3 + $0x2e8] sm:$0xff]
  %v4287 = vld [vmem:[%s3 + $0x2f0] sm:$0xff]
  %v4288 = vld [vmem:[%s3 + $0x2f8] sm:$0xff]
  %v4289 = vld [vmem:[%s3 + $0x300] sm:$0xff]
  %v4290 = vld [vmem:[%s3 + $0x308] sm:$0xff]
  %v4291 = vld [vmem:[%s3 + $0x310] sm:$0xff]
  %v4292 = vld [vmem:[%s3 + $0x318] sm:$0xff]
  %v4293 = vld [vmem:[%s3 + $0x320] sm:$0xff]
  %v4294 = vld [vmem:[%s3 + $0x328] sm:$0xff]
  %v4295 = vld [vmem:[%s3 + $0x330] sm:$0xff]
  %v4296 = vld [vmem:[%s3 + $0x338] sm:$0xff]
  %v4297 = vld [vmem:[%s3 + $0x340] sm:$0xff]
  %v4298 = vld [vmem:[%s3 + $0x348] sm:$0xff]
  %v4299 = vld [vmem:[%s3 + $0x350] sm:$0xff]
  %v4300 = vld [vmem:[%s3 + $0x358] sm:$0xff]
  %v4301 = vld [vmem:[%s3 + $0x360] sm:$0xff]
  %v4302 = vld [vmem:[%s3 + $0x368] sm:$0xff]
  %v4303 = vld [vmem:[%s3 + $0x370] sm:$0xff]
  %v4304 = vld [vmem:[%s3 + $0x378] sm:$0xff]
  %v4305 = vld [vmem:[%s3 + $0x380] sm:$0xff]
  %v4306 = vld [vmem:[%s3 + $0x388] sm:$0xff]
  %v4307 = vld [vmem:[%s3 + $0x390] sm:$0xff]
  %v4308 = vld [vmem:[%s3 + $0x398] sm:$0xff]
  %v4309 = vld [vmem:[%s3 + $0x3a0] sm:$0xff]
  %v4310 = vld [vmem:[%s3 + $0x3a8] sm:$0xff]
  %v4311 = vld [vmem:[%s3 + $0x3b0] sm:$0xff]
  %v4312 = vld [vmem:[%s3 + $0x3b8] sm:$0xff]
  %v4313 = vld [vmem:[%s3 + $0x3c0] sm:$0xff]
  %v4314 = vld [vmem:[%s3 + $0x3c8] sm:$0xff]
  %v4315 = vld [vmem:[%s3 + $0x3d0] sm:$0xff]
  %v4316 = vld [vmem:[%s3 + $0x3d8] sm:$0xff]
  %v4317 = vld [vmem:[%s3 + $0x3e0] sm:$0xff]
  %v4318 = vld [vmem:[%s3 + $0x3e8] sm:$0xff]
  %v4319 = vld [vmem:[%s3 + $0x3f0] sm:$0xff]
  %v4320 = vld [vmem:[%s3 + $0x3f8] sm:$0xff]
  %v4321 = vld [vmem:[%s3 + $0x400] sm:$0xff]
  %v4322 = vld [vmem:[%s3 + $0x408] sm:$0xff]
  %v4323 = vld [vmem:[%s3 + $0x410] sm:$0xff]
  %v4324 = vld [vmem:[%s3 + $0x418] sm:$0xff]
  %v4325 = vld [vmem:[%s3 + $0x420] sm:$0xff]
  %v4326 = vld [vmem:[%s3 + $0x428] sm:$0xff]
  %v4327 = vld [vmem:[%s3 + $0x430] sm:$0xff]
  %v4328 = vld [vmem:[%s3 + $0x438] sm:$0xff]
  %v4329 = vld [vmem:[%s3 + $0x440] sm:$0xff]
  %v4330 = vld [vmem:[%s3 + $0x448] sm:$0xff]
  %v4331 = vld [vmem:[%s3 + $0x450] sm:$0xff]
  %v4332 = vld [vmem:[%s3 + $0x458] sm:$0xff]
  %v4333 = vld [vmem:[%s3 + $0x460] sm:$0xff]
  %v4334 = vld [vmem:[%s3 + $0x468] sm:$0xff]
  %v4335 = vld [vmem:[%s3 + $0x470] sm:$0xff]
  %v4336 = vld [vmem:[%s3 + $0x478] sm:$0xff]
  %v4337 = vld [vmem:[%s3 + $0x480] sm:$0xff]
  %v4338 = vld [vmem:[%s3 + $0x488] sm:$0xff]
  %v4339 = vld [vmem:[%s3 + $0x490] sm:$0xff]
  %v4340 = vld [vmem:[%s3 + $0x498] sm:$0xff]
  %v4341 = vld [vmem:[%s3 + $0x4a0] sm:$0xff]
  %v4342 = vld [vmem:[%s3 + $0x4a8] sm:$0xff]
  %v4343 = vld [vmem:[%s3 + $0x4b0] sm:$0xff]
  %v4344 = vld [vmem:[%s3 + $0x4b8] sm:$0xff]
  %v4345 = vld [vmem:[%s3 + $0x4c0] sm:$0xff]
  %v4346 = vld [vmem:[%s3 + $0x4c8] sm:$0xff]
  %v4347 = vld [vmem:[%s3 + $0x4d0] sm:$0xff]
  %v4348 = vld [vmem:[%s3 + $0x4d8] sm:$0xff]
  %v4349 = vld [vmem:[%s3 + $0x4e0] sm:$0xff]
  %v4350 = vld [vmem:[%s3 + $0x4e8] sm:$0xff]
  %v4351 = vld [vmem:[%s3 + $0x4f0] sm:$0xff]
  %v4352 = vld [vmem:[%s3 + $0x4f8] sm:$0xff]
  %v4353 = vld [vmem:[%s3 + $0x500] sm:$0xff]
  %v4354 = vld [vmem:[%s3 + $0x508] sm:$0xff]
  %v4355 = vld [vmem:[%s3 + $0x510] sm:$0xff]
  %v4356 = vld [vmem:[%s3 + $0x518] sm:$0xff]
  %v4357 = vld [vmem:[%s3 + $0x520] sm:$0xff]
  %v4358 = vld [vmem:[%s3 + $0x528] sm:$0xff]
  %v4359 = vld [vmem:[%s3 + $0x530] sm:$0xff]
  %v4360 = vld [vmem:[%s3 + $0x538] sm:$0xff]
  %v4361 = vld [vmem:[%s3 + $0x540] sm:$0xff]
  %v4362 = vld [vmem:[%s3 + $0x548] sm:$0xff]
  %v4363 = vld [vmem:[%s3 + $0x550] sm:$0xff]
  %v4364 = vld [vmem:[%s3 + $0x558] sm:$0xff]
  %v4365 = vld [vmem:[%s3 + $0x560] sm:$0xff]
  %v4366 = vld [vmem:[%s3 + $0x568] sm:$0xff]
  %v4367 = vld [vmem:[%s3 + $0x570] sm:$0xff]
  %v4368 = vld [vmem:[%s3 + $0x578] sm:$0xff]
  %v4545 = vunpack.c.l.b16 %v4193
  %v4546 = vunpack.c.h.b16 %v4193
  %v4547 = vunpack.c.l.b16 %v4194
  %v4548 = vunpack.c.h.b16 %v4194
  %v4549 = vunpack.c.l.b16 %v4195
  %v4550 = vunpack.c.h.b16 %v4195
  %v4551 = vunpack.c.l.b16 %v4196
  %v4552 = vunpack.c.h.b16 %v4196
  %v4553 = vunpack.c.l.b16 %v4197
  %v4554 = vunpack.c.h.b16 %v4197
  %v4555 = vunpack.c.l.b16 %v4198
  %v4556 = vunpack.c.h.b16 %v4198
  %v4557 = vunpack.c.l.b16 %v4199
  %v4558 = vunpack.c.h.b16 %v4199
  %v4559 = vunpack.c.l.b16 %v4200
  %v4560 = vunpack.c.h.b16 %v4200
  %v4561 = vunpack.c.l.b16 %v4201
  %v4562 = vunpack.c.h.b16 %v4201
  %v4563 = vunpack.c.l.b16 %v4202
  %v4564 = vunpack.c.h.b16 %v4202
  %v4565 = vunpack.c.l.b16 %v4203
  %v4566 = vunpack.c.h.b16 %v4203
  %v4567 = vunpack.c.l.b16 %v4204
  %v4568 = vunpack.c.h.b16 %v4204
  %v4569 = vunpack.c.l.b16 %v4205
  %v4570 = vunpack.c.h.b16 %v4205
  %v4571 = vunpack.c.l.b16 %v4206
  %v4572 = vunpack.c.h.b16 %v4206
  %v4573 = vunpack.c.l.b16 %v4207
  %v4574 = vunpack.c.h.b16 %v4207
  %v4575 = vunpack.c.l.b16 %v4208
  %v4576 = vunpack.c.h.b16 %v4208
  %v4577 = vunpack.c.l.b16 %v4209
  %v4578 = vunpack.c.h.b16 %v4209
  %v4579 = vunpack.c.l.b16 %v4210
  %v4580 = vunpack.c.h.b16 %v4210
  %v4581 = vunpack.c.l.b16 %v4211
  %v4582 = vunpack.c.h.b16 %v4211
  %v4583 = vunpack.c.l.b16 %v4212
  %v4584 = vunpack.c.h.b16 %v4212
  %v4585 = vunpack.c.l.b16 %v4213
  %v4586 = vunpack.c.h.b16 %v4213
  %v4587 = vunpack.c.l.b16 %v4214
  %v4588 = vunpack.c.h.b16 %v4214
  %v4589 = vunpack.c.l.b16 %v4215
  %v4590 = vunpack.c.h.b16 %v4215
  %v4591 = vunpack.c.l.b16 %v4216
  %v4592 = vunpack.c.h.b16 %v4216
  %v4593 = vunpack.c.l.b16 %v4217
  %v4594 = vunpack.c.h.b16 %v4217
  %v4595 = vunpack.c.l.b16 %v4218
  %v4596 = vunpack.c.h.b16 %v4218
  %v4597 = vunpack.c.l.b16 %v4219
  %v4598 = vunpack.c.h.b16 %v4219
  %v4599 = vunpack.c.l.b16 %v4220
  %v4600 = vunpack.c.h.b16 %v4220
  %v4601 = vunpack.c.l.b16 %v4221
  %v4602 = vunpack.c.h.b16 %v4221
  %v4603 = vunpack.c.l.b16 %v4222
  %v4604 = vunpack.c.h.b16 %v4222
  %v4605 = vunpack.c.l.b16 %v4223
  %v4606 = vunpack.c.h.b16 %v4223
  %v4607 = vunpack.c.l.b16 %v4224
  %v4608 = vunpack.c.h.b16 %v4224
  %v4609 = vunpack.c.l.b16 %v4225
  %v4610 = vunpack.c.h.b16 %v4225
  %v4611 = vunpack.c.l.b16 %v4226
  %v4612 = vunpack.c.h.b16 %v4226
  %v4613 = vunpack.c.l.b16 %v4227
  %v4614 = vunpack.c.h.b16 %v4227
  %v4615 = vunpack.c.l.b16 %v4228
  %v4616 = vunpack.c.h.b16 %v4228
  %v4617 = vunpack.c.l.b16 %v4229
  %v4618 = vunpack.c.h.b16 %v4229
  %v4619 = vunpack.c.l.b16 %v4230
  %v4620 = vunpack.c.h.b16 %v4230
  %v4621 = vunpack.c.l.b16 %v4231
  %v4622 = vunpack.c.h.b16 %v4231
  %v4623 = vunpack.c.l.b16 %v4232
  %v4624 = vunpack.c.h.b16 %v4232
  %v4625 = vunpack.c.l.b16 %v4233
  %v4626 = vunpack.c.h.b16 %v4233
  %v4627 = vunpack.c.l.b16 %v4234
  %v4628 = vunpack.c.h.b16 %v4234
  %v4629 = vunpack.c.l.b16 %v4235
  %v4630 = vunpack.c.h.b16 %v4235
  %v4631 = vunpack.c.l.b16 %v4236
  %v4632 = vunpack.c.h.b16 %v4236
  %v4633 = vunpack.c.l.b16 %v4237
  %v4634 = vunpack.c.h.b16 %v4237
  %v4635 = vunpack.c.l.b16 %v4238
  %v4636 = vunpack.c.h.b16 %v4238
  %v4637 = vunpack.c.l.b16 %v4239
  %v4638 = vunpack.c.h.b16 %v4239
  %v4639 = vunpack.c.l.b16 %v4240
  %v4640 = vunpack.c.h.b16 %v4240
  %v4641 = vunpack.c.l.b16 %v4241
  %v4642 = vunpack.c.h.b16 %v4241
  %v4643 = vunpack.c.l.b16 %v4242
  %v4644 = vunpack.c.h.b16 %v4242
  %v4645 = vunpack.c.l.b16 %v4243
  %v4646 = vunpack.c.h.b16 %v4243
  %v4647 = vunpack.c.l.b16 %v4244
  %v4648 = vunpack.c.h.b16 %v4244
  %v4649 = vunpack.c.l.b16 %v4245
  %v4650 = vunpack.c.h.b16 %v4245
  %v4651 = vunpack.c.l.b16 %v4246
  %v4652 = vunpack.c.h.b16 %v4246
  %v4653 = vunpack.c.l.b16 %v4247
  %v4654 = vunpack.c.h.b16 %v4247
  %v4655 = vunpack.c.l.b16 %v4248
  %v4656 = vunpack.c.h.b16 %v4248
  %v4657 = vunpack.c.l.b16 %v4249
  %v4658 = vunpack.c.h.b16 %v4249
  %v4659 = vunpack.c.l.b16 %v4250
  %v4660 = vunpack.c.h.b16 %v4250
  %v4661 = vunpack.c.l.b16 %v4251
  %v4662 = vunpack.c.h.b16 %v4251
  %v4663 = vunpack.c.l.b16 %v4252
  %v4664 = vunpack.c.h.b16 %v4252
  %v4665 = vunpack.c.l.b16 %v4253
  %v4666 = vunpack.c.h.b16 %v4253
  %v4667 = vunpack.c.l.b16 %v4254
  %v4668 = vunpack.c.h.b16 %v4254
  %v4669 = vunpack.c.l.b16 %v4255
  %v4670 = vunpack.c.h.b16 %v4255
  %v4671 = vunpack.c.l.b16 %v4256
  %v4672 = vunpack.c.h.b16 %v4256
  %v4673 = vunpack.c.l.b16 %v4257
  %v4674 = vunpack.c.h.b16 %v4257
  %v4675 = vunpack.c.l.b16 %v4258
  %v4676 = vunpack.c.h.b16 %v4258
  %v4677 = vunpack.c.l.b16 %v4259
  %v4678 = vunpack.c.h.b16 %v4259
  %v4679 = vunpack.c.l.b16 %v4260
  %v4680 = vunpack.c.h.b16 %v4260
  %v4681 = vunpack.c.l.b16 %v4261
  %v4682 = vunpack.c.h.b16 %v4261
  %v4683 = vunpack.c.l.b16 %v4262
  %v4684 = vunpack.c.h.b16 %v4262
  %v4685 = vunpack.c.l.b16 %v4263
  %v4686 = vunpack.c.h.b16 %v4263
  %v4687 = vunpack.c.l.b16 %v4264
  %v4688 = vunpack.c.h.b16 %v4264
  %v4689 = vunpack.c.l.b16 %v4265
  %v4690 = vunpack.c.h.b16 %v4265
  %v4691 = vunpack.c.l.b16 %v4266
  %v4692 = vunpack.c.h.b16 %v4266
  %v4693 = vunpack.c.l.b16 %v4267
  %v4694 = vunpack.c.h.b16 %v4267
  %v4695 = vunpack.c.l.b16 %v4268
  %v4696 = vunpack.c.h.b16 %v4268
  %v4697 = vunpack.c.l.b16 %v4269
  %v4698 = vunpack.c.h.b16 %v4269
  %v4699 = vunpack.c.l.b16 %v4270
  %v4700 = vunpack.c.h.b16 %v4270
  %v4701 = vunpack.c.l.b16 %v4271
  %v4702 = vunpack.c.h.b16 %v4271
  %v4703 = vunpack.c.l.b16 %v4272
  %v4704 = vunpack.c.h.b16 %v4272
  %v4705 = vunpack.c.l.b16 %v4273
  %v4706 = vunpack.c.h.b16 %v4273
  %v4707 = vunpack.c.l.b16 %v4274
  %v4708 = vunpack.c.h.b16 %v4274
  %v4709 = vunpack.c.l.b16 %v4275
  %v4710 = vunpack.c.h.b16 %v4275
  %v4711 = vunpack.c.l.b16 %v4276
  %v4712 = vunpack.c.h.b16 %v4276
  %v4713 = vunpack.c.l.b16 %v4277
  %v4714 = vunpack.c.h.b16 %v4277
  %v4715 = vunpack.c.l.b16 %v4278
  %v4716 = vunpack.c.h.b16 %v4278
  %v4717 = vunpack.c.l.b16 %v4279
  %v4718 = vunpack.c.h.b16 %v4279
  %v4719 = vunpack.c.l.b16 %v4280
  %v4720 = vunpack.c.h.b16 %v4280
  %v4721 = vunpack.c.l.b16 %v4281
  %v4722 = vunpack.c.h.b16 %v4281
  %v4723 = vunpack.c.l.b16 %v4282
  %v4724 = vunpack.c.h.b16 %v4282
  %v4725 = vunpack.c.l.b16 %v4283
  %v4726 = vunpack.c.h.b16 %v4283
  %v4727 = vunpack.c.l.b16 %v4284
  %v4728 = vunpack.c.h.b16 %v4284
  %v4729 = vunpack.c.l.b16 %v4285
  %v4730 = vunpack.c.h.b16 %v4285
  %v4731 = vunpack.c.l.b16 %v4286
  %v4732 = vunpack.c.h.b16 %v4286
  %v4733 = vunpack.c.l.b16 %v4287
  %v4734 = vunpack.c.h.b16 %v4287
  %v4735 = vunpack.c.l.b16 %v4288
  %v4736 = vunpack.c.h.b16 %v4288
  %v4737 = vunpack.c.l.b16 %v4289
  %v4738 = vunpack.c.h.b16 %v4289
  %v4739 = vunpack.c.l.b16 %v4290
  %v4740 = vunpack.c.h.b16 %v4290
  %v4741 = vunpack.c.l.b16 %v4291
  %v4742 = vunpack.c.h.b16 %v4291
  %v4743 = vunpack.c.l.b16 %v4292
  %v4744 = vunpack.c.h.b16 %v4292
  %v4745 = vunpack.c.l.b16 %v4293
  %v4746 = vunpack.c.h.b16 %v4293
  %v4747 = vunpack.c.l.b16 %v4294
  %v4748 = vunpack.c.h.b16 %v4294
  %v4749 = vunpack.c.l.b16 %v4295
  %v4750 = vunpack.c.h.b16 %v4295
  %v4751 = vunpack.c.l.b16 %v4296
  %v4752 = vunpack.c.h.b16 %v4296
  %v4753 = vunpack.c.l.b16 %v4297
  %v4754 = vunpack.c.h.b16 %v4297
  %v4755 = vunpack.c.l.b16 %v4298
  %v4756 = vunpack.c.h.b16 %v4298
  %v4757 = vunpack.c.l.b16 %v4299
  %v4758 = vunpack.c.h.b16 %v4299
  %v4759 = vunpack.c.l.b16 %v4300
  %v4760 = vunpack.c.h.b16 %v4300
  %v4761 = vunpack.c.l.b16 %v4301
  %v4762 = vunpack.c.h.b16 %v4301
  %v4763 = vunpack.c.l.b16 %v4302
  %v4764 = vunpack.c.h.b16 %v4302
  %v4765 = vunpack.c.l.b16 %v4303
  %v4766 = vunpack.c.h.b16 %v4303
  %v4767 = vunpack.c.l.b16 %v4304
  %v4768 = vunpack.c.h.b16 %v4304
  %v4769 = vunpack.c.l.b16 %v4305
  %v4770 = vunpack.c.h.b16 %v4305
  %v4771 = vunpack.c.l.b16 %v4306
  %v4772 = vunpack.c.h.b16 %v4306
  %v4773 = vunpack.c.l.b16 %v4307
  %v4774 = vunpack.c.h.b16 %v4307
  %v4775 = vunpack.c.l.b16 %v4308
  %v4776 = vunpack.c.h.b16 %v4308
  %v4777 = vunpack.c.l.b16 %v4309
  %v4778 = vunpack.c.h.b16 %v4309
  %v4779 = vunpack.c.l.b16 %v4310
  %v4780 = vunpack.c.h.b16 %v4310
  %v4781 = vunpack.c.l.b16 %v4311
  %v4782 = vunpack.c.h.b16 %v4311
  %v4783 = vunpack.c.l.b16 %v4312
  %v4784 = vunpack.c.h.b16 %v4312
  %v4785 = vunpack.c.l.b16 %v4313
  %v4786 = vunpack.c.h.b16 %v4313
  %v4787 = vunpack.c.l.b16 %v4314
  %v4788 = vunpack.c.h.b16 %v4314
  %v4789 = vunpack.c.l.b16 %v4315
  %v4790 = vunpack.c.h.b16 %v4315
  %v4791 = vunpack.c.l.b16 %v4316
  %v4792 = vunpack.c.h.b16 %v4316
  %v4793 = vunpack.c.l.b16 %v4317
  %v4794 = vunpack.c.h.b16 %v4317
  %v4795 = vunpack.c.l.b16 %v4318
  %v4796 = vunpack.c.h.b16 %v4318
  %v4797 = vunpack.c.l.b16 %v4319
  %v4798 = vunpack.c.h.b16 %v4319
  %v4799 = vunpack.c.l.b16 %v4320
  %v4800 = vunpack.c.h.b16 %v4320
  %v4801 = vunpack.c.l.b16 %v4321
  %v4802 = vunpack.c.h.b16 %v4321
  %v4803 = vunpack.c.l.b16 %v4322
  %v4804 = vunpack.c.h.b16 %v4322
  %v4805 = vunpack.c.l.b16 %v4323
  %v4806 = vunpack.c.h.b16 %v4323
  %v4807 = vunpack.c.l.b16 %v4324
  %v4808 = vunpack.c.h.b16 %v4324
  %v4809 = vunpack.c.l.b16 %v4325
  %v4810 = vunpack.c.h.b16 %v4325
  %v4811 = vunpack.c.l.b16 %v4326
  %v4812 = vunpack.c.h.b16 %v4326
  %v4813 = vunpack.c.l.b16 %v4327
  %v4814 = vunpack.c.h.b16 %v4327
  %v4815 = vunpack.c.l.b16 %v4328
  %v4816 = vunpack.c.h.b16 %v4328
  %v4817 = vunpack.c.l.b16 %v4329
  %v4818 = vunpack.c.h.b16 %v4329
  %v4819 = vunpack.c.l.b16 %v4330
  %v4820 = vunpack.c.h.b16 %v4330
  %v4821 = vunpack.c.l.b16 %v4331
  %v4822 = vunpack.c.h.b16 %v4331
  %v4823 = vunpack.c.l.b16 %v4332
  %v4824 = vunpack.c.h.b16 %v4332
  %v4825 = vunpack.c.l.b16 %v4333
  %v4826 = vunpack.c.h.b16 %v4333
  %v4827 = vunpack.c.l.b16 %v4334
  %v4828 = vunpack.c.h.b16 %v4334
  %v4829 = vunpack.c.l.b16 %v4335
  %v4830 = vunpack.c.h.b16 %v4335
  %v4831 = vunpack.c.l.b16 %v4336
  %v4832 = vunpack.c.h.b16 %v4336
  %v4833 = vunpack.c.l.b16 %v4337
  %v4834 = vunpack.c.h.b16 %v4337
  %v4835 = vunpack.c.l.b16 %v4338
  %v4836 = vunpack.c.h.b16 %v4338
  %v4837 = vunpack.c.l.b16 %v4339
  %v4838 = vunpack.c.h.b16 %v4339
  %v4839 = vunpack.c.l.b16 %v4340
  %v4840 = vunpack.c.h.b16 %v4340
  %v4841 = vunpack.c.l.b16 %v4341
  %v4842 = vunpack.c.h.b16 %v4341
  %v4843 = vunpack.c.l.b16 %v4342
  %v4844 = vunpack.c.h.b16 %v4342
  %v4845 = vunpack.c.l.b16 %v4343
  %v4846 = vunpack.c.h.b16 %v4343
  %v4847 = vunpack.c.l.b16 %v4344
  %v4848 = vunpack.c.h.b16 %v4344
  %v4849 = vunpack.c.l.b16 %v4345
  %v4850 = vunpack.c.h.b16 %v4345
  %v4851 = vunpack.c.l.b16 %v4346
  %v4852 = vunpack.c.h.b16 %v4346
  %v4853 = vunpack.c.l.b16 %v4347
  %v4854 = vunpack.c.h.b16 %v4347
  %v4855 = vunpack.c.l.b16 %v4348
  %v4856 = vunpack.c.h.b16 %v4348
  %v4857 = vunpack.c.l.b16 %v4349
  %v4858 = vunpack.c.h.b16 %v4349
  %v4859 = vunpack.c.l.b16 %v4350
  %v4860 = vunpack.c.h.b16 %v4350
  %v4861 = vunpack.c.l.b16 %v4351
  %v4862 = vunpack.c.h.b16 %v4351
  %v4863 = vunpack.c.l.b16 %v4352
  %v4864 = vunpack.c.h.b16 %v4352
  %v4865 = vunpack.c.l.b16 %v4353
  %v4866 = vunpack.c.h.b16 %v4353
  %v4867 = vunpack.c.l.b16 %v4354
  %v4868 = vunpack.c.h.b16 %v4354
  %v4869 = vunpack.c.l.b16 %v4355
  %v4870 = vunpack.c.h.b16 %v4355
  %v4871 = vunpack.c.l.b16 %v4356
  %v4872 = vunpack.c.h.b16 %v4356
  %v4873 = vunpack.c.l.b16 %v4357
  %v4874 = vunpack.c.h.b16 %v4357
  %v4875 = vunpack.c.l.b16 %v4358
  %v4876 = vunpack.c.h.b16 %v4358
  %v4877 = vunpack.c.l.b16 %v4359
  %v4878 = vunpack.c.h.b16 %v4359
  %v4879 = vunpack.c.l.b16 %v4360
  %v4880 = vunpack.c.h.b16 %v4360
  %v4881 = vunpack.c.l.b16 %v4361
  %v4882 = vunpack.c.h.b16 %v4361
  %v4883 = vunpack.c.l.b16 %v4362
  %v4884 = vunpack.c.h.b16 %v4362
  %v4885 = vunpack.c.l.b16 %v4363
  %v4886 = vunpack.c.h.b16 %v4363
  %v4887 = vunpack.c.l.b16 %v4364
  %v4888 = vunpack.c.h.b16 %v4364
  %v4889 = vunpack.c.l.b16 %v4365
  %v4890 = vunpack.c.h.b16 %v4365
  %v4891 = vunpack.c.l.b16 %v4366
  %v4892 = vunpack.c.h.b16 %v4366
  %v4893 = vunpack.c.l.b16 %v4367
  %v4894 = vunpack.c.h.b16 %v4367
  %v4895 = vunpack.c.l.b16 %v4368
  %v4896 = vunpack.c.h.b16 %v4368
  %v4897 = vpack.c.b16 %v4549, %v4545
  %v4898 = vpack.c.b16 %v4550, %v4546
  %v4899 = vpack.c.b16 %v4551, %v4547
  %v4900 = vpack.c.b16 %v4552, %v4548
  %v4901 = vpack.c.b16 %v4557, %v4553
  %v4902 = vpack.c.b16 %v4558, %v4554
  %v4903 = vpack.c.b16 %v4559, %v4555
  %v4904 = vpack.c.b16 %v4560, %v4556
  %v4905 = vpack.c.b16 %v4565, %v4561
  %v4906 = vpack.c.b16 %v4566, %v4562
  %v4907 = vpack.c.b16 %v4567, %v4563
  %v4908 = vpack.c.b16 %v4568, %v4564
  %v4909 = vpack.c.b16 %v4573, %v4569
  %v4910 = vpack.c.b16 %v4574, %v4570
  %v4911 = vpack.c.b16 %v4575, %v4571
  %v4912 = vpack.c.b16 %v4576, %v4572
  %v4913 = vpack.c.b16 %v4581, %v4577
  %v4914 = vpack.c.b16 %v4582, %v4578
  %v4915 = vpack.c.b16 %v4583, %v4579
  %v4916 = vpack.c.b16 %v4584, %v4580
  %v4917 = vpack.c.b16 %v4589, %v4585
  %v4918 = vpack.c.b16 %v4590, %v4586
  %v4919 = vpack.c.b16 %v4591, %v4587
  %v4920 = vpack.c.b16 %v4592, %v4588
  %v4921 = vpack.c.b16 %v4597, %v4593
  %v4922 = vpack.c.b16 %v4598, %v4594
  %v4923 = vpack.c.b16 %v4599, %v4595
  %v4924 = vpack.c.b16 %v4600, %v4596
  %v4925 = vpack.c.b16 %v4605, %v4601
  %v4926 = vpack.c.b16 %v4606, %v4602
  %v4927 = vpack.c.b16 %v4607, %v4603
  %v4928 = vpack.c.b16 %v4608, %v4604
  %v4929 = vpack.c.b16 %v4613, %v4609
  %v4930 = vpack.c.b16 %v4614, %v4610
  %v4931 = vpack.c.b16 %v4615, %v4611
  %v4932 = vpack.c.b16 %v4616, %v4612
  %v4933 = vpack.c.b16 %v4621, %v4617
  %v4934 = vpack.c.b16 %v4622, %v4618
  %v4935 = vpack.c.b16 %v4623, %v4619
  %v4936 = vpack.c.b16 %v4624, %v4620
  %v4937 = vpack.c.b16 %v4629, %v4625
  %v4938 = vpack.c.b16 %v4630, %v4626
  %v4939 = vpack.c.b16 %v4631, %v4627
  %v4940 = vpack.c.b16 %v4632, %v4628
  %v4941 = vpack.c.b16 %v4637, %v4633
  %v4942 = vpack.c.b16 %v4638, %v4634
  %v4943 = vpack.c.b16 %v4639, %v4635
  %v4944 = vpack.c.b16 %v4640, %v4636
  %v4945 = vpack.c.b16 %v4645, %v4641
  %v4946 = vpack.c.b16 %v4646, %v4642
  %v4947 = vpack.c.b16 %v4647, %v4643
  %v4948 = vpack.c.b16 %v4648, %v4644
  %v4949 = vpack.c.b16 %v4653, %v4649
  %v4950 = vpack.c.b16 %v4654, %v4650
  %v4951 = vpack.c.b16 %v4655, %v4651
  %v4952 = vpack.c.b16 %v4656, %v4652
  %v4953 = vpack.c.b16 %v4661, %v4657
  %v4954 = vpack.c.b16 %v4662, %v4658
  %v4955 = vpack.c.b16 %v4663, %v4659
  %v4956 = vpack.c.b16 %v4664, %v4660
  %v4957 = vpack.c.b16 %v4669, %v4665
  %v4958 = vpack.c.b16 %v4670, %v4666
  %v4959 = vpack.c.b16 %v4671, %v4667
  %v4960 = vpack.c.b16 %v4672, %v4668
  %v4961 = vpack.c.b16 %v4677, %v4673
  %v4962 = vpack.c.b16 %v4678, %v4674
  %v4963 = vpack.c.b16 %v4679, %v4675
  %v4964 = vpack.c.b16 %v4680, %v4676
  %v4965 = vpack.c.b16 %v4685, %v4681
  %v4966 = vpack.c.b16 %v4686, %v4682
  %v4967 = vpack.c.b16 %v4687, %v4683
  %v4968 = vpack.c.b16 %v4688, %v4684
  %v4969 = vpack.c.b16 %v4693, %v4689
  %v4970 = vpack.c.b16 %v4694, %v4690
  %v4971 = vpack.c.b16 %v4695, %v4691
  %v4972 = vpack.c.b16 %v4696, %v4692
  %v4973 = vpack.c.b16 %v4701, %v4697
  %v4974 = vpack.c.b16 %v4702, %v4698
  %v4975 = vpack.c.b16 %v4703, %v4699
  %v4976 = vpack.c.b16 %v4704, %v4700
  %v4977 = vpack.c.b16 %v4709, %v4705
  %v4978 = vpack.c.b16 %v4710, %v4706
  %v4979 = vpack.c.b16 %v4711, %v4707
  %v4980 = vpack.c.b16 %v4712, %v4708
  %v4981 = vpack.c.b16 %v4717, %v4713
  %v4982 = vpack.c.b16 %v4718, %v4714
  %v4983 = vpack.c.b16 %v4719, %v4715
  %v4984 = vpack.c.b16 %v4720, %v4716
  %v4985 = vpack.c.b16 %v4725, %v4721
  %v4986 = vpack.c.b16 %v4726, %v4722
  %v4987 = vpack.c.b16 %v4727, %v4723
  %v4988 = vpack.c.b16 %v4728, %v4724
  %v4989 = vpack.c.b16 %v4733, %v4729
  %v4990 = vpack.c.b16 %v4734, %v4730
  %v4991 = vpack.c.b16 %v4735, %v4731
  %v4992 = vpack.c.b16 %v4736, %v4732
  %v4993 = vpack.c.b16 %v4741, %v4737
  %v4994 = vpack.c.b16 %v4742, %v4738
  %v4995 = vpack.c.b16 %v4743, %v4739
  %v4996 = vpack.c.b16 %v4744, %v4740
  %v4997 = vpack.c.b16 %v4749, %v4745
  %v4998 = vpack.c.b16 %v4750, %v4746
  %v4999 = vpack.c.b16 %v4751, %v4747
  %v5000 = vpack.c.b16 %v4752, %v4748
  %v5001 = vpack.c.b16 %v4757, %v4753
  %v5002 = vpack.c.b16 %v4758, %v4754
  %v5003 = vpack.c.b16 %v4759, %v4755
  %v5004 = vpack.c.b16 %v4760, %v4756
  %v5005 = vpack.c.b16 %v4765, %v4761
  %v5006 = vpack.c.b16 %v4766, %v4762
  %v5007 = vpack.c.b16 %v4767, %v4763
  %v5008 = vpack.c.b16 %v4768, %v4764
  %v5009 = vpack.c.b16 %v4773, %v4769
  %v5010 = vpack.c.b16 %v4774, %v4770
  %v5011 = vpack.c.b16 %v4775, %v4771
  %v5012 = vpack.c.b16 %v4776, %v4772
  %v5013 = vpack.c.b16 %v4781, %v4777
  %v5014 = vpack.c.b16 %v4782, %v4778
  %v5015 = vpack.c.b16 %v4783, %v4779
  %v5016 = vpack.c.b16 %v4784, %v4780
  %v5017 = vpack.c.b16 %v4789, %v4785
  %v5018 = vpack.c.b16 %v4790, %v4786
  %v5019 = vpack.c.b16 %v4791, %v4787
  %v5020 = vpack.c.b16 %v4792, %v4788
  %v5021 = vpack.c.b16 %v4797, %v4793
  %v5022 = vpack.c.b16 %v4798, %v4794
  %v5023 = vpack.c.b16 %v4799, %v4795
  %v5024 = vpack.c.b16 %v4800, %v4796
  %v5025 = vpack.c.b16 %v4805, %v4801
  %v5026 = vpack.c.b16 %v4806, %v4802
  %v5027 = vpack.c.b16 %v4807, %v4803
  %v5028 = vpack.c.b16 %v4808, %v4804
  %v5029 = vpack.c.b16 %v4813, %v4809
  %v5030 = vpack.c.b16 %v4814, %v4810
  %v5031 = vpack.c.b16 %v4815, %v4811
  %v5032 = vpack.c.b16 %v4816, %v4812
  %v5033 = vpack.c.b16 %v4821, %v4817
  %v5034 = vpack.c.b16 %v4822, %v4818
  %v5035 = vpack.c.b16 %v4823, %v4819
  %v5036 = vpack.c.b16 %v4824, %v4820
  %v5037 = vpack.c.b16 %v4829, %v4825
  %v5038 = vpack.c.b16 %v4830, %v4826
  %v5039 = vpack.c.b16 %v4831, %v4827
  %v5040 = vpack.c.b16 %v4832, %v4828
  %v5041 = vpack.c.b16 %v4837, %v4833
  %v5042 = vpack.c.b16 %v4838, %v4834
  %v5043 = vpack.c.b16 %v4839, %v4835
  %v5044 = vpack.c.b16 %v4840, %v4836
  %v5045 = vpack.c.b16 %v4845, %v4841
  %v5046 = vpack.c.b16 %v4846, %v4842
  %v5047 = vpack.c.b16 %v4847, %v4843
  %v5048 = vpack.c.b16 %v4848, %v4844
  %v5049 = vpack.c.b16 %v4853, %v4849
  %v5050 = vpack.c.b16 %v4854, %v4850
  %v5051 = vpack.c.b16 %v4855, %v4851
  %v5052 = vpack.c.b16 %v4856, %v4852
  %v5053 = vpack.c.b16 %v4861, %v4857
  %v5054 = vpack.c.b16 %v4862, %v4858
  %v5055 = vpack.c.b16 %v4863, %v4859
  %v5056 = vpack.c.b16 %v4864, %v4860
  %v5057 = vpack.c.b16 %v4869, %v4865
  %v5058 = vpack.c.b16 %v4870, %v4866
  %v5059 = vpack.c.b16 %v4871, %v4867
  %v5060 = vpack.c.b16 %v4872, %v4868
  %v5061 = vpack.c.b16 %v4877, %v4873
  %v5062 = vpack.c.b16 %v4878, %v4874
  %v5063 = vpack.c.b16 %v4879, %v4875
  %v5064 = vpack.c.b16 %v4880, %v4876
  %v5065 = vpack.c.b16 %v4885, %v4881
  %v5066 = vpack.c.b16 %v4886, %v4882
  %v5067 = vpack.c.b16 %v4887, %v4883
  %v5068 = vpack.c.b16 %v4888, %v4884
  %v5069 = vpack.c.b16 %v4893, %v4889
  %v5070 = vpack.c.b16 %v4894, %v4890
  %v5071 = vpack.c.b16 %v4895, %v4891
  %v5072 = vpack.c.b16 %v4896, %v4892
  %vm5249 = vcmask 523264
  %v5251 = vsel %vm5249, %v4192, 0
  %5253 = vmatprep.subr.bf16.mxu0 %v4898
  %5254 = vmatpush1.bf16.msra.mxu0 %v4897
  %5255 = vmatprep.subr.bf16.mxu0 %v4902
  %5256 = vmatpush1.bf16.msra.mxu0 %v4901
  %5257 = vmatprep.subr.bf16.mxu0 %v4906
  %5258 = vmatpush1.bf16.msra.mxu0 %v4905
  %5259 = vmatprep.subr.bf16.mxu0 %v4910
  %5260 = vmatpush1.bf16.msra.mxu0 %v4909
  %5261 = vmatprep.subr.bf16.mxu0 %v4914
  %5262 = vmatpush1.bf16.msra.mxu0 %v4913
  %5263 = vmatprep.subr.bf16.mxu0 %v4918
  %5264 = vmatpush1.bf16.msra.mxu0 %v4917
  %5265 = vmatprep.subr.bf16.mxu0 %v4922
  %5266 = vmatpush1.bf16.msra.mxu0 %v4921
  %5267 = vmatprep.subr.bf16.mxu0 %v4926
  %5268 = vmatpush1.bf16.msra.mxu0 %v4925
  %5269 = vmatprep.subr.bf16.mxu0 %v4930
  %5270 = vmatpush1.bf16.msra.mxu0 %v4929
  %5271 = vmatprep.subr.bf16.mxu0 %v4934
  %5272 = vmatpush1.bf16.msra.mxu0 %v4933
  %5273 = vmatprep.subr.bf16.mxu0 %v4938
  %5274 = vmatpush1.bf16.msra.mxu0 %v4937
  %5275 = vmatprep.subr.bf16.mxu0 %v4942
  %5276 = vmatpush1.bf16.msra.mxu0 %v4941
  %5277 = vmatprep.subr.bf16.mxu0 %v4946
  %5278 = vmatpush1.bf16.msra.mxu0 %v4945
  %5279 = vmatprep.subr.bf16.mxu0 %v4950
  %5280 = vmatpush1.bf16.msra.mxu0 %v4949
  %5281 = vmatprep.subr.bf16.mxu0 %v4954
  %5282 = vmatpush1.bf16.msra.mxu0 %v4953
  %5283 = vmatprep.subr.bf16.mxu0 %v4958
  %5284 = vmatpush1.bf16.msra.mxu0 %v4957
  %5285 = vmatprep.mubr.bf16.mxu0 %v4188
  %5286 = vmatmul.mubr.bf16.gmra.mrb[0].mxu0 %v4187
  %v5287 = vpop.f32.mrb[0].mxu0
  %v5288 = vadd.f32 %v225, %v5287
  %v5289 = vpop.f32.mrb[0].mxu0
  %v5290 = vadd.f32 %v229, %v5289
  %v5291 = vpop.f32.mrb[0].mxu0
  %v5292 = vadd.f32 %v225, %v5291
  %v5293 = vpop.f32.mrb[0].mxu0
  %v5294 = vadd.f32 %v229, %v5293
  %5295 = vdwg.mxu0
  %5296 = vmatprep.subr.bf16.mxu0 %v4962
  %5297 = vmatpush1.bf16.msra.mxu0 %v4961
  %5298 = vmatprep.subr.bf16.mxu0 %v4966
  %5299 = vmatpush1.bf16.msra.mxu0 %v4965
  %5300 = vmatprep.subr.bf16.mxu0 %v4970
  %5301 = vmatpush1.bf16.msra.mxu0 %v4969
  %5302 = vmatprep.subr.bf16.mxu0 %v4974
  %5303 = vmatpush1.bf16.msra.mxu0 %v4973
  %5304 = vmatprep.subr.bf16.mxu0 %v4978
  %5305 = vmatpush1.bf16.msra.mxu0 %v4977
  %5306 = vmatprep.subr.bf16.mxu0 %v4982
  %5307 = vmatpush1.bf16.msra.mxu0 %v4981
  %5308 = vmatprep.subr.bf16.mxu0 %v4986
  %5309 = vmatpush1.bf16.msra.mxu0 %v4985
  %5310 = vmatprep.subr.bf16.mxu0 %v4990
  %5311 = vmatpush1.bf16.msra.mxu0 %v4989
  %5312 = vmatprep.subr.bf16.mxu0 %v4994
  %5313 = vmatpush1.bf16.msra.mxu0 %v4993
  %5314 = vmatprep.subr.bf16.mxu0 %v4998
  %5315 = vmatpush1.bf16.msra.mxu0 %v4997
  %5316 = vmatprep.subr.bf16.mxu0 %v5002
  %5317 = vmatpush1.bf16.msra.mxu0 %v5001
  %5318 = vmatprep.subr.bf16.mxu0 %v5006
  %5319 = vmatpush1.bf16.msra.mxu0 %v5005
  %5320 = vmatprep.subr.bf16.mxu0 %v5010
  %5321 = vmatpush1.bf16.msra.mxu0 %v5009
  %5322 = vmatprep.subr.bf16.mxu0 %v5014
  %5323 = vmatpush1.bf16.msra.mxu0 %v5013
  %5324 = vmatprep.subr.bf16.mxu0 %v5018
  %5325 = vmatpush1.bf16.msra.mxu0 %v5017
  %5326 = vmatprep.subr.bf16.mxu0 %v5022
  %5327 = vmatpush1.bf16.msra.mxu0 %v5021
  %5328 = vmatprep.mubr.bf16.mxu0 %v4190
  %5329 = vmatmul.mubr.bf16.gmra.mrb[0].mxu0 %v4189
  %v5330 = vpop.f32.mrb[0].mxu0
  %v5331 = vadd.f32 %v5288, %v5330
  %v5332 = vpop.f32.mrb[0].mxu0
  %v5333 = vadd.f32 %v5290, %v5332
  %v5334 = vpop.f32.mrb[0].mxu0
  %v5335 = vadd.f32 %v5292, %v5334
  %v5336 = vpop.f32.mrb[0].mxu0
  %v5337 = vadd.f32 %v5294, %v5336
  %5338 = vdwg.mxu0
  %5339 = vmatprep.subr.bf16.mxu0 %v5026
  %5340 = vmatpush1.bf16.msra.mxu0 %v5025
  %5341 = vmatprep.subr.bf16.mxu0 %v5030
  %5342 = vmatpush1.bf16.msra.mxu0 %v5029
  %5343 = vmatprep.subr.bf16.mxu0 %v5034
  %5344 = vmatpush1.bf16.msra.mxu0 %v5033
  %5345 = vmatprep.subr.bf16.mxu0 %v5038
  %5346 = vmatpush1.bf16.msra.mxu0 %v5037
  %5347 = vmatprep.subr.bf16.mxu0 %v5042
  %5348 = vmatpush1.bf16.msra.mxu0 %v5041
  %5349 = vmatprep.subr.bf16.mxu0 %v5046
  %5350 = vmatpush1.bf16.msra.mxu0 %v5045
  %5351 = vmatprep.subr.bf16.mxu0 %v5050
  %5352 = vmatpush1.bf16.msra.mxu0 %v5049
  %5353 = vmatprep.subr.bf16.mxu0 %v5054
  %5354 = vmatpush1.bf16.msra.mxu0 %v5053
  %5355 = vmatprep.subr.bf16.mxu0 %v5058
  %5356 = vmatpush1.bf16.msra.mxu0 %v5057
  %5357 = vmatprep.subr.bf16.mxu0 %v5062
  %5358 = vmatpush1.bf16.msra.mxu0 %v5061
  %5359 = vmatprep.subr.bf16.mxu0 %v5066
  %5360 = vmatpush1.bf16.msra.mxu0 %v5065
  %5361 = vmatprep.subr.bf16.mxu0 %v5070
  %5362 = vmatpush1.bf16.msra.mxu0 %v5069
  %5363 = vmatprep.subr.bf16.mxu0 0
  %5364 = vmatpush1.bf16.msra.mxu0 0
  %5365 = vmatprep.subr.bf16.mxu0 0
  %5366 = vmatpush1.bf16.msra.mxu0 0
  %5367 = vmatprep.subr.bf16.mxu0 0
  %5368 = vmatpush1.bf16.msra.mxu0 0
  %5369 = vmatprep.subr.bf16.mxu0 0
  %5370 = vmatpush1.bf16.msra.mxu0 0
  %5371 = vmatprep.mubr.bf16.mxu0 %v5251
  %5372 = vmatmul.mubr.bf16.gmra.mrb[0].mxu0 %v4191
  %v5373 = vpop.f32.mrb[0].mxu0
  %v5374 = vadd.f32 %v5331, %v5373
  %v5375 = vpop.f32.mrb[0].mxu0
  %v5376 = vadd.f32 %v5333, %v5375
  %v5377 = vpop.f32.mrb[0].mxu0
  %v5378 = vadd.f32 %v5335, %v5377
  %v5379 = vpop.f32.mrb[0].mxu0
  %v5380 = vadd.f32 %v5337, %v5379
  %5381 = vdwg.mxu0
  %5382 = vmatprep.subr.bf16.mxu0 %v4900
  %5383 = vmatpush1.bf16.msra.mxu0 %v4899
  %5384 = vmatprep.subr.bf16.mxu0 %v4904
  %5385 = vmatpush1.bf16.msra.mxu0 %v4903
  %5386 = vmatprep.subr.bf16.mxu0 %v4908
  %5387 = vmatpush1.bf16.msra.mxu0 %v4907
  %5388 = vmatprep.subr.bf16.mxu0 %v4912
  %5389 = vmatpush1.bf16.msra.mxu0 %v4911
  %5390 = vmatprep.subr.bf16.mxu0 %v4916
  %5391 = vmatpush1.bf16.msra.mxu0 %v4915
  %5392 = vmatprep.subr.bf16.mxu0 %v4920
  %5393 = vmatpush1.bf16.msra.mxu0 %v4919
  %5394 = vmatprep.subr.bf16.mxu0 %v4924
  %5395 = vmatpush1.bf16.msra.mxu0 %v4923
  %5396 = vmatprep.subr.bf16.mxu0 %v4928
  %5397 = vmatpush1.bf16.msra.mxu0 %v4927
  %5398 = vmatprep.subr.bf16.mxu0 %v4932
  %5399 = vmatpush1.bf16.msra.mxu0 %v4931
  %5400 = vmatprep.subr.bf16.mxu0 %v4936
  %5401 = vmatpush1.bf16.msra.mxu0 %v4935
  %5402 = vmatprep.subr.bf16.mxu0 %v4940
  %5403 = vmatpush1.bf16.msra.mxu0 %v4939
  %5404 = vmatprep.subr.bf16.mxu0 %v4944
  %5405 = vmatpush1.bf16.msra.mxu0 %v4943
  %5406 = vmatprep.subr.bf16.mxu0 %v4948
  %5407 = vmatpush1.bf16.msra.mxu0 %v4947
  %5408 = vmatprep.subr.bf16.mxu0 %v4952
  %5409 = vmatpush1.bf16.msra.mxu0 %v4951
  %5410 = vmatprep.subr.bf16.mxu0 %v4956
  %5411 = vmatpush1.bf16.msra.mxu0 %v4955
  %5412 = vmatprep.subr.bf16.mxu0 %v4960
  %5413 = vmatpush1.bf16.msra.mxu0 %v4959
  %5414 = vmatprep.mubr.bf16.mxu0 %v4188
  %5415 = vmatmul.mubr.bf16.gmra.mrb[0].mxu0 %v4187
  %v5416 = vpop.f32.mrb[0].mxu0
  %v5417 = vadd.f32 %v233, %v5416
  %v5418 = vpop.f32.mrb[0].mxu0
  %v5419 = vadd.f32 %v237, %v5418
  %v5420 = vpop.f32.mrb[0].mxu0
  %v5421 = vadd.f32 %v233, %v5420
  %v5422 = vpop.f32.mrb[0].mxu0
  %v5423 = vadd.f32 %v237, %v5422
  %5424 = vdwg.mxu0
  %5425 = vmatprep.subr.bf16.mxu0 %v4964
  %5426 = vmatpush1.bf16.msra.mxu0 %v4963
  %5427 = vmatprep.subr.bf16.mxu0 %v4968
  %5428 = vmatpush1.bf16.msra.mxu0 %v4967
  %5429 = vmatprep.subr.bf16.mxu0 %v4972
  %5430 = vmatpush1.bf16.msra.mxu0 %v4971
  %5431 = vmatprep.subr.bf16.mxu0 %v4976
  %5432 = vmatpush1.bf16.msra.mxu0 %v4975
  %5433 = vmatprep.subr.bf16.mxu0 %v4980
  %5434 = vmatpush1.bf16.msra.mxu0 %v4979
  %5435 = vmatprep.subr.bf16.mxu0 %v4984
  %5436 = vmatpush1.bf16.msra.mxu0 %v4983
  %5437 = vmatprep.subr.bf16.mxu0 %v4988
  %5438 = vmatpush1.bf16.msra.mxu0 %v4987
  %5439 = vmatprep.subr.bf16.mxu0 %v4992
  %5440 = vmatpush1.bf16.msra.mxu0 %v4991
  %5441 = vmatprep.subr.bf16.mxu0 %v4996
  %5442 = vmatpush1.bf16.msra.mxu0 %v4995
  %5443 = vmatprep.subr.bf16.mxu0 %v5000
  %5444 = vmatpush1.bf16.msra.mxu0 %v4999
  %5445 = vmatprep.subr.bf16.mxu0 %v5004
  %5446 = vmatpush1.bf16.msra.mxu0 %v5003
  %5447 = vmatprep.subr.bf16.mxu0 %v5008
  %5448 = vmatpush1.bf16.msra.mxu0 %v5007
  %5449 = vmatprep.subr.bf16.mxu0 %v5012
  %5450 = vmatpush1.bf16.msra.mxu0 %v5011
  %5451 = vmatprep.subr.bf16.mxu0 %v5016
  %5452 = vmatpush1.bf16.msra.mxu0 %v5015
  %5453 = vmatprep.subr.bf16.mxu0 %v5020
  %5454 = vmatpush1.bf16.msra.mxu0 %v5019
  %5455 = vmatprep.subr.bf16.mxu0 %v5024
  %5456 = vmatpush1.bf16.msra.mxu0 %v5023
  %5457 = vmatprep.mubr.bf16.mxu0 %v4190
  %5458 = vmatmul.mubr.bf16.gmra.mrb[0].mxu0 %v4189
  %v5459 = vpop.f32.mrb[0].mxu0
  %v5460 = vadd.f32 %v5417, %v5459
  %v5461 = vpop.f32.mrb[0].mxu0
  %v5462 = vadd.f32 %v5419, %v5461
  %v5463 = vpop.f32.mrb[0].mxu0
  %v5464 = vadd.f32 %v5421, %v5463
  %v5465 = vpop.f32.mrb[0].mxu0
  %v5466 = vadd.f32 %v5423, %v5465
  %5467 = vdwg.mxu0
  %5468 = vmatprep.subr.bf16.mxu0 %v5028
  %5469 = vmatpush1.bf16.msra.mxu0 %v5027
  %5470 = vmatprep.subr.bf16.mxu0 %v5032
  %5471 = vmatpush1.bf16.msra.mxu0 %v5031
  %5472 = vmatprep.subr.bf16.mxu0 %v5036
  %5473 = vmatpush1.bf16.msra.mxu0 %v5035
  %5474 = vmatprep.subr.bf16.mxu0 %v5040
  %5475 = vmatpush1.bf16.msra.mxu0 %v5039
  %5476 = vmatprep.subr.bf16.mxu0 %v5044
  %5477 = vmatpush1.bf16.msra.mxu0 %v5043
  %5478 = vmatprep.subr.bf16.mxu0 %v5048
  %5479 = vmatpush1.bf16.msra.mxu0 %v5047
  %5480 = vmatprep.subr.bf16.mxu0 %v5052
  %5481 = vmatpush1.bf16.msra.mxu0 %v5051
  %5482 = vmatprep.subr.bf16.mxu0 %v5056
  %5483 = vmatpush1.bf16.msra.mxu0 %v5055
  %5484 = vmatprep.subr.bf16.mxu0 %v5060
  %5485 = vmatpush1.bf16.msra.mxu0 %v5059
  %5486 = vmatprep.subr.bf16.mxu0 %v5064
  %5487 = vmatpush1.bf16.msra.mxu0 %v5063
  %5488 = vmatprep.subr.bf16.mxu0 %v5068
  %5489 = vmatpush1.bf16.msra.mxu0 %v5067
  %5490 = vmatprep.subr.bf16.mxu0 %v5072
  %5491 = vmatpush1.bf16.msra.mxu0 %v5071
  %5492 = vmatprep.subr.bf16.mxu0 0
  %5493 = vmatpush1.bf16.msra.mxu0 0
  %5494 = vmatprep.subr.bf16.mxu0 0
  %5495 = vmatpush1.bf16.msra.mxu0 0
  %5496 = vmatprep.subr.bf16.mxu0 0
  %5497 = vmatpush1.bf16.msra.mxu0 0
  %5498 = vmatprep.subr.bf16.mxu0 0
  %5499 = vmatpush1.bf16.msra.mxu0 0
  %5500 = vmatprep.mubr.bf16.mxu0 %v5251
  %5501 = vmatmul.mubr.bf16.gmra.mrb[0].mxu0 %v4191
  %v5502 = vpop.f32.mrb[0].mxu0
  %v5503 = vadd.f32 %v5460, %v5502
  %v5504 = vpop.f32.mrb[0].mxu0
  %v5505 = vadd.f32 %v5462, %v5504
  %v5506 = vpop.f32.mrb[0].mxu0
  %v5507 = vadd.f32 %v5464, %v5506
  %v5508 = vpop.f32.mrb[0].mxu0
  %v5509 = vadd.f32 %v5466, %v5508
  %5510 = vdwg.mxu0
  %v5511 = vmax.f32 %v5374, 0.0
  %v5512 = vmax.f32 %v5376, 0.0
  %v5513 = vmax.f32 %v5503, 0.0
  %v5514 = vmax.f32 %v5505, 0.0
  %v5515 = vmax.f32 %v5378, 0.0
  %v5516 = vmax.f32 %v5380, 0.0
  %v5517 = vmax.f32 %v5507, 0.0
  %v5518 = vmax.f32 %v5509, 0.0
  %v5519 = vpack.c.bf16 %v5515, %v5511
  %v5520 = vpack.c.bf16 %v5516, %v5512
  %v5521 = vpack.c.bf16 %v5517, %v5513
  %v5522 = vpack.c.bf16 %v5518, %v5514
  %v5523 = vld [vmem:[%s7] sm:$0xff]
  %v5524 = vld [vmem:[%s7 + $0x8] sm:$0xf]
  %v5525 = vld [vmem:[%s7 + $0xc] sm:$0xff]
  %v5526 = vld [vmem:[%s7 + $0x14] sm:$0xf]
  %v5527 = vld [vmem:[%s7 + $0x18] sm:$0xff]
  %v5528 = vld [vmem:[%s7 + $0x20] sm:$0xf]
  %v5529 = vld [vmem:[%s7 + $0x24] sm:$0xff]
  %v5530 = vld [vmem:[%s7 + $0x2c] sm:$0xf]
  %v5531 = vld [vmem:[%s7 + $0x30] sm:$0xff]
  %v5532 = vld [vmem:[%s7 + $0x38] sm:$0xf]
  %v5533 = vld [vmem:[%s7 + $0x3c] sm:$0xff]
  %v5534 = vld [vmem:[%s7 + $0x44] sm:$0xf]
  %v5535 = vld [vmem:[%s7 + $0x48] sm:$0xff]
  %v5536 = vld [vmem:[%s7 + $0x50] sm:$0xf]
  %v5537 = vld [vmem:[%s7 + $0x54] sm:$0xff]
  %v5538 = vld [vmem:[%s7 + $0x5c] sm:$0xf]
  %v5539 = vld [vmem:[%s7 + $0x60] sm:$0xff]
  %v5540 = vld [vmem:[%s7 + $0x68] sm:$0xf]
  %v5541 = vld [vmem:[%s7 + $0x6c] sm:$0xff]
  %v5542 = vld [vmem:[%s7 + $0x74] sm:$0xf]
  %v5543 = vld [vmem:[%s7 + $0x78] sm:$0xff]
  %v5544 = vld [vmem:[%s7 + $0x80] sm:$0xf]
  %v5545 = vld [vmem:[%s7 + $0x84] sm:$0xff]
  %v5546 = vld [vmem:[%s7 + $0x8c] sm:$0xf]
  %v5547 = vld [vmem:[%s7 + $0x90] sm:$0xff]
  %v5548 = vld [vmem:[%s7 + $0x98] sm:$0xf]
  %v5549 = vld [vmem:[%s7 + $0x9c] sm:$0xff]
  %v5550 = vld [vmem:[%s7 + $0xa4] sm:$0xf]
  %v5551 = vld [vmem:[%s7 + $0xa8] sm:$0xff]
  %v5552 = vld [vmem:[%s7 + $0xb0] sm:$0xf]
  %v5553 = vld [vmem:[%s7 + $0xb4] sm:$0xff]
  %v5554 = vld [vmem:[%s7 + $0xbc] sm:$0xf]
  %v5555 = vld [vmem:[%s7 + $0xc0] sm:$0xff]
  %v5556 = vld [vmem:[%s7 + $0xc8] sm:$0xf]
  %v5557 = vld [vmem:[%s7 + $0xcc] sm:$0xff]
  %v5558 = vld [vmem:[%s7 + $0xd4] sm:$0xf]
  %v5559 = vld [vmem:[%s7 + $0xd8] sm:$0xff]
  %v5560 = vld [vmem:[%s7 + $0xe0] sm:$0xf]
  %v5561 = vld [vmem:[%s7 + $0xe4] sm:$0xff]
  %v5562 = vld [vmem:[%s7 + $0xec] sm:$0xf]
  %v5563 = vld [vmem:[%s7 + $0xf0] sm:$0xff]
  %v5564 = vld [vmem:[%s7 + $0xf8] sm:$0xf]
  %v5565 = vld [vmem:[%s7 + $0xfc] sm:$0xff]
  %v5566 = vld [vmem:[%s7 + $0x104] sm:$0xf]
  %v5567 = vld [vmem:[%s7 + $0x108] sm:$0xff]
  %v5568 = vld [vmem:[%s7 + $0x110] sm:$0xf]
  %v5569 = vld [vmem:[%s7 + $0x114] sm:$0xff]
  %v5570 = vld [vmem:[%s7 + $0x11c] sm:$0xf]
  %v5571 = vld [vmem:[%s7 + $0x120] sm:$0xff]
  %v5572 = vld [vmem:[%s7 + $0x128] sm:$0xf]
  %v5573 = vld [vmem:[%s7 + $0x12c] sm:$0xff]
  %v5574 = vld [vmem:[%s7 + $0x134] sm:$0xf]
  %v5575 = vld [vmem:[%s7 + $0x138] sm:$0xff]
  %v5576 = vld [vmem:[%s7 + $0x140] sm:$0xf]
  %v5577 = vld [vmem:[%s7 + $0x144] sm:$0xff]
  %v5578 = vld [vmem:[%s7 + $0x14c] sm:$0xf]
  %v5579 = vld [vmem:[%s7 + $0x150] sm:$0xff]
  %v5580 = vld [vmem:[%s7 + $0x158] sm:$0xf]
  %v5581 = vld [vmem:[%s7 + $0x15c] sm:$0xff]
  %v5582 = vld [vmem:[%s7 + $0x164] sm:$0xf]
  %v5583 = vld [vmem:[%s7 + $0x168] sm:$0xff]
  %v5584 = vld [vmem:[%s7 + $0x170] sm:$0xf]
  %v5585 = vld [vmem:[%s7 + $0x174] sm:$0xff]
  %v5586 = vld [vmem:[%s7 + $0x17c] sm:$0xf]
  %v5587 = vld [vmem:[%s7 + $0x180] sm:$0xff]
  %v5588 = vld [vmem:[%s7 + $0x188] sm:$0xf]
  %v5589 = vld [vmem:[%s7 + $0x18c] sm:$0xff]
  %v5590 = vld [vmem:[%s7 + $0x194] sm:$0xf]
  %v5591 = vld [vmem:[%s7 + $0x198] sm:$0xff]
  %v5592 = vld [vmem:[%s7 + $0x1a0] sm:$0xf]
  %v5593 = vld [vmem:[%s7 + $0x1a4] sm:$0xff]
  %v5594 = vld [vmem:[%s7 + $0x1ac] sm:$0xf]
  %v5595 = vld [vmem:[%s7 + $0x1b0] sm:$0xff]
  %v5596 = vld [vmem:[%s7 + $0x1b8] sm:$0xf]
  %v5597 = vld [vmem:[%s7 + $0x1bc] sm:$0xff]
  %v5598 = vld [vmem:[%s7 + $0x1c4] sm:$0xf]
  %v5599 = vld [vmem:[%s7 + $0x1c8] sm:$0xff]
  %v5600 = vld [vmem:[%s7 + $0x1d0] sm:$0xf]
  %v5601 = vld [vmem:[%s7 + $0x1d4] sm:$0xff]
  %v5602 = vld [vmem:[%s7 + $0x1dc] sm:$0xf]
  %v5603 = vld [vmem:[%s7 + $0x1e0] sm:$0xff]
  %v5604 = vld [vmem:[%s7 + $0x1e8] sm:$0xf]
  %v5605 = vld [vmem:[%s7 + $0x1ec] sm:$0xff]
  %v5606 = vld [vmem:[%s7 + $0x1f4] sm:$0xf]
  %v5607 = vld [vmem:[%s7 + $0x1f8] sm:$0xff]
  %v5608 = vld [vmem:[%s7 + $0x200] sm:$0xf]
  %v5609 = vld [vmem:[%s7 + $0x204] sm:$0xff]
  %v5610 = vld [vmem:[%s7 + $0x20c] sm:$0xf]
  %v5611 = vld [vmem:[%s7 + $0x210] sm:$0xff]
  %v5612 = vld [vmem:[%s7 + $0x218] sm:$0xf]
  %v5613 = vld [vmem:[%s7 + $0x21c] sm:$0xff]
  %v5614 = vld [vmem:[%s7 + $0x224] sm:$0xf]
  %v5615 = vld [vmem:[%s7 + $0x228] sm:$0xff]
  %v5616 = vld [vmem:[%s7 + $0x230] sm:$0xf]
  %v5617 = vld [vmem:[%s7 + $0x234] sm:$0xff]
  %v5618 = vld [vmem:[%s7 + $0x23c] sm:$0xf]
  %v5619 = vld [vmem:[%s7 + $0x240] sm:$0xff]
  %v5620 = vld [vmem:[%s7 + $0x248] sm:$0xf]
  %v5621 = vld [vmem:[%s7 + $0x24c] sm:$0xff]
  %v5622 = vld [vmem:[%s7 + $0x254] sm:$0xf]
  %v5623 = vld [vmem:[%s7 + $0x258] sm:$0xff]
  %v5624 = vld [vmem:[%s7 + $0x260] sm:$0xf]
  %v5625 = vld [vmem:[%s7 + $0x264] sm:$0xff]
  %v5626 = vld [vmem:[%s7 + $0x26c] sm:$0xf]
  %v5627 = vld [vmem:[%s7 + $0x270] sm:$0xff]
  %v5628 = vld [vmem:[%s7 + $0x278] sm:$0xf]
  %v5629 = vld [vmem:[%s7 + $0x27c] sm:$0xff]
  %v5630 = vld [vmem:[%s7 + $0x284] sm:$0xf]
  %v5739 = vunpack.c.l.b16 %v5523
  %v5740 = vunpack.c.h.b16 %v5523
  %v5741 = vunpack.c.l.b16 %v5524
  %v5742 = vunpack.c.l.b16 %v5525
  %v5743 = vunpack.c.h.b16 %v5525
  %v5744 = vunpack.c.l.b16 %v5526
  %v5745 = vunpack.c.l.b16 %v5527
  %v5746 = vunpack.c.h.b16 %v5527
  %v5747 = vunpack.c.l.b16 %v5528
  %v5748 = vunpack.c.l.b16 %v5529
  %v5749 = vunpack.c.h.b16 %v5529
  %v5750 = vunpack.c.l.b16 %v5530
  %v5751 = vunpack.c.l.b16 %v5531
  %v5752 = vunpack.c.h.b16 %v5531
  %v5753 = vunpack.c.l.b16 %v5532
  %v5754 = vunpack.c.l.b16 %v5533
  %v5755 = vunpack.c.h.b16 %v5533
  %v5756 = vunpack.c.l.b16 %v5534
  %v5757 = vunpack.c.l.b16 %v5535
  %v5758 = vunpack.c.h.b16 %v5535
  %v5759 = vunpack.c.l.b16 %v5536
  %v5760 = vunpack.c.l.b16 %v5537
  %v5761 = vunpack.c.h.b16 %v5537
  %v5762 = vunpack.c.l.b16 %v5538
  %v5763 = vunpack.c.l.b16 %v5539
  %v5764 = vunpack.c.h.b16 %v5539
  %v5765 = vunpack.c.l.b16 %v5540
  %v5766 = vunpack.c.l.b16 %v5541
  %v5767 = vunpack.c.h.b16 %v5541
  %v5768 = vunpack.c.l.b16 %v5542
  %v5769 = vunpack.c.l.b16 %v5543
  %v5770 = vunpack.c.h.b16 %v5543
  %v5771 = vunpack.c.l.b16 %v5544
  %v5772 = vunpack.c.l.b16 %v5545
  %v5773 = vunpack.c.h.b16 %v5545
  %v5774 = vunpack.c.l.b16 %v5546
  %v5775 = vunpack.c.l.b16 %v5547
  %v5776 = vunpack.c.h.b16 %v5547
  %v5777 = vunpack.c.l.b16 %v5548
  %v5778 = vunpack.c.l.b16 %v5549
  %v5779 = vunpack.c.h.b16 %v5549
  %v5780 = vunpack.c.l.b16 %v5550
  %v5781 = vunpack.c.l.b16 %v5551
  %v5782 = vunpack.c.h.b16 %v5551
  %v5783 = vunpack.c.l.b16 %v5552
  %v5784 = vunpack.c.l.b16 %v5553
  %v5785 = vunpack.c.h.b16 %v5553
  %v5786 = vunpack.c.l.b16 %v5554
  %v5787 = vunpack.c.l.b16 %v5555
  %v5788 = vunpack.c.h.b16 %v5555
  %v5789 = vunpack.c.l.b16 %v5556
  %v5790 = vunpack.c.l.b16 %v5557
  %v5791 = vunpack.c.h.b16 %v5557
  %v5792 = vunpack.c.l.b16 %v5558
  %v5793 = vunpack.c.l.b16 %v5559
  %v5794 = vunpack.c.h.b16 %v5559
  %v5795 = vunpack.c.l.b16 %v5560
  %v5796 = vunpack.c.l.b16 %v5561
  %v5797 = vunpack.c.h.b16 %v5561
  %v5798 = vunpack.c.l.b16 %v5562
  %v5799 = vunpack.c.l.b16 %v5563
  %v5800 = vunpack.c.h.b16 %v5563
  %v5801 = vunpack.c.l.b16 %v5564
  %v5802 = vunpack.c.l.b16 %v5565
  %v5803 = vunpack.c.h.b16 %v5565
  %v5804 = vunpack.c.l.b16 %v5566
  %v5805 = vunpack.c.l.b16 %v5567
  %v5806 = vunpack.c.h.b16 %v5567
  %v5807 = vunpack.c.l.b16 %v5568
  %v5808 = vunpack.c.l.b16 %v5569
  %v5809 = vunpack.c.h.b16 %v5569
  %v5810 = vunpack.c.l.b16 %v5570
  %v5811 = vunpack.c.l.b16 %v5571
  %v5812 = vunpack.c.h.b16 %v5571
  %v5813 = vunpack.c.l.b16 %v5572
  %v5814 = vunpack.c.l.b16 %v5573
  %v5815 = vunpack.c.h.b16 %v5573
  %v5816 = vunpack.c.l.b16 %v5574
  %v5817 = vunpack.c.l.b16 %v5575
  %v5818 = vunpack.c.h.b16 %v5575
  %v5819 = vunpack.c.l.b16 %v5576
  %v5820 = vunpack.c.l.b16 %v5577
  %v5821 = vunpack.c.h.b16 %v5577
  %v5822 = vunpack.c.l.b16 %v5578
  %v5823 = vunpack.c.l.b16 %v5579
  %v5824 = vunpack.c.h.b16 %v5579
  %v5825 = vunpack.c.l.b16 %v5580
  %v5826 = vunpack.c.l.b16 %v5581
  %v5827 = vunpack.c.h.b16 %v5581
  %v5828 = vunpack.c.l.b16 %v5582
  %v5829 = vunpack.c.l.b16 %v5583
  %v5830 = vunpack.c.h.b16 %v5583
  %v5831 = vunpack.c.l.b16 %v5584
  %v5832 = vunpack.c.l.b16 %v5585
  %v5833 = vunpack.c.h.b16 %v5585
  %v5834 = vunpack.c.l.b16 %v5586
  %v5835 = vunpack.c.l.b16 %v5587
  %v5836 = vunpack.c.h.b16 %v5587
  %v5837 = vunpack.c.l.b16 %v5588
  %v5838 = vunpack.c.l.b16 %v5589
  %v5839 = vunpack.c.h.b16 %v5589
  %v5840 = vunpack.c.l.b16 %v5590
  %v5841 = vunpack.c.l.b16 %v5591
  %v5842 = vunpack.c.h.b16 %v5591
  %v5843 = vunpack.c.l.b16 %v5592
  %v5844 = vunpack.c.l.b16 %v5593
  %v5845 = vunpack.c.h.b16 %v5593
  %v5846 = vunpack.c.l.b16 %v5594
  %v5847 = vunpack.c.l.b16 %v5595
  %v5848 = vunpack.c.h.b16 %v5595
  %v5849 = vunpack.c.l.b16 %v5596
  %v5850 = vunpack.c.l.b16 %v5597
  %v5851 = vunpack.c.h.b16 %v5597
  %v5852 = vunpack.c.l.b16 %v5598
  %v5853 = vunpack.c.l.b16 %v5599
  %v5854 = vunpack.c.h.b16 %v5599
  %v5855 = vunpack.c.l.b16 %v5600
  %v5856 = vunpack.c.l.b16 %v5601
  %v5857 = vunpack.c.h.b16 %v5601
  %v5858 = vunpack.c.l.b16 %v5602
  %v5859 = vunpack.c.l.b16 %v5603
  %v5860 = vunpack.c.h.b16 %v5603
  %v5861 = vunpack.c.l.b16 %v5604
  %v5862 = vunpack.c.l.b16 %v5605
  %v5863 = vunpack.c.h.b16 %v5605
  %v5864 = vunpack.c.l.b16 %v5606
  %v5865 = vunpack.c.l.b16 %v5607
  %v5866 = vunpack.c.h.b16 %v5607
  %v5867 = vunpack.c.l.b16 %v5608
  %v5868 = vunpack.c.l.b16 %v5609
  %v5869 = vunpack.c.h.b16 %v5609
  %v5870 = vunpack.c.l.b16 %v5610
  %v5871 = vunpack.c.l.b16 %v5611
  %v5872 = vunpack.c.h.b16 %v5611
  %v5873 = vunpack.c.l.b16 %v5612
  %v5874 = vunpack.c.l.b16 %v5613
  %v5875 = vunpack.c.h.b16 %v5613
  %v5876 = vunpack.c.l.b16 %v5614
  %v5877 = vunpack.c.l.b16 %v5615
  %v5878 = vunpack.c.h.b16 %v5615
  %v5879 = vunpack.c.l.b16 %v5616
  %v5880 = vunpack.c.l.b16 %v5617
  %v5881 = vunpack.c.h.b16 %v5617
  %v5882 = vunpack.c.l.b16 %v5618
  %v5883 = vunpack.c.l.b16 %v5619
  %v5884 = vunpack.c.h.b16 %v5619
  %v5885 = vunpack.c.l.b16 %v5620
  %v5886 = vunpack.c.l.b16 %v5621
  %v5887 = vunpack.c.h.b16 %v5621
  %v5888 = vunpack.c.l.b16 %v5622
  %v5889 = vunpack.c.l.b16 %v5623
  %v5890 = vunpack.c.h.b16 %v5623
  %v5891 = vunpack.c.l.b16 %v5624
  %v5892 = vunpack.c.l.b16 %v5625
  %v5893 = vunpack.c.h.b16 %v5625
  %v5894 = vunpack.c.l.b16 %v5626
  %v5895 = vunpack.c.l.b16 %v5627
  %v5896 = vunpack.c.h.b16 %v5627
  %v5897 = vunpack.c.l.b16 %v5628
  %v5898 = vunpack.c.l.b16 %v5629
  %v5899 = vunpack.c.h.b16 %v5629
  %v5900 = vunpack.c.l.b16 %v5630
  %v5901 = vpack.c.b16 %v5742, %v5739
  %v5902 = vpack.c.b16 %v5743, %v5740
  %v5903 = vpack.c.b16 %v5744, %v5741
  %v5904 = vpack.c.b16 %v5748, %v5745
  %v5905 = vpack.c.b16 %v5749, %v5746
  %v5906 = vpack.c.b16 %v5750, %v5747
  %v5907 = vpack.c.b16 %v5754, %v5751
  %v5908 = vpack.c.b16 %v5755, %v5752
  %v5909 = vpack.c.b16 %v5756, %v5753
  %v5910 = vpack.c.b16 %v5760, %v5757
  %v5911 = vpack.c.b16 %v5761, %v5758
  %v5912 = vpack.c.b16 %v5762, %v5759
  %v5913 = vpack.c.b16 %v5766, %v5763
  %v5914 = vpack.c.b16 %v5767, %v5764
  %v5915 = vpack.c.b16 %v5768, %v5765
  %v5916 = vpack.c.b16 %v5772, %v5769
  %v5917 = vpack.c.b16 %v5773, %v5770
  %v5918 = vpack.c.b16 %v5774, %v5771
  %v5919 = vpack.c.b16 %v5778, %v5775
  %v5920 = vpack.c.b16 %v5779, %v5776
  %v5921 = vpack.c.b16 %v5780, %v5777
  %v5922 = vpack.c.b16 %v5784, %v5781
  %v5923 = vpack.c.b16 %v5785, %v5782
  %v5924 = vpack.c.b16 %v5786, %v5783
  %v5925 = vpack.c.b16 %v5790, %v5787
  %v5926 = vpack.c.b16 %v5791, %v5788
  %v5927 = vpack.c.b16 %v5792, %v5789
  %v5928 = vpack.c.b16 %v5796, %v5793
  %v5929 = vpack.c.b16 %v5797, %v5794
  %v5930 = vpack.c.b16 %v5798, %v5795
  %v5931 = vpack.c.b16 %v5802, %v5799
  %v5932 = vpack.c.b16 %v5803, %v5800
  %v5933 = vpack.c.b16 %v5804, %v5801
  %v5934 = vpack.c.b16 %v5808, %v5805
  %v5935 = vpack.c.b16 %v5809, %v5806
  %v5936 = vpack.c.b16 %v5810, %v5807
  %v5937 = vpack.c.b16 %v5814, %v5811
  %v5938 = vpack.c.b16 %v5815, %v5812
  %v5939 = vpack.c.b16 %v5816, %v5813
  %v5940 = vpack.c.b16 %v5820, %v5817
  %v5941 = vpack.c.b16 %v5821, %v5818
  %v5942 = vpack.c.b16 %v5822, %v5819
  %v5943 = vpack.c.b16 %v5826, %v5823
  %v5944 = vpack.c.b16 %v5827, %v5824
  %v5945 = vpack.c.b16 %v5828, %v5825
  %v5946 = vpack.c.b16 %v5832, %v5829
  %v5947 = vpack.c.b16 %v5833, %v5830
  %v5948 = vpack.c.b16 %v5834, %v5831
  %v5949 = vpack.c.b16 %v5838, %v5835
  %v5950 = vpack.c.b16 %v5839, %v5836
  %v5951 = vpack.c.b16 %v5840, %v5837
  %v5952 = vpack.c.b16 %v5844, %v5841
  %v5953 = vpack.c.b16 %v5845, %v5842
  %v5954 = vpack.c.b16 %v5846, %v5843
  %v5955 = vpack.c.b16 %v5850, %v5847
  %v5956 = vpack.c.b16 %v5851, %v5848
  %v5957 = vpack.c.b16 %v5852, %v5849
  %v5958 = vpack.c.b16 %v5856, %v5853
  %v5959 = vpack.c.b16 %v5857, %v5854
  %v5960 = vpack.c.b16 %v5858, %v5855
  %v5961 = vpack.c.b16 %v5862, %v5859
  %v5962 = vpack.c.b16 %v5863, %v5860
  %v5963 = vpack.c.b16 %v5864, %v5861
  %v5964 = vpack.c.b16 %v5868, %v5865
  %v5965 = vpack.c.b16 %v5869, %v5866
  %v5966 = vpack.c.b16 %v5870, %v5867
  %v5967 = vpack.c.b16 %v5874, %v5871
  %v5968 = vpack.c.b16 %v5875, %v5872
  %v5969 = vpack.c.b16 %v5876, %v5873
  %v5970 = vpack.c.b16 %v5880, %v5877
  %v5971 = vpack.c.b16 %v5881, %v5878
  %v5972 = vpack.c.b16 %v5882, %v5879
  %v5973 = vpack.c.b16 %v5886, %v5883
  %v5974 = vpack.c.b16 %v5887, %v5884
  %v5975 = vpack.c.b16 %v5888, %v5885
  %v5976 = vpack.c.b16 %v5892, %v5889
  %v5977 = vpack.c.b16 %v5893, %v5890
  %v5978 = vpack.c.b16 %v5894, %v5891
  %v5979 = vpack.c.b16 %v5898, %v5895
  %v5980 = vpack.c.b16 %v5899, %v5896
  %v5981 = vpack.c.b16 %v5900, %v5897
  %v6064 = vsel %vm3400, %v5522, 0
  %6066 = vmatprep.subr.bf16.mxu0 %v5902
  %6067 = vmatpush1.bf16.msra.mxu0 %v5901
  %6068 = vmatprep.subr.bf16.mxu0 %v5905
  %6069 = vmatpush1.bf16.msra.mxu0 %v5904
  %6070 = vmatprep.subr.bf16.mxu0 %v5908
  %6071 = vmatpush1.bf16.msra.mxu0 %v5907
  %6072 = vmatprep.subr.bf16.mxu0 %v5911
  %6073 = vmatpush1.bf16.msra.mxu0 %v5910
  %6074 = vmatprep.subr.bf16.mxu0 %v5914
  %6075 = vmatpush1.bf16.msra.mxu0 %v5913
  %6076 = vmatprep.subr.bf16.mxu0 %v5917
  %6077 = vmatpush1.bf16.msra.mxu0 %v5916
  %6078 = vmatprep.subr.bf16.mxu0 %v5920
  %6079 = vmatpush1.bf16.msra.mxu0 %v5919
  %6080 = vmatprep.subr.bf16.mxu0 %v5923
  %6081 = vmatpush1.bf16.msra.mxu0 %v5922
  %6082 = vmatprep.subr.bf16.mxu0 %v5926
  %6083 = vmatpush1.bf16.msra.mxu0 %v5925
  %6084 = vmatprep.subr.bf16.mxu0 %v5929
  %6085 = vmatpush1.bf16.msra.mxu0 %v5928
  %6086 = vmatprep.subr.bf16.mxu0 %v5932
  %6087 = vmatpush1.bf16.msra.mxu0 %v5931
  %6088 = vmatprep.subr.bf16.mxu0 %v5935
  %6089 = vmatpush1.bf16.msra.mxu0 %v5934
  %6090 = vmatprep.subr.bf16.mxu0 %v5938
  %6091 = vmatpush1.bf16.msra.mxu0 %v5937
  %6092 = vmatprep.subr.bf16.mxu0 %v5941
  %6093 = vmatpush1.bf16.msra.mxu0 %v5940
  %6094 = vmatprep.subr.bf16.mxu0 %v5944
  %6095 = vmatpush1.bf16.msra.mxu0 %v5943
  %6096 = vmatprep.subr.bf16.mxu0 %v5947
  %6097 = vmatpush1.bf16.msra.mxu0 %v5946
  %6098 = vmatprep.mubr.bf16.mxu0 %v5520
  %6099 = vmatmul.mubr.bf16.gmra.mrb[0].mxu0 %v5519
  %v6100 = vpop.f32.mrb[0].mxu0
  %v6101 = vadd.f32 0.0, %v6100
  %v6102 = vpop.f32.mrb[0].mxu0
  %v6103 = vadd.f32 0.0, %v6102
  %v6104 = vpop.f32.mrb[0].mxu0
  %v6105 = vadd.f32 0.0, %v6104
  %v6106 = vpop.f32.mrb[0].mxu0
  %v6107 = vadd.f32 0.0, %v6106
  %6108 = vdwg.mxu0
  %6109 = vmatprep.subr.bf16.mxu0 %v5950
  %6110 = vmatpush1.bf16.msra.mxu0 %v5949
  %6111 = vmatprep.subr.bf16.mxu0 %v5953
  %6112 = vmatpush1.bf16.msra.mxu0 %v5952
  %6113 = vmatprep.subr.bf16.mxu0 %v5956
  %6114 = vmatpush1.bf16.msra.mxu0 %v5955
  %6115 = vmatprep.subr.bf16.mxu0 %v5959
  %6116 = vmatpush1.bf16.msra.mxu0 %v5958
  %6117 = vmatprep.subr.bf16.mxu0 %v5962
  %6118 = vmatpush1.bf16.msra.mxu0 %v5961
  %6119 = vmatprep.subr.bf16.mxu0 %v5965
  %6120 = vmatpush1.bf16.msra.mxu0 %v5964
  %6121 = vmatprep.subr.bf16.mxu0 %v5968
  %6122 = vmatpush1.bf16.msra.mxu0 %v5967
  %6123 = vmatprep.subr.bf16.mxu0 %v5971
  %6124 = vmatpush1.bf16.msra.mxu0 %v5970
  %6125 = vmatprep.subr.bf16.mxu0 %v5974
  %6126 = vmatpush1.bf16.msra.mxu0 %v5973
  %6127 = vmatprep.subr.bf16.mxu0 %v5977
  %6128 = vmatpush1.bf16.msra.mxu0 %v5976
  %6129 = vmatprep.subr.bf16.mxu0 %v5980
  %6130 = vmatpush1.bf16.msra.mxu0 %v5979
  %6131 = vmatprep.subr.bf16.mxu0 0
  %6132 = vmatpush1.bf16.msra.mxu0 0
  %6133 = vmatprep.subr.bf16.mxu0 0
  %6134 = vmatpush1.bf16.msra.mxu0 0
  %6135 = vmatprep.subr.bf16.mxu0 0
  %6136 = vmatpush1.bf16.msra.mxu0 0
  %6137 = vmatprep.subr.bf16.mxu0 0
  %6138 = vmatpush1.bf16.msra.mxu0 0
  %6139 = vmatprep.subr.bf16.mxu0 0
  %6140 = vmatpush1.bf16.msra.mxu0 0
  %6141 = vmatprep.mubr.bf16.mxu0 %v6064
  %6142 = vmatmul.mubr.bf16.gmra.mrb[0].mxu0 %v5521
  %v6143 = vpop.f32.mrb[0].mxu0
  %v6144 = vadd.f32 %v6101, %v6143
  %v6145 = vpop.f32.mrb[0].mxu0
  %v6146 = vadd.f32 %v6103, %v6145
  %v6147 = vpop.f32.mrb[0].mxu0
  %v6148 = vadd.f32 %v6105, %v6147
  %v6149 = vpop.f32.mrb[0].mxu0
  %v6150 = vadd.f32 %v6107, %v6149
  %6151 = vdwg.mxu0
  %6152 = vmatprep.subr.bf16.mxu0 0
  %6153 = vmatpush1.bf16.msra.mxu0 %v5903
  %6154 = vmatprep.subr.bf16.mxu0 0
  %6155 = vmatpush1.bf16.msra.mxu0 %v5906
  %6156 = vmatprep.subr.bf16.mxu0 0
  %6157 = vmatpush1.bf16.msra.mxu0 %v5909
  %6158 = vmatprep.subr.bf16.mxu0 0
  %6159 = vmatpush1.bf16.msra.mxu0 %v5912
  %6160 = vmatprep.subr.bf16.mxu0 0
  %6161 = vmatpush1.bf16.msra.mxu0 %v5915
  %6162 = vmatprep.subr.bf16.mxu0 0
  %6163 = vmatpush1.bf16.msra.mxu0 %v5918
  %6164 = vmatprep.subr.bf16.mxu0 0
  %6165 = vmatpush1.bf16.msra.mxu0 %v5921
  %6166 = vmatprep.subr.bf16.mxu0 0
  %6167 = vmatpush1.bf16.msra.mxu0 %v5924
  %6168 = vmatprep.subr.bf16.mxu0 0
  %6169 = vmatpush1.bf16.msra.mxu0 %v5927
  %6170 = vmatprep.subr.bf16.mxu0 0
  %6171 = vmatpush1.bf16.msra.mxu0 %v5930
  %6172 = vmatprep.subr.bf16.mxu0 0
  %6173 = vmatpush1.bf16.msra.mxu0 %v5933
  %6174 = vmatprep.subr.bf16.mxu0 0
  %6175 = vmatpush1.bf16.msra.mxu0 %v5936
  %6176 = vmatprep.subr.bf16.mxu0 0
  %6177 = vmatpush1.bf16.msra.mxu0 %v5939
  %6178 = vmatprep.subr.bf16.mxu0 0
  %6179 = vmatpush1.bf16.msra.mxu0 %v5942
  %6180 = vmatprep.subr.bf16.mxu0 0
  %6181 = vmatpush1.bf16.msra.mxu0 %v5945
  %6182 = vmatprep.subr.bf16.mxu0 0
  %6183 = vmatpush1.bf16.msra.mxu0 %v5948
  %6184 = vmatprep.mubr.bf16.mxu0 %v5520
  %6185 = vmatmul.mubr.bf16.gmra.mrb[0].mxu0 %v5519
  %v6186 = vpop.f32.mrb[0].mxu0
  %v6187 = vadd.f32 0.0, %v6186
  %v6188 = vpop.f32.mrb[0].mxu0
  %v6189 = vpop.f32.mrb[0].mxu0
  %v6190 = vadd.f32 0.0, %v6189
  %v6191 = vpop.f32.mrb[0].mxu0
  %6192 = vdwg.mxu0
  %6193 = vmatprep.subr.bf16.mxu0 0
  %6194 = vmatpush1.bf16.msra.mxu0 %v5951
  %6195 = vmatprep.subr.bf16.mxu0 0
  %6196 = vmatpush1.bf16.msra.mxu0 %v5954
  %6197 = vmatprep.subr.bf16.mxu0 0
  %6198 = vmatpush1.bf16.msra.mxu0 %v5957
  %6199 = vmatprep.subr.bf16.mxu0 0
  %6200 = vmatpush1.bf16.msra.mxu0 %v5960
  %6201 = vmatprep.subr.bf16.mxu0 0
  %6202 = vmatpush1.bf16.msra.mxu0 %v5963
  %6203 = vmatprep.subr.bf16.mxu0 0
  %6204 = vmatpush1.bf16.msra.mxu0 %v5966
  %6205 = vmatprep.subr.bf16.mxu0 0
  %6206 = vmatpush1.bf16.msra.mxu0 %v5969
  %6207 = vmatprep.subr.bf16.mxu0 0
  %6208 = vmatpush1.bf16.msra.mxu0 %v5972
  %6209 = vmatprep.subr.bf16.mxu0 0
  %6210 = vmatpush1.bf16.msra.mxu0 %v5975
  %6211 = vmatprep.subr.bf16.mxu0 0
  %6212 = vmatpush1.bf16.msra.mxu0 %v5978
  %6213 = vmatprep.subr.bf16.mxu0 0
  %6214 = vmatpush1.bf16.msra.mxu0 %v5981
  %6215 = vmatprep.subr.bf16.mxu0 0
  %6216 = vmatpush1.bf16.msra.mxu0 0
  %6217 = vmatprep.subr.bf16.mxu0 0
  %6218 = vmatpush1.bf16.msra.mxu0 0
  %6219 = vmatprep.subr.bf16.mxu0 0
  %6220 = vmatpush1.bf16.msra.mxu0 0
  %6221 = vmatprep.subr.bf16.mxu0 0
  %6222 = vmatpush1.bf16.msra.mxu0 0
  %6223 = vmatprep.subr.bf16.mxu0 0
  %6224 = vmatpush1.bf16.msra.mxu0 0
  %6225 = vmatprep.mubr.bf16.mxu0 %v6064
  %6226 = vmatmul.mubr.bf16.gmra.mrb[0].mxu0 %v5521
  %v6227 = vpop.f32.mrb[0].mxu0
  %v6228 = vadd.f32 %v6187, %v6227
  %v6229 = vpop.f32.mrb[0].mxu0
  %v6230 = vpop.f32.mrb[0].mxu0
  %v6231 = vadd.f32 %v6190, %v6230
  %v6232 = vpop.f32.mrb[0].mxu0
  %6233 = vdwg.mxu0
  %v6234 = vadd.f32 %v4085, %v6144
  %v6235 = vadd.f32 %v4087, %v6146
  %v6236 = vadd.f32 %v4169, %v6228
  %v6237 = vadd.f32 %v4089, %v6148
  %v6238 = vadd.f32 %v4091, %v6150
  %v6239 = vadd.f32 %v4172, %v6231
  %v6240 = vld [vmem:[%s8] sm:$0x7]
  %v6242 = vlaneseq
  %v6243 = vshrl.u32 %v6242, 7
  %v6244 = vsub.s32 0, %v6243
  %v6245 = vrot.slane %v6240, %v6244
  %v6246 = vlaneseq
  %v6247 = vshrl.u32 %v6246, 7
  %v6248 = vsub.s32 1, %v6247
  %v6249 = vrot.slane %v6240, %v6248
  %v6250 = vlaneseq
  %v6251 = vshrl.u32 %v6250, 7
  %v6252 = vsub.s32 2, %v6251
  %v6253 = vrot.slane %v6240, %v6252
  %v6257 = vadd.f32 %v6234, %v6245
  %v6258 = vadd.f32 %v6235, %v6249
  %v6259 = vadd.f32 %v6236, %v6253
  %v6260 = vadd.f32 %v6237, %v6245
  %v6261 = vadd.f32 %v6238, %v6249
  %v6262 = vadd.f32 %v6239, %v6253
  %v6263 = vmax.f32 %v6257, 0.0
  %v6264 = vmax.f32 %v6258, 0.0
  %v6265 = vmax.f32 %v6259, 0.0
  %v6266 = vmax.f32 %v6260, 0.0
  %v6267 = vmax.f32 %v6261, 0.0
  %v6268 = vmax.f32 %v6262, 0.0
  %v6269 = vpack.c.bf16 %v6266, %v6263
  %v6270 = vpack.c.bf16 %v6267, %v6264
  %v6271 = vpack.c.bf16 %v6268, %v6265
  %v6272 = vld [vmem:[%s9] sm:$0xff]
  %v6273 = vld [vmem:[%s9 + $0x8] sm:$0xff]
  %v6274 = vld [vmem:[%s9 + $0x10] sm:$0xff]
  %v6275 = vld [vmem:[%s9 + $0x18] sm:$0xff]
  %v6276 = vld [vmem:[%s9 + $0x20] sm:$0xff]
  %v6277 = vld [vmem:[%s9 + $0x28] sm:$0xff]
  %v6278 = vld [vmem:[%s9 + $0x30] sm:$0xff]
  %v6279 = vld [vmem:[%s9 + $0x38] sm:$0xff]
  %v6280 = vld [vmem:[%s9 + $0x40] sm:$0xff]
  %v6281 = vld [vmem:[%s9 + $0x48] sm:$0xff]
  %v6282 = vld [vmem:[%s9 + $0x50] sm:$0xff]
  %v6283 = vld [vmem:[%s9 + $0x58] sm:$0xff]
  %v6284 = vld [vmem:[%s9 + $0x60] sm:$0xff]
  %v6285 = vld [vmem:[%s9 + $0x68] sm:$0xff]
  %v6286 = vld [vmem:[%s9 + $0x70] sm:$0xff]
  %v6287 = vld [vmem:[%s9 + $0x78] sm:$0xff]
  %v6288 = vld [vmem:[%s9 + $0x80] sm:$0xff]
  %v6289 = vld [vmem:[%s9 + $0x88] sm:$0xff]
  %v6290 = vld [vmem:[%s9 + $0x90] sm:$0xff]
  %v6291 = vld [vmem:[%s9 + $0x98] sm:$0xff]
  %v6292 = vld [vmem:[%s9 + $0xa0] sm:$0xff]
  %v6293 = vld [vmem:[%s9 + $0xa8] sm:$0xff]
  %v6294 = vld [vmem:[%s9 + $0xb0] sm:$0xff]
  %v6295 = vld [vmem:[%s9 + $0xb8] sm:$0xff]
  %v6296 = vld [vmem:[%s9 + $0xc0] sm:$0xff]
  %v6297 = vld [vmem:[%s9 + $0xc8] sm:$0xff]
  %v6298 = vld [vmem:[%s9 + $0xd0] sm:$0xff]
  %v6299 = vld [vmem:[%s9 + $0xd8] sm:$0xff]
  %v6300 = vld [vmem:[%s9 + $0xe0] sm:$0xff]
  %v6301 = vld [vmem:[%s9 + $0xe8] sm:$0xff]
  %v6302 = vld [vmem:[%s9 + $0xf0] sm:$0xff]
  %v6303 = vld [vmem:[%s9 + $0xf8] sm:$0xff]
  %v6304 = vld [vmem:[%s9 + $0x100] sm:$0xff]
  %v6305 = vld [vmem:[%s9 + $0x108] sm:$0xff]
  %v6306 = vld [vmem:[%s9 + $0x110] sm:$0xff]
  %v6307 = vld [vmem:[%s9 + $0x118] sm:$0xff]
  %v6308 = vld [vmem:[%s10] sm:$0x3]
  %v6310 = vlaneseq
  %v6311 = vshrl.u32 %v6310, 7
  %v6312 = vsub.s32 0, %v6311
  %v6313 = vrot.slane %v6308, %v6312
  %v6314 = vlaneseq
  %v6315 = vshrl.u32 %v6314, 7
  %v6316 = vsub.s32 1, %v6315
  %v6317 = vrot.slane %v6308, %v6316
  %v6356 = vunpack.c.l.b16 %v6272
  %v6357 = vunpack.c.h.b16 %v6272
  %v6358 = vunpack.c.l.b16 %v6273
  %v6359 = vunpack.c.h.b16 %v6273
  %v6360 = vunpack.c.l.b16 %v6274
  %v6361 = vunpack.c.h.b16 %v6274
  %v6362 = vunpack.c.l.b16 %v6275
  %v6363 = vunpack.c.h.b16 %v6275
  %v6364 = vunpack.c.l.b16 %v6276
  %v6365 = vunpack.c.h.b16 %v6276
  %v6366 = vunpack.c.l.b16 %v6277
  %v6367 = vunpack.c.h.b16 %v6277
  %v6368 = vunpack.c.l.b16 %v6278
  %v6369 = vunpack.c.h.b16 %v6278
  %v6370 = vunpack.c.l.b16 %v6279
  %v6371 = vunpack.c.h.b16 %v6279
  %v6372 = vunpack.c.l.b16 %v6280
  %v6373 = vunpack.c.h.b16 %v6280
  %v6374 = vunpack.c.l.b16 %v6281
  %v6375 = vunpack.c.h.b16 %v6281
  %v6376 = vunpack.c.l.b16 %v6282
  %v6377 = vunpack.c.h.b16 %v6282
  %v6378 = vunpack.c.l.b16 %v6283
  %v6379 = vunpack.c.h.b16 %v6283
  %v6380 = vunpack.c.l.b16 %v6284
  %v6381 = vunpack.c.h.b16 %v6284
  %v6382 = vunpack.c.l.b16 %v6285
  %v6383 = vunpack.c.h.b16 %v6285
  %v6384 = vunpack.c.l.b16 %v6286
  %v6385 = vunpack.c.h.b16 %v6286
  %v6386 = vunpack.c.l.b16 %v6287
  %v6387 = vunpack.c.h.b16 %v6287
  %v6388 = vunpack.c.l.b16 %v6288
  %v6389 = vunpack.c.h.b16 %v6288
  %v6390 = vunpack.c.l.b16 %v6289
  %v6391 = vunpack.c.h.b16 %v6289
  %v6392 = vunpack.c.l.b16 %v6290
  %v6393 = vunpack.c.h.b16 %v6290
  %v6394 = vunpack.c.l.b16 %v6291
  %v6395 = vunpack.c.h.b16 %v6291
  %v6396 = vunpack.c.l.b16 %v6292
  %v6397 = vunpack.c.h.b16 %v6292
  %v6398 = vunpack.c.l.b16 %v6293
  %v6399 = vunpack.c.h.b16 %v6293
  %v6400 = vunpack.c.l.b16 %v6294
  %v6401 = vunpack.c.h.b16 %v6294
  %v6402 = vunpack.c.l.b16 %v6295
  %v6403 = vunpack.c.h.b16 %v6295
  %v6404 = vunpack.c.l.b16 %v6296
  %v6405 = vunpack.c.h.b16 %v6296
  %v6406 = vunpack.c.l.b16 %v6297
  %v6407 = vunpack.c.h.b16 %v6297
  %v6408 = vunpack.c.l.b16 %v6298
  %v6409 = vunpack.c.h.b16 %v6298
  %v6410 = vunpack.c.l.b16 %v6299
  %v6411 = vunpack.c.h.b16 %v6299
  %v6412 = vunpack.c.l.b16 %v6300
  %v6413 = vunpack.c.h.b16 %v6300
  %v6414 = vunpack.c.l.b16 %v6301
  %v6415 = vunpack.c.h.b16 %v6301
  %v6416 = vunpack.c.l.b16 %v6302
  %v6417 = vunpack.c.h.b16 %v6302
  %v6418 = vunpack.c.l.b16 %v6303
  %v6419 = vunpack.c.h.b16 %v6303
  %v6420 = vunpack.c.l.b16 %v6304
  %v6421 = vunpack.c.h.b16 %v6304
  %v6422 = vunpack.c.l.b16 %v6305
  %v6423 = vunpack.c.h.b16 %v6305
  %v6424 = vunpack.c.l.b16 %v6306
  %v6425 = vunpack.c.h.b16 %v6306
  %v6426 = vunpack.c.l.b16 %v6307
  %v6427 = vunpack.c.h.b16 %v6307
  %v6428 = vpack.c.b16 %v6358, %v6356
  %v6429 = vpack.c.b16 %v6359, %v6357
  %v6430 = vpack.c.b16 %v6362, %v6360
  %v6431 = vpack.c.b16 %v6363, %v6361
  %v6432 = vpack.c.b16 %v6366, %v6364
  %v6433 = vpack.c.b16 %v6367, %v6365
  %v6434 = vpack.c.b16 %v6370, %v6368
  %v6435 = vpack.c.b16 %v6371, %v6369
  %v6436 = vpack.c.b16 %v6374, %v6372
  %v6437 = vpack.c.b16 %v6375, %v6373
  %v6438 = vpack.c.b16 %v6378, %v6376
  %v6439 = vpack.c.b16 %v6379, %v6377
  %v6440 = vpack.c.b16 %v6382, %v6380
  %v6441 = vpack.c.b16 %v6383, %v6381
  %v6442 = vpack.c.b16 %v6386, %v6384
  %v6443 = vpack.c.b16 %v6387, %v6385
  %v6444 = vpack.c.b16 %v6390, %v6388
  %v6445 = vpack.c.b16 %v6391, %v6389
  %v6446 = vpack.c.b16 %v6394, %v6392
  %v6447 = vpack.c.b16 %v6395, %v6393
  %v6448 = vpack.c.b16 %v6398, %v6396
  %v6449 = vpack.c.b16 %v6399, %v6397
  %v6450 = vpack.c.b16 %v6402, %v6400
  %v6451 = vpack.c.b16 %v6403, %v6401
  %v6452 = vpack.c.b16 %v6406, %v6404
  %v6453 = vpack.c.b16 %v6407, %v6405
  %v6454 = vpack.c.b16 %v6410, %v6408
  %v6455 = vpack.c.b16 %v6411, %v6409
  %v6456 = vpack.c.b16 %v6414, %v6412
  %v6457 = vpack.c.b16 %v6415, %v6413
  %v6458 = vpack.c.b16 %v6418, %v6416
  %v6459 = vpack.c.b16 %v6419, %v6417
  %v6460 = vpack.c.b16 %v6422, %v6420
  %v6461 = vpack.c.b16 %v6423, %v6421
  %v6462 = vpack.c.b16 %v6426, %v6424
  %v6463 = vpack.c.b16 %v6427, %v6425
  %vm6500 = vcmask 261120
  %v6502 = vsel %vm6500, %v6271, 0
  %6504 = vmatprep.subr.bf16.mxu0 %v6429
  %6505 = vmatpush1.bf16.msra.mxu0 %v6428
  %6506 = vmatprep.subr.bf16.mxu0 %v6431
  %6507 = vmatpush1.bf16.msra.mxu0 %v6430
  %6508 = vmatprep.subr.bf16.mxu0 %v6433
  %6509 = vmatpush1.bf16.msra.mxu0 %v6432
  %6510 = vmatprep.subr.bf16.mxu0 %v6435
  %6511 = vmatpush1.bf16.msra.mxu0 %v6434
  %6512 = vmatprep.subr.bf16.mxu0 %v6437
  %6513 = vmatpush1.bf16.msra.mxu0 %v6436
  %6514 = vmatprep.subr.bf16.mxu0 %v6439
  %6515 = vmatpush1.bf16.msra.mxu0 %v6438
  %6516 = vmatprep.subr.bf16.mxu0 %v6441
  %6517 = vmatpush1.bf16.msra.mxu0 %v6440
  %6518 = vmatprep.subr.bf16.mxu0 %v6443
  %6519 = vmatpush1.bf16.msra.mxu0 %v6442
  %6520 = vmatprep.subr.bf16.mxu0 %v6445
  %6521 = vmatpush1.bf16.msra.mxu0 %v6444
  %6522 = vmatprep.subr.bf16.mxu0 %v6447
  %6523 = vmatpush1.bf16.msra.mxu0 %v6446
  %6524 = vmatprep.subr.bf16.mxu0 %v6449
  %6525 = vmatpush1.bf16.msra.mxu0 %v6448
  %6526 = vmatprep.subr.bf16.mxu0 %v6451
  %6527 = vmatpush1.bf16.msra.mxu0 %v6450
  %6528 = vmatprep.subr.bf16.mxu0 %v6453
  %6529 = vmatpush1.bf16.msra.mxu0 %v6452
  %6530 = vmatprep.subr.bf16.mxu0 %v6455
  %6531 = vmatpush1.bf16.msra.mxu0 %v6454
  %6532 = vmatprep.subr.bf16.mxu0 %v6457
  %6533 = vmatpush1.bf16.msra.mxu0 %v6456
  %6534 = vmatprep.subr.bf16.mxu0 %v6459
  %6535 = vmatpush1.bf16.msra.mxu0 %v6458
  %6536 = vmatprep.mubr.bf16.mxu0 %v6270
  %6537 = vmatmul.mubr.bf16.gmra.mrb[0].mxu0 %v6269
  %v6538 = vpop.f32.mrb[0].mxu0
  %v6539 = vadd.f32 %v6313, %v6538
  %v6540 = vpop.f32.mrb[0].mxu0
  %v6541 = vadd.f32 %v6317, %v6540
  %v6542 = vpop.f32.mrb[0].mxu0
  %v6543 = vadd.f32 %v6313, %v6542
  %v6544 = vpop.f32.mrb[0].mxu0
  %v6545 = vadd.f32 %v6317, %v6544
  %6546 = vdwg.mxu0
  %6547 = vmatprep.subr.bf16.mxu0 %v6461
  %6548 = vmatpush1.bf16.msra.mxu0 %v6460
  %6549 = vmatprep.subr.bf16.mxu0 %v6463
  %6550 = vmatpush1.bf16.msra.mxu0 %v6462
  %6551 = vmatprep.subr.bf16.mxu0 0
  %6552 = vmatpush1.bf16.msra.mxu0 0
  %6553 = vmatprep.subr.bf16.mxu0 0
  %6554 = vmatpush1.bf16.msra.mxu0 0
  %6555 = vmatprep.subr.bf16.mxu0 0
  %6556 = vmatpush1.bf16.msra.mxu0 0
  %6557 = vmatprep.subr.bf16.mxu0 0
  %6558 = vmatpush1.bf16.msra.mxu0 0
  %6559 = vmatprep.subr.bf16.mxu0 0
  %6560 = vmatpush1.bf16.msra.mxu0 0
  %6561 = vmatprep.subr.bf16.mxu0 0
  %6562 = vmatpush1.bf16.msra.mxu0 0
  %6563 = vmatprep.subr.bf16.mxu0 0
  %6564 = vmatpush1.bf16.msra.mxu0 0
  %6565 = vmatprep.subr.bf16.mxu0 0
  %6566 = vmatpush1.bf16.msra.mxu0 0
  %6567 = vmatprep.subr.bf16.mxu0 0
  %6568 = vmatpush1.bf16.msra.mxu0 0
  %6569 = vmatprep.subr.bf16.mxu0 0
  %6570 = vmatpush1.bf16.msra.mxu0 0
  %6571 = vmatprep.subr.bf16.mxu0 0
  %6572 = vmatpush1.bf16.msra.mxu0 0
  %6573 = vmatprep.subr.bf16.mxu0 0
  %6574 = vmatpush1.bf16.msra.mxu0 0
  %6575 = vmatprep.subr.bf16.mxu0 0
  %6576 = vmatpush1.bf16.msra.mxu0 0
  %6577 = vmatprep.subr.bf16.mxu0 0
  %6578 = vmatpush1.bf16.msra.mxu0 0
  %6579 = vmatprep.mubr.bf16.mxu0 0
  %6580 = vmatmul.mubr.bf16.gmra.mrb[0].mxu0 %v6502
  %v6581 = vpop.f32.mrb[0].mxu0
  %v6582 = vadd.f32 %v6539, %v6581
  %v6583 = vpop.f32.mrb[0].mxu0
  %v6584 = vadd.f32 %v6541, %v6583
  %v6585 = vpop.f32.mrb[0].mxu0
  %v6586 = vadd.f32 %v6543, %v6585
  %v6587 = vpop.f32.mrb[0].mxu0
  %v6588 = vadd.f32 %v6545, %v6587
  %6589 = vdwg.mxu0
  %v6590 = vmax.f32 %v6582, 0.0
  %v6591 = vmax.f32 %v6584, 0.0
  %v6592 = vmax.f32 %v6586, 0.0
  %v6593 = vmax.f32 %v6588, 0.0
  %v6594 = vld [vmem:[%s11] sm:$0xff]
  %v6595 = vld [vmem:[%s11 + $0x8] sm:$0xff]
  %v6596 = vld [vmem:[%s11 + $0x10] sm:$0xff]
  %v6597 = vld [vmem:[%s11 + $0x18] sm:$0xff]
  %v6598 = vld [vmem:[%s11 + $0x20] sm:$0xff]
  %v6599 = vld [vmem:[%s11 + $0x28] sm:$0xff]
  %v6600 = vld [vmem:[%s11 + $0x30] sm:$0xff]
  %v6601 = vld [vmem:[%s11 + $0x38] sm:$0xff]
  %v6602 = vld [vmem:[%s11 + $0x40] sm:$0xff]
  %v6603 = vld [vmem:[%s11 + $0x48] sm:$0xff]
  %v6604 = vld [vmem:[%s11 + $0x50] sm:$0xff]
  %v6605 = vld [vmem:[%s11 + $0x58] sm:$0xff]
  %v6606 = vld [vmem:[%s11 + $0x60] sm:$0xff]
  %v6607 = vld [vmem:[%s11 + $0x68] sm:$0xff]
  %v6608 = vld [vmem:[%s11 + $0x70] sm:$0xff]
  %v6609 = vld [vmem:[%s11 + $0x78] sm:$0xff]
  %v6610 = vld [vmem:[%s11 + $0x80] sm:$0xff]
  %v6611 = vld [vmem:[%s11 + $0x88] sm:$0xff]
  %v6612 = vld [vmem:[%s11 + $0x90] sm:$0xff]
  %v6613 = vld [vmem:[%s11 + $0x98] sm:$0xff]
  %v6614 = vld [vmem:[%s11 + $0xa0] sm:$0xff]
  %v6615 = vld [vmem:[%s11 + $0xa8] sm:$0xff]
  %v6616 = vld [vmem:[%s11 + $0xb0] sm:$0xff]
  %v6617 = vld [vmem:[%s11 + $0xb8] sm:$0xff]
  %v6618 = vld [vmem:[%s11 + $0xc0] sm:$0xff]
  %v6619 = vld [vmem:[%s11 + $0xc8] sm:$0xff]
  %v6620 = vld [vmem:[%s11 + $0xd0] sm:$0xff]
  %v6621 = vld [vmem:[%s11 + $0xd8] sm:$0xff]
  %v6622 = vld [vmem:[%s11 + $0xe0] sm:$0xff]
  %v6623 = vld [vmem:[%s11 + $0xe8] sm:$0xff]
  %v6624 = vld [vmem:[%s11 + $0xf0] sm:$0xff]
  %v6625 = vld [vmem:[%s11 + $0xf8] sm:$0xff]
  %v6626 = vld [vmem:[%s12] sm:$0x1]
  %v6628 = vlaneseq
  %v6629 = vshrl.u32 %v6628, 7
  %v6630 = vsub.s32 0, %v6629
  %v6631 = vrot.slane %v6626, %v6630
  %6633 = vmatprep.subr.mxu0 0.0
  %6634 = vmatpush1.msra.mxu0 %v6594
  %6635 = vmatprep.subr.mxu0 0.0
  %6636 = vmatpush1.msra.mxu0 %v6595
  %6637 = vmatprep.subr.mxu0 0.0
  %6638 = vmatpush1.msra.mxu0 %v6596
  %6639 = vmatprep.subr.mxu0 0.0
  %6640 = vmatpush1.msra.mxu0 %v6597
  %6641 = vmatprep.subr.mxu0 0.0
  %6642 = vmatpush1.msra.mxu0 %v6598
  %6643 = vmatprep.subr.mxu0 0.0
  %6644 = vmatpush1.msra.mxu0 %v6599
  %6645 = vmatprep.subr.mxu0 0.0
  %6646 = vmatpush1.msra.mxu0 %v6600
  %6647 = vmatprep.subr.mxu0 0.0
  %6648 = vmatpush1.msra.mxu0 %v6601
  %6649 = vmatprep.subr.mxu0 0.0
  %6650 = vmatpush1.msra.mxu0 %v6602
  %6651 = vmatprep.subr.mxu0 0.0
  %6652 = vmatpush1.msra.mxu0 %v6603
  %6653 = vmatprep.subr.mxu0 0.0
  %6654 = vmatpush1.msra.mxu0 %v6604
  %6655 = vmatprep.subr.mxu0 0.0
  %6656 = vmatpush1.msra.mxu0 %v6605
  %6657 = vmatprep.subr.mxu0 0.0
  %6658 = vmatpush1.msra.mxu0 %v6606
  %6659 = vmatprep.subr.mxu0 0.0
  %6660 = vmatpush1.msra.mxu0 %v6607
  %6661 = vmatprep.subr.mxu0 0.0
  %6662 = vmatpush1.msra.mxu0 %v6608
  %6663 = vmatprep.subr.mxu0 0.0
  %6664 = vmatpush1.msra.mxu0 %v6609
  %6665 = vmatprep.subr.mxu0 0.0
  %6666 = vmatpush1.msra.mxu0 %v6610
  %6667 = vmatprep.subr.mxu0 0.0
  %6668 = vmatpush1.msra.mxu0 %v6611
  %6669 = vmatprep.subr.mxu0 0.0
  %6670 = vmatpush1.msra.mxu0 %v6612
  %6671 = vmatprep.subr.mxu0 0.0
  %6672 = vmatpush1.msra.mxu0 %v6613
  %6673 = vmatprep.subr.mxu0 0.0
  %6674 = vmatpush1.msra.mxu0 %v6614
  %6675 = vmatprep.subr.mxu0 0.0
  %6676 = vmatpush1.msra.mxu0 %v6615
  %6677 = vmatprep.subr.mxu0 0.0
  %6678 = vmatpush1.msra.mxu0 %v6616
  %6679 = vmatprep.subr.mxu0 0.0
  %6680 = vmatpush1.msra.mxu0 %v6617
  %6681 = vmatprep.subr.mxu0 0.0
  %6682 = vmatpush1.msra.mxu0 %v6618
  %6683 = vmatprep.subr.mxu0 0.0
  %6684 = vmatpush1.msra.mxu0 %v6619
  %6685 = vmatprep.subr.mxu0 0.0
  %6686 = vmatpush1.msra.mxu0 %v6620
  %6687 = vmatprep.subr.mxu0 0.0
  %6688 = vmatpush1.msra.mxu0 %v6621
  %6689 = vmatprep.subr.mxu0 0.0
  %6690 = vmatpush1.msra.mxu0 %v6622
  %6691 = vmatprep.subr.mxu0 0.0
  %6692 = vmatpush1.msra.mxu0 %v6623
  %6693 = vmatprep.subr.mxu0 0.0
  %6694 = vmatpush1.msra.mxu0 %v6624
  %6695 = vmatprep.subr.mxu0 0.0
  %6696 = vmatpush1.msra.mxu0 %v6625
  %6697 = vmatprep.mubr.f32.mxu0 %v6591
  %6698 = vmatmul.mubr.f32.gmra.mrb[0].mxu0 %v6590
  %v6699 = vpop.f32.mrb[0].mxu0
  %v6700 = vadd.f32 %v6631, %v6699
  %v6701 = vpop.f32.mrb[0].mxu0
  %6702 = vmatprep.mubr.f32.mxu0 %v6593
  %6703 = vmatmul.mubr.f32.gmra.mrb[0].mxu0 %v6592
  %v6704 = vpop.f32.mrb[0].mxu0
  %v6705 = vadd.f32 %v6631, %v6704
  %v6706 = vpop.f32.mrb[0].mxu0
  %6707 = vdwg.mxu0
  %6708 = vst [vmem:[%s13] sm:$0xff] %v6700
  %6709 = vst [vmem:[%s13 + $0x8] sm:$0xff] %v6705
  // Predicated region
  $region54: #{dqn_forward.1} parent=0 // pred_check
    _
  $region55: #{dqn_forward.1} parent=0 // pred_check_branch
    %6711 = sbr.rel (0) target = $region57
  $region56: #{dqn_forward.1} parent=0 // pred_region
    _
  $region57: #{dqn_forward.1} parent=0 // pred_fallthru
    _
  // Predicated region
  $region58: #{dqn_forward.1} parent=0 // pred_check
    _
  $region59: #{dqn_forward.1} parent=0 // pred_check_branch
    %6713 = sbr.rel (0) target = $region61
  $region60: #{dqn_forward.1} parent=0 // pred_region
    _
  $region61: #{dqn_forward.1} parent=0 // pred_fallthru
    _

</llo_original>
